<compile_context>
chip_gen: v5e
topology: v5e:2x2
jax: 0.10.0
libtpu: 0.0.40
codegen_flags: <defaults>
</compile_context>

<pallas_src>
import jax
import jax.numpy as jnp
from jax import lax
from jax.experimental import pallas as pl
from jax.experimental.pallas import tpu as pltpu

EPS = 1e-5


# --------------------------------------------------------------------------
# Kernel 1: conv1 (3x3, pad=1, no bias) on one row tile + per-tile BN1 stats.
# --------------------------------------------------------------------------
def _conv1_kernel(xm_ref, xt_ref, xb_ref, w_ref, y_ref, st_ref, win_ref, pm_ref):
    # xm_ref : (1, TH, W, Cin)   main rows of this tile
    # xt_ref : (1, 1,  W, Cin)   row above the tile (clamped; zeroed if h == 0)
    # xb_ref : (1, 1,  W, Cin)   row below the tile (clamped; zeroed if last)
    # w_ref  : (9*Cin, Cmid)     im2col weights, (dy, dx, cin) row-major
    # y_ref  : (1, TH, W, Cmid)  raw (pre-BN) conv1 output
    # st_ref : (1, 1, 2, Cmid)   [sum, sum_of_squares] over this tile
    # win_ref: (TH+2, W+2, Cin)  per-tile halo window (VMEM scratch)
    # pm_ref : (TH*W, 9*Cin)     per-tile im2col patch matrix (VMEM scratch)
    h = pl.program_id(1)
    n_h = pl.num_programs(1)
    _, TH, W, Cin = xm_ref.shape
    Cmid = w_ref.shape[1]

    top_keep = jnp.where(h == 0, 0.0, 1.0)
    bot_keep = jnp.where(h == n_h - 1, 0.0, 1.0)

    # Assemble the halo'd window; only the 1-pixel ring is zero-filled.
    win_ref[0:1, 1:W + 1, :] = xt_ref[0] * top_keep
    win_ref[TH + 1:TH + 2, 1:W + 1, :] = xb_ref[0] * bot_keep
    win_ref[1:TH + 1, 1:W + 1, :] = xm_ref[0]
    win_ref[:, 0:1, :] = jnp.zeros((TH + 2, 1, Cin), jnp.float32)
    win_ref[:, W + 1:W + 2, :] = jnp.zeros((TH + 2, 1, Cin), jnp.float32)
    win = win_ref[...]

    # im2col once -> a single (TH*W, 9*Cin) @ (9*Cin, Cmid) MXU matmul.
    for dy in range(3):
        for dx in range(3):
            t = dy * 3 + dx
            pm_ref[:, t * Cin:(t + 1) * Cin] = (
                win[dy:dy + TH, dx:dx + W, :].reshape(TH * W, Cin))
    acc = jnp.dot(pm_ref[...], w_ref[...], preferred_element_type=jnp.float32)

    # One-pass BN statistics (per-tile partials; reduced globally outside).
    st_ref[0, 0, 0:1, :] = jnp.sum(acc, axis=0, keepdims=True)
    st_ref[0, 0, 1:2, :] = jnp.sum(acc * acc, axis=0, keepdims=True)

    y_ref[0] = acc.reshape(TH, W, Cmid)


# --------------------------------------------------------------------------
# Kernel 2: BN1 (folded scale/shift) + ReLU + conv2 on one row tile + BN2 stats.
# --------------------------------------------------------------------------
def _bn_relu_conv2_kernel(ym_ref, yt_ref, yb_ref, sc_ref, sh_ref, w_ref,
                          y2_ref, st_ref, win_ref, pm_ref):
    # ym_ref : (1, TH, W, Cmid)  conv1 output, main rows
    # yt/yb  : (1, 1,  W, Cmid)  conv1 output halo rows
    # sc/sh  : (1, Cmid)         folded BN1 scale / shift (global stats)
    # w_ref  : (9*Cmid, Cout)
    # y2_ref : (1, TH, W, Cout)  raw (pre-BN) conv2 output
    # st_ref : (1, 1, 2, Cout)
    h = pl.program_id(1)
    n_h = pl.num_programs(1)
    _, TH, W, Cmid = ym_ref.shape
    Cout = w_ref.shape[1]

    sc = sc_ref[...]            # (1, Cmid) -> broadcasts on the channel axis
    sh = sh_ref[...]

    def bn_relu(v):
        return jnp.maximum(v * sc + sh, 0.0)

    top_keep = jnp.where(h == 0, 0.0, 1.0)
    bot_keep = jnp.where(h == n_h - 1, 0.0, 1.0)

    # Zero padding is applied AFTER BN+ReLU (Conv2d pads the activation).
    win_ref[0:1, 1:W + 1, :] = bn_relu(yt_ref[0]) * top_keep
    win_ref[TH + 1:TH + 2, 1:W + 1, :] = bn_relu(yb_ref[0]) * bot_keep
    win_ref[1:TH + 1, 1:W + 1, :] = bn_relu(ym_ref[0])
    win_ref[:, 0:1, :] = jnp.zeros((TH + 2, 1, Cmid), jnp.float32)
    win_ref[:, W + 1:W + 2, :] = jnp.zeros((TH + 2, 1, Cmid), jnp.float32)
    win = win_ref[...]

    for dy in range(3):
        for dx in range(3):
            t = dy * 3 + dx
            pm_ref[:, t * Cmid:(t + 1) * Cmid] = (
                win[dy:dy + TH, dx:dx + W, :].reshape(TH * W, Cmid))
    acc = jnp.dot(pm_ref[...], w_ref[...], preferred_element_type=jnp.float32)

    st_ref[0, 0, 0:1, :] = jnp.sum(acc, axis=0, keepdims=True)
    st_ref[0, 0, 1:2, :] = jnp.sum(acc * acc, axis=0, keepdims=True)

    y2_ref[0] = acc.reshape(TH, W, Cout)


# --------------------------------------------------------------------------
# Kernel 3: BN2 (folded scale/shift) + ReLU, tiled elementwise pass.
# --------------------------------------------------------------------------
def _bn_relu_kernel(y_ref, sc_ref, sh_ref, o_ref):
    o_ref[0] = jnp.maximum(y_ref[0] * sc_ref[...] + sh_ref[...], 0.0)


def _row_tile(h):
    # Keep the row-tile either a multiple of 8 or the full extent so blocks
    # stay (8, 128)-tiling friendly.
    return 8 if (h % 8 == 0 and h > 8) else h


@jax.jit
def double_conv(x_nchw, w1, g1, b1, w2, g2, b2):
    """x_nchw: (N, Cin, H, W) f32; w1: (3,3,Cin,Cmid); w2: (3,3,Cmid,Cout).
    Returns (N, Cout, H, W), matching DoubleConv.forward (training-mode BN)."""
    N, Cin, H, W = x_nchw.shape
    Cmid = w1.shape[-1]
    Cout = w2.shape[-1]
    TH = _row_tile(H)
    nH = H // TH
    M = N * H * W

    # NCHW -> NHWC (channels on the lane axis) + im2col weight layout.
    # TODO(synk): fold the NCHW<->NHWC transposes into the kernels' index_maps
    # to save the extra HBM round trips of the layout glue.
    x = jnp.transpose(x_nchw, (0, 2, 3, 1)).astype(jnp.float32)
    w1_2d = w1.reshape(9 * Cin, Cmid).astype(jnp.float32)
    w2_2d = w2.reshape(9 * Cmid, Cout).astype(jnp.float32)

    cparams = pltpu.CompilerParams(
        dimension_semantics=("parallel", "parallel"),
        vmem_limit_bytes=32 * 1024 * 1024,
    )

    # ---- pass 1: conv1 + per-tile BN1 partial stats -----------------------
    y1, st1 = pl.pallas_call(
        _conv1_kernel,
        grid=(N, nH),
        in_specs=[
            pl.BlockSpec((1, TH, W, Cin), lambda n, h: (n, h, 0, 0)),
            pl.BlockSpec((1, 1, W, Cin),
                         lambda n, h: (n, jnp.maximum(h * TH - 1, 0), 0, 0)),
            pl.BlockSpec((1, 1, W, Cin),
                         lambda n, h: (n, jnp.minimum(h * TH + TH, H - 1), 0, 0)),
            pl.BlockSpec((9 * Cin, Cmid), lambda n, h: (0, 0)),
        ],
        out_specs=(
            pl.BlockSpec((1, TH, W, Cmid), lambda n, h: (n, h, 0, 0)),
            pl.BlockSpec((1, 1, 2, Cmid), lambda n, h: (n, h, 0, 0)),
        ),
        out_shape=(
            jax.ShapeDtypeStruct((N, H, W, Cmid), jnp.float32),
            jax.ShapeDtypeStruct((N, nH, 2, Cmid), jnp.float32),
        ),
        scratch_shapes=[
            pltpu.VMEM((TH + 2, W + 2, Cin), jnp.float32),
            pltpu.VMEM((TH * W, 9 * Cin), jnp.float32),
        ],
        compiler_params=cparams,
    )(x, x, x, w1_2d)

    # Global (N, H, W) training-mode BN1 stats from per-tile partials (tiny).
    tot1 = jnp.sum(st1, axis=(0, 1))                      # (2, Cmid)
    mean1 = tot1[0] / M
    var1 = jnp.maximum(tot1[1] / M - mean1 * mean1, 0.0)
    scale1 = g1 * lax.rsqrt(var1 + EPS)
    shift1 = b1 - mean1 * scale1

    # ---- pass 2: BN1 + ReLU + conv2 + per-tile BN2 partial stats ----------
    y2, st2 = pl.pallas_call(
        _bn_relu_conv2_kernel,
        grid=(N, nH),
        in_specs=[
            pl.BlockSpec((1, TH, W, Cmid), lambda n, h: (n, h, 0, 0)),
            pl.BlockSpec((1, 1, W, Cmid),
                         lambda n, h: (n, jnp.maximum(h * TH - 1, 0), 0, 0)),
            pl.BlockSpec((1, 1, W, Cmid),
                         lambda n, h: (n, jnp.minimum(h * TH + TH, H - 1), 0, 0)),
            pl.BlockSpec((1, Cmid), lambda n, h: (0, 0)),
            pl.BlockSpec((1, Cmid), lambda n, h: (0, 0)),
            pl.BlockSpec((9 * Cmid, Cout), lambda n, h: (0, 0)),
        ],
        out_specs=(
            pl.BlockSpec((1, TH, W, Cout), lambda n, h: (n, h, 0, 0)),
            pl.BlockSpec((1, 1, 2, Cout), lambda n, h: (n, h, 0, 0)),
        ),
        out_shape=(
            jax.ShapeDtypeStruct((N, H, W, Cout), jnp.float32),
            jax.ShapeDtypeStruct((N, nH, 2, Cout), jnp.float32),
        ),
        scratch_shapes=[
            pltpu.VMEM((TH + 2, W + 2, Cmid), jnp.float32),
            pltpu.VMEM((TH * W, 9 * Cmid), jnp.float32),
        ],
        compiler_params=cparams,
    )(y1, y1, y1, scale1.reshape(1, Cmid), shift1.reshape(1, Cmid), w2_2d)

    tot2 = jnp.sum(st2, axis=(0, 1))                      # (2, Cout)
    mean2 = tot2[0] / M
    var2 = jnp.maximum(tot2[1] / M - mean2 * mean2, 0.0)
    scale2 = g2 * lax.rsqrt(var2 + EPS)
    shift2 = b2 - mean2 * scale2

    # ---- pass 3: BN2 + ReLU (tiled elementwise) ---------------------------
    out_nhwc = pl.pallas_call(
        _bn_relu_kernel,
        grid=(N, nH),
        in_specs=[
            pl.BlockSpec((1, TH, W, Cout), lambda n, h: (n, h, 0, 0)),
            pl.BlockSpec((1, Cout), lambda n, h: (0, 0)),
            pl.BlockSpec((1, Cout), lambda n, h: (0, 0)),
        ],
        out_specs=pl.BlockSpec((1, TH, W, Cout), lambda n, h: (n, h, 0, 0)),
        out_shape=jax.ShapeDtypeStruct((N, H, W, Cout), jnp.float32),
        compiler_params=cparams,
    )(y2, scale2.reshape(1, Cout), shift2.reshape(1, Cout))

    # back to NCHW to match the PyTorch module's output convention
    return jnp.transpose(out_nhwc, (0, 3, 1, 2))


def reference_double_conv(x_nchw, w1, g1, b1, w2, g2, b2):
    """Pure-JAX reference (NHWC convs + training-mode BatchNorm)."""
    x = jnp.transpose(x_nchw, (0, 2, 3, 1))

    def conv_bn_relu(x, w, g, b):
        y = lax.conv_general_dilated(
            x, w, window_strides=(1, 1), padding="SAME",
            dimension_numbers=("NHWC", "HWIO", "NHWC"))
        mean = jnp.mean(y, axis=(0, 1, 2), keepdims=True)
        var = jnp.mean((y - mean) ** 2, axis=(0, 1, 2), keepdims=True)
        y = (y - mean) * lax.rsqrt(var + EPS) * g + b
        return jnp.maximum(y, 0.0)

    y = conv_bn_relu(x, w1, g1, b1)
    y = conv_bn_relu(y, w2, g2, b2)
    return jnp.transpose(y, (0, 3, 1, 2))


if __name__ == "__main__":
    # Small shapes consistent with the module's forward: NCHW input.
    N, Cin, H, W = 2, 4, 16, 16
    Cmid = 8   # mid_channels defaults to out_channels
    Cout = 8

    key = jax.random.PRNGKey(0)
    kx, k1, k2 = jax.random.split(key, 3)

    x = jax.random.normal(kx, (N, Cin, H, W), jnp.float32)

    # Conv weights: PyTorch shape (Cout, Cin, 3, 3) <-> kernel layout (3,3,Cin,Cout).
    std1 = (2.0 / (Cin * 9)) ** 0.5
    std2 = (2.0 / (Cmid * 9)) ** 0.5
    w1 = jax.random.normal(k1, (3, 3, Cin, Cmid), jnp.float32) * std1
    w2 = jax.random.normal(k2, (3, 3, Cmid, Cout), jnp.float32) * std2

    # BatchNorm affine params (PyTorch default init: gamma=1, beta=0).
    g1 = jnp.ones((Cmid,), jnp.float32)
    b1 = jnp.zeros((Cmid,), jnp.float32)
    g2 = jnp.ones((Cout,), jnp.float32)
    b2 = jnp.zeros((Cout,), jnp.float32)

    out = jax.block_until_ready(double_conv(x, w1, g1, b1, w2, g2, b2))
    ref = reference_double_conv(x, w1, g1, b1, w2, g2, b2)

    assert out.shape == (N, Cout, H, W)
    assert jnp.allclose(out, ref, atol=1e-4, rtol=1e-4), "mismatch vs reference"

    print("KERNEL_OK")
</pallas_src>

<mosaic_0001>
module attributes {stable_mosaic.version = 11 : i64} {
  func.func @_bn_relu_kernel(%arg0: i32, %arg1: i32, %arg2: memref<1x8x16x8xf32, #tpu.memory_space<vmem>>, %arg3: memref<1x8xf32, #tpu.memory_space<vmem>>, %arg4: memref<1x8xf32, #tpu.memory_space<vmem>>, %arg5: memref<1x8x16x8xf32, #tpu.memory_space<vmem>>) attributes {dimension_semantics = [#tpu.dimension_semantics<parallel>, #tpu.dimension_semantics<parallel>], iteration_bounds = array<i64: 2, 2>, scalar_prefetch = 0 : i64, scratch_operands = 0 : i64, tpu.core_type = #tpu.core_type<tc>, window_params = [{transform_indices = @transform_0, window_bounds = array<i64: 1, 8, 16, 8>}, {pipeline_mode = #tpu.pipeline_mode<synchronous>, transform_indices = @transform_1, window_bounds = array<i64: 1, 8>}, {pipeline_mode = #tpu.pipeline_mode<synchronous>, transform_indices = @transform_2, window_bounds = array<i64: 1, 8>}, {transform_indices = @transform_3, window_bounds = array<i64: 1, 8, 16, 8>}]} {
    %c0 = arith.constant 0 : index
    %c0_0 = arith.constant 0 : index
    %c0_1 = arith.constant 0 : index
    %c0_2 = arith.constant 0 : index
    %0 = vector.load %arg2[%c0, %c0_0, %c0_1, %c0_2] : memref<1x8x16x8xf32, #tpu.memory_space<vmem>>, vector<1x8x16x8xf32>
    %1 = vector.shape_cast %0 : vector<1x8x16x8xf32> to vector<8x16x8xf32>
    %c0_3 = arith.constant 0 : index
    %c0_4 = arith.constant 0 : index
    %2 = vector.load %arg3[%c0_3, %c0_4] : memref<1x8xf32, #tpu.memory_space<vmem>>, vector<1x8xf32>
    %3 = vector.shape_cast %2 : vector<1x8xf32> to vector<1x1x8xf32>
    %4 = vector.broadcast %3 : vector<1x1x8xf32> to vector<8x16x8xf32>
    %5 = arith.mulf %1, %4 : vector<8x16x8xf32>
    %c0_5 = arith.constant 0 : index
    %c0_6 = arith.constant 0 : index
    %6 = vector.load %arg4[%c0_5, %c0_6] : memref<1x8xf32, #tpu.memory_space<vmem>>, vector<1x8xf32>
    %7 = vector.shape_cast %6 : vector<1x8xf32> to vector<1x1x8xf32>
    %8 = vector.broadcast %7 : vector<1x1x8xf32> to vector<8x16x8xf32>
    %9 = arith.addf %5, %8 : vector<8x16x8xf32>
    %cst = arith.constant 0.000000e+00 : f32
    %10 = vector.broadcast %cst : f32 to vector<8x16x8xf32>
    %11 = arith.maximumf %9, %10 : vector<8x16x8xf32>
    %c0_7 = arith.constant 0 : index
    %c0_8 = arith.constant 0 : index
    %c0_9 = arith.constant 0 : index
    %c0_10 = arith.constant 0 : index
    %12 = vector.load %arg5[%c0_7, %c0_8, %c0_9, %c0_10] : memref<1x8x16x8xf32, #tpu.memory_space<vmem>>, vector<1x8x16x8xf32>
    %13 = vector.shape_cast %12 : vector<1x8x16x8xf32> to vector<8x16x8xf32>
    %14 = vector.shape_cast %11 : vector<8x16x8xf32> to vector<1x8x16x8xf32>
    tpu.vector_store %arg5[%c0_7, %c0_8, %c0_9, %c0_10], %14 {strides = array<i32>} : memref<1x8x16x8xf32, #tpu.memory_space<vmem>>, vector<1x8x16x8xf32>,
    return
  }
  func.func @transform_0(%arg0: i32, %arg1: i32) -> (i32, i32, i32, i32) {
    %c0_i32 = arith.constant 0 : i32
    %c0_i32_0 = arith.constant 0 : i32
    %c0_i32_1 = arith.constant 0 : i32
    return %arg0, %arg1, %c0_i32, %c0_i32_0 : i32, i32, i32, i32
  }
  func.func @transform_1(%arg0: i32, %arg1: i32) -> (i32, i32) {
    %c0_i32 = arith.constant 0 : i32
    %c0_i32_0 = arith.constant 0 : i32
    %c0_i32_1 = arith.constant 0 : i32
    return %c0_i32, %c0_i32_0 : i32, i32
  }
  func.func @transform_2(%arg0: i32, %arg1: i32) -> (i32, i32) {
    %c0_i32 = arith.constant 0 : i32
    %c0_i32_0 = arith.constant 0 : i32
    %c0_i32_1 = arith.constant 0 : i32
    return %c0_i32, %c0_i32_0 : i32, i32
  }
  func.func @transform_3(%arg0: i32, %arg1: i32) -> (i32, i32, i32, i32) {
    %c0_i32 = arith.constant 0 : i32
    %c0_i32_0 = arith.constant 0 : i32
    %c0_i32_1 = arith.constant 0 : i32
    return %arg0, %arg1, %c0_i32, %c0_i32_0 : i32, i32, i32, i32
  }
}

module attributes {stable_mosaic.version = 11 : i64} {
  func.func @_conv1_kernel(%arg0: i32, %arg1: i32, %arg2: memref<1x8x16x4xf32, #tpu.memory_space<vmem>>, %arg3: memref<1x1x16x4xf32, #tpu.memory_space<vmem>>, %arg4: memref<1x1x16x4xf32, #tpu.memory_space<vmem>>, %arg5: memref<36x8xf32, #tpu.memory_space<vmem>>, %arg6: memref<1x8x16x8xf32, #tpu.memory_space<vmem>>, %arg7: memref<1x1x2x8xf32, #tpu.memory_space<vmem>>, %arg8: memref<10x18x4xf32, #tpu.memory_space<vmem>>, %arg9: memref<128x36xf32, #tpu.memory_space<vmem>>) attributes {dimension_semantics = [#tpu.dimension_semantics<parallel>, #tpu.dimension_semantics<parallel>], iteration_bounds = array<i64: 2, 2>, scalar_prefetch = 0 : i64, scratch_operands = 2 : i64, tpu.core_type = #tpu.core_type<tc>, window_params = [{transform_indices = @transform_0, window_bounds = array<i64: 1, 8, 16, 4>}, {transform_indices = @transform_1, window_bounds = array<i64: 1, 1, 16, 4>}, {transform_indices = @transform_2, window_bounds = array<i64: 1, 1, 16, 4>}, {pipeline_mode = #tpu.pipeline_mode<synchronous>, transform_indices = @transform_3, window_bounds = array<i64: 36, 8>}, {transform_indices = @transform_4, window_bounds = array<i64: 1, 8, 16, 8>}, {transform_indices = @transform_5, window_bounds = array<i64: 1, 1, 2, 8>}]} {
    %c0_i32 = arith.constant 0 : i32
    %0 = arith.cmpi eq, %arg1, %c0_i32 : i32
    %cst = arith.constant 0.000000e+00 : f32
    %cst_0 = arith.constant 1.000000e+00 : f32
    %1 = arith.select %0, %cst, %cst_0 : f32
    %c1_i32 = arith.constant 1 : i32
    %2 = arith.cmpi eq, %arg1, %c1_i32 : i32
    %cst_1 = arith.constant 0.000000e+00 : f32
    %cst_2 = arith.constant 1.000000e+00 : f32
    %3 = arith.select %2, %cst_1, %cst_2 : f32
    %c0 = arith.constant 0 : index
    %c0_3 = arith.constant 0 : index
    %c0_4 = arith.constant 0 : index
    %c0_5 = arith.constant 0 : index
    %4 = vector.load %arg3[%c0, %c0_3, %c0_4, %c0_5] : memref<1x1x16x4xf32, #tpu.memory_space<vmem>>, vector<1x1x16x4xf32>
    %5 = vector.shape_cast %4 : vector<1x1x16x4xf32> to vector<1x16x4xf32>
    %6 = vector.broadcast %1 : f32 to vector<1x16x4xf32>
    %7 = arith.mulf %5, %6 : vector<1x16x4xf32>
    %c0_6 = arith.constant 0 : index
    %c1 = arith.constant 1 : index
    %c0_7 = arith.constant 0 : index
    %8 = vector.load %arg8[%c0_6, %c1, %c0_7] : memref<10x18x4xf32, #tpu.memory_space<vmem>>, vector<1x16x4xf32>
    tpu.vector_store %arg8[%c0_6, %c1, %c0_7], %7 {strides = array<i32>} : memref<10x18x4xf32, #tpu.memory_space<vmem>>, vector<1x16x4xf32>,
    %c0_8 = arith.constant 0 : index
    %c0_9 = arith.constant 0 : index
    %c0_10 = arith.constant 0 : index
    %c0_11 = arith.constant 0 : index
    %9 = vector.load %arg4[%c0_8, %c0_9, %c0_10, %c0_11] : memref<1x1x16x4xf32, #tpu.memory_space<vmem>>, vector<1x1x16x4xf32>
    %10 = vector.shape_cast %9 : vector<1x1x16x4xf32> to vector<1x16x4xf32>
    %11 = vector.broadcast %3 : f32 to vector<1x16x4xf32>
    %12 = arith.mulf %10, %11 : vector<1x16x4xf32>
    %c9 = arith.constant 9 : index
    %c1_12 = arith.constant 1 : index
    %c0_13 = arith.constant 0 : index
    %13 = vector.load %arg8[%c9, %c1_12, %c0_13] : memref<10x18x4xf32, #tpu.memory_space<vmem>>, vector<1x16x4xf32>
    tpu.vector_store %arg8[%c9, %c1_12, %c0_13], %12 {strides = array<i32>} : memref<10x18x4xf32, #tpu.memory_space<vmem>>, vector<1x16x4xf32>,
    %c0_14 = arith.constant 0 : index
    %c0_15 = arith.constant 0 : index
    %c0_16 = arith.constant 0 : index
    %c0_17 = arith.constant 0 : index
    %14 = vector.load %arg2[%c0_14, %c0_15, %c0_16, %c0_17] : memref<1x8x16x4xf32, #tpu.memory_space<vmem>>, vector<1x8x16x4xf32>
    %15 = vector.shape_cast %14 : vector<1x8x16x4xf32> to vector<8x16x4xf32>
    %c1_18 = arith.constant 1 : index
    %c1_19 = arith.constant 1 : index
    %c0_20 = arith.constant 0 : index
    %16 = vector.load %arg8[%c1_18, %c1_19, %c0_20] : memref<10x18x4xf32, #tpu.memory_space<vmem>>, vector<8x16x4xf32>
    tpu.vector_store %arg8[%c1_18, %c1_19, %c0_20], %15 {strides = array<i32>} : memref<10x18x4xf32, #tpu.memory_space<vmem>>, vector<8x16x4xf32>,
    %cst_21 = arith.constant 0.000000e+00 : f32
    %17 = vector.broadcast %cst_21 : f32 to vector<10x1x4xf32>
    %c0_22 = arith.constant 0 : index
    %c0_23 = arith.constant 0 : index
    %c0_24 = arith.constant 0 : index
    %18 = vector.load %arg8[%c0_22, %c0_23, %c0_24] : memref<10x18x4xf32, #tpu.memory_space<vmem>>, vector<10x1x4xf32>
    tpu.vector_store %arg8[%c0_22, %c0_23, %c0_24], %17 {strides = array<i32>} : memref<10x18x4xf32, #tpu.memory_space<vmem>>, vector<10x1x4xf32>,
    %cst_25 = arith.constant 0.000000e+00 : f32
    %19 = vector.broadcast %cst_25 : f32 to vector<10x1x4xf32>
    %c0_26 = arith.constant 0 : index
    %c17 = arith.constant 17 : index
    %c0_27 = arith.constant 0 : index
    %20 = vector.load %arg8[%c0_26, %c17, %c0_27] : memref<10x18x4xf32, #tpu.memory_space<vmem>>, vector<10x1x4xf32>
    tpu.vector_store %arg8[%c0_26, %c17, %c0_27], %19 {strides = array<i32>} : memref<10x18x4xf32, #tpu.memory_space<vmem>>, vector<10x1x4xf32>,
    %c0_28 = arith.constant 0 : index
    %c0_29 = arith.constant 0 : index
    %c0_30 = arith.constant 0 : index
    %21 = vector.load %arg8[%c0_28, %c0_29, %c0_30] : memref<10x18x4xf32, #tpu.memory_space<vmem>>, vector<10x18x4xf32>
    %22 = vector.extract_strided_slice %21 {offsets = [0, 0, 0], sizes = [8, 16, 4], strides = [1, 1, 1]} : vector<10x18x4xf32> to vector<8x16x4xf32>
    %23 = vector.shape_cast %22 : vector<8x16x4xf32> to vector<128x4xf32>
    %c0_31 = arith.constant 0 : index
    %c0_32 = arith.constant 0 : index
    %24 = vector.load %arg9[%c0_31, %c0_32] : memref<128x36xf32, #tpu.memory_space<vmem>>, vector<128x4xf32>
    tpu.vector_store %arg9[%c0_31, %c0_32], %23 {strides = array<i32>} : memref<128x36xf32, #tpu.memory_space<vmem>>, vector<128x4xf32>,
    %25 = vector.extract_strided_slice %21 {offsets = [0, 1, 0], sizes = [8, 16, 4], strides = [1, 1, 1]} : vector<10x18x4xf32> to vector<8x16x4xf32>
    %26 = vector.shape_cast %25 : vector<8x16x4xf32> to vector<128x4xf32>
    %c0_33 = arith.constant 0 : index
    %c4 = arith.constant 4 : index
    %27 = vector.load %arg9[%c0_33, %c4] : memref<128x36xf32, #tpu.memory_space<vmem>>, vector<128x4xf32>
    tpu.vector_store %arg9[%c0_33, %c4], %26 {strides = array<i32>} : memref<128x36xf32, #tpu.memory_space<vmem>>, vector<128x4xf32>,
    %28 = vector.extract_strided_slice %21 {offsets = [0, 2, 0], sizes = [8, 16, 4], strides = [1, 1, 1]} : vector<10x18x4xf32> to vector<8x16x4xf32>
    %29 = vector.shape_cast %28 : vector<8x16x4xf32> to vector<128x4xf32>
    %c0_34 = arith.constant 0 : index
    %c8 = arith.constant 8 : index
    %30 = vector.load %arg9[%c0_34, %c8] : memref<128x36xf32, #tpu.memory_space<vmem>>, vector<128x4xf32>
    tpu.vector_store %arg9[%c0_34, %c8], %29 {strides = array<i32>} : memref<128x36xf32, #tpu.memory_space<vmem>>, vector<128x4xf32>,
    %31 = vector.extract_strided_slice %21 {offsets = [1, 0, 0], sizes = [8, 16, 4], strides = [1, 1, 1]} : vector<10x18x4xf32> to vector<8x16x4xf32>
    %32 = vector.shape_cast %31 : vector<8x16x4xf32> to vector<128x4xf32>
    %c0_35 = arith.constant 0 : index
    %c12 = arith.constant 12 : index
    %33 = vector.load %arg9[%c0_35, %c12] : memref<128x36xf32, #tpu.memory_space<vmem>>, vector<128x4xf32>
    tpu.vector_store %arg9[%c0_35, %c12], %32 {strides = array<i32>} : memref<128x36xf32, #tpu.memory_space<vmem>>, vector<128x4xf32>,
    %34 = vector.extract_strided_slice %21 {offsets = [1, 1, 0], sizes = [8, 16, 4], strides = [1, 1, 1]} : vector<10x18x4xf32> to vector<8x16x4xf32>
    %35 = vector.shape_cast %34 : vector<8x16x4xf32> to vector<128x4xf32>
    %c0_36 = arith.constant 0 : index
    %c16 = arith.constant 16 : index
    %36 = vector.load %arg9[%c0_36, %c16] : memref<128x36xf32, #tpu.memory_space<vmem>>, vector<128x4xf32>
    tpu.vector_store %arg9[%c0_36, %c16], %35 {strides = array<i32>} : memref<128x36xf32, #tpu.memory_space<vmem>>, vector<128x4xf32>,
    %37 = vector.extract_strided_slice %21 {offsets = [1, 2, 0], sizes = [8, 16, 4], strides = [1, 1, 1]} : vector<10x18x4xf32> to vector<8x16x4xf32>
    %38 = vector.shape_cast %37 : vector<8x16x4xf32> to vector<128x4xf32>
    %c0_37 = arith.constant 0 : index
    %c20 = arith.constant 20 : index
    %39 = vector.load %arg9[%c0_37, %c20] : memref<128x36xf32, #tpu.memory_space<vmem>>, vector<128x4xf32>
    tpu.vector_store %arg9[%c0_37, %c20], %38 {strides = array<i32>} : memref<128x36xf32, #tpu.memory_space<vmem>>, vector<128x4xf32>,
    %40 = vector.extract_strided_slice %21 {offsets = [2, 0, 0], sizes = [8, 16, 4], strides = [1, 1, 1]} : vector<10x18x4xf32> to vector<8x16x4xf32>
    %41 = vector.shape_cast %40 : vector<8x16x4xf32> to vector<128x4xf32>
    %c0_38 = arith.constant 0 : index
    %c24 = arith.constant 24 : index
    %42 = vector.load %arg9[%c0_38, %c24] : memref<128x36xf32, #tpu.memory_space<vmem>>, vector<128x4xf32>
    tpu.vector_store %arg9[%c0_38, %c24], %41 {strides = array<i32>} : memref<128x36xf32, #tpu.memory_space<vmem>>, vector<128x4xf32>,
    %43 = vector.extract_strided_slice %21 {offsets = [2, 1, 0], sizes = [8, 16, 4], strides = [1, 1, 1]} : vector<10x18x4xf32> to vector<8x16x4xf32>
    %44 = vector.shape_cast %43 : vector<8x16x4xf32> to vector<128x4xf32>
    %c0_39 = arith.constant 0 : index
    %c28 = arith.constant 28 : index
    %45 = vector.load %arg9[%c0_39, %c28] : memref<128x36xf32, #tpu.memory_space<vmem>>, vector<128x4xf32>
    tpu.vector_store %arg9[%c0_39, %c28], %44 {strides = array<i32>} : memref<128x36xf32, #tpu.memory_space<vmem>>, vector<128x4xf32>,
    %46 = vector.extract_strided_slice %21 {offsets = [2, 2, 0], sizes = [8, 16, 4], strides = [1, 1, 1]} : vector<10x18x4xf32> to vector<8x16x4xf32>
    %47 = vector.shape_cast %46 : vector<8x16x4xf32> to vector<128x4xf32>
    %c0_40 = arith.constant 0 : index
    %c32 = arith.constant 32 : index
    %48 = vector.load %arg9[%c0_40, %c32] : memref<128x36xf32, #tpu.memory_space<vmem>>, vector<128x4xf32>
    tpu.vector_store %arg9[%c0_40, %c32], %47 {strides = array<i32>} : memref<128x36xf32, #tpu.memory_space<vmem>>, vector<128x4xf32>,
    %c0_41 = arith.constant 0 : index
    %c0_42 = arith.constant 0 : index
    %49 = vector.load %arg9[%c0_41, %c0_42] : memref<128x36xf32, #tpu.memory_space<vmem>>, vector<128x36xf32>
    %c0_43 = arith.constant 0 : index
    %c0_44 = arith.constant 0 : index
    %50 = vector.load %arg5[%c0_43, %c0_44] : memref<36x8xf32, #tpu.memory_space<vmem>>, vector<36x8xf32>
    %cst_45 = arith.constant dense<0.000000e+00> : vector<128x8xf32>
    %51 = tpu.matmul %49, %50, %cst_45 {dimension_numbers = #tpu.dot_dimension_numbers<[1], [0], [0], [1], [0, 0, 1, 1], [], []>} : vector<128x36xf32>, vector<36x8xf32>, vector<128x8xf32> -> vector<128x8xf32>
    %cst_46 = arith.constant dense<0.000000e+00> : vector<8xf32>
    %52 = vector.multi_reduction <add>, %51, %cst_46 [0] : vector<128x8xf32> to vector<8xf32>
    %53 = vector.shape_cast %52 : vector<8xf32> to vector<1x8xf32>
    %c0_47 = arith.constant 0 : index
    %c0_48 = arith.constant 0 : index
    %c0_49 = arith.constant 0 : index
    %c0_50 = arith.constant 0 : index
    %54 = vector.load %arg7[%c0_47, %c0_48, %c0_49, %c0_50] : memref<1x1x2x8xf32, #tpu.memory_space<vmem>>, vector<1x1x1x8xf32>
    %55 = vector.shape_cast %54 : vector<1x1x1x8xf32> to vector<1x8xf32>
    %56 = vector.shape_cast %53 : vector<1x8xf32> to vector<1x1x1x8xf32>
    tpu.vector_store %arg7[%c0_47, %c0_48, %c0_49, %c0_50], %56 {strides = array<i32>} : memref<1x1x2x8xf32, #tpu.memory_space<vmem>>, vector<1x1x1x8xf32>,
    %57 = arith.mulf %51, %51 : vector<128x8xf32>
    %cst_51 = arith.constant dense<0.000000e+00> : vector<8xf32>
    %58 = vector.multi_reduction <add>, %57, %cst_51 [0] : vector<128x8xf32> to vector<8xf32>
    %59 = vector.shape_cast %58 : vector<8xf32> to vector<1x8xf32>
    %c0_52 = arith.constant 0 : index
    %c0_53 = arith.constant 0 : index
    %c1_54 = arith.constant 1 : index
    %c0_55 = arith.constant 0 : index
    %60 = vector.load %arg7[%c0_52, %c0_53, %c1_54, %c0_55] : memref<1x1x2x8xf32, #tpu.memory_space<vmem>>, vector<1x1x1x8xf32>
    %61 = vector.shape_cast %60 : vector<1x1x1x8xf32> to vector<1x8xf32>
    %62 = vector.shape_cast %59 : vector<1x8xf32> to vector<1x1x1x8xf32>
    tpu.vector_store %arg7[%c0_52, %c0_53, %c1_54, %c0_55], %62 {strides = array<i32>} : memref<1x1x2x8xf32, #tpu.memory_space<vmem>>, vector<1x1x1x8xf32>,
    %63 = vector.shape_cast %51 : vector<128x8xf32> to vector<8x16x8xf32>
    %c0_56 = arith.constant 0 : index
    %c0_57 = arith.constant 0 : index
    %c0_58 = arith.constant 0 : index
    %c0_59 = arith.constant 0 : index
    %64 = vector.load %arg6[%c0_56, %c0_57, %c0_58, %c0_59] : memref<1x8x16x8xf32, #tpu.memory_space<vmem>>, vector<1x8x16x8xf32>
    %65 = vector.shape_cast %64 : vector<1x8x16x8xf32> to vector<8x16x8xf32>
    %66 = vector.shape_cast %63 : vector<8x16x8xf32> to vector<1x8x16x8xf32>
    tpu.vector_store %arg6[%c0_56, %c0_57, %c0_58, %c0_59], %66 {strides = array<i32>} : memref<1x8x16x8xf32, #tpu.memory_space<vmem>>, vector<1x8x16x8xf32>,
    return
  }
  func.func @transform_0(%arg0: i32, %arg1: i32) -> (i32, i32, i32, i32) {
    %c0_i32 = arith.constant 0 : i32
    %c0_i32_0 = arith.constant 0 : i32
    %c0_i32_1 = arith.constant 0 : i32
    return %arg0, %arg1, %c0_i32, %c0_i32_0 : i32, i32, i32, i32
  }
  func.func @transform_1(%arg0: i32, %arg1: i32) -> (i32, i32, i32, i32) {
    %c8_i32 = arith.constant 8 : i32
    %0 = arith.muli %arg1, %c8_i32 : i32
    %c1_i32 = arith.constant 1 : i32
    %1 = arith.subi %0, %c1_i32 : i32
    %c0_i32 = arith.constant 0 : i32
    %2 = arith.maxsi %1, %c0_i32 : i32
    %c0_i32_0 = arith.constant 0 : i32
    %c0_i32_1 = arith.constant 0 : i32
    %c0_i32_2 = arith.constant 0 : i32
    return %arg0, %2, %c0_i32_0, %c0_i32_1 : i32, i32, i32, i32
  }
  func.func @transform_2(%arg0: i32, %arg1: i32) -> (i32, i32, i32, i32) {
    %c8_i32 = arith.constant 8 : i32
    %0 = arith.muli %arg1, %c8_i32 : i32
    %c8_i32_0 = arith.constant 8 : i32
    %1 = arith.addi %0, %c8_i32_0 : i32
    %c15_i32 = arith.constant 15 : i32
    %2 = arith.minsi %1, %c15_i32 : i32
    %c0_i32 = arith.constant 0 : i32
    %c0_i32_1 = arith.constant 0 : i32
    %c0_i32_2 = arith.constant 0 : i32
    return %arg0, %2, %c0_i32, %c0_i32_1 : i32, i32, i32, i32
  }
  func.func @transform_3(%arg0: i32, %arg1: i32) -> (i32, i32) {
    %c0_i32 = arith.constant 0 : i32
    %c0_i32_0 = arith.constant 0 : i32
    %c0_i32_1 = arith.constant 0 : i32
    return %c0_i32, %c0_i32_0 : i32, i32
  }
  func.func @transform_4(%arg0: i32, %arg1: i32) -> (i32, i32, i32, i32) {
    %c0_i32 = arith.constant 0 : i32
    %c0_i32_0 = arith.constant 0 : i32
    %c0_i32_1 = arith.constant 0 : i32
    return %arg0, %arg1, %c0_i32, %c0_i32_0 : i32, i32, i32, i32
  }
  func.func @transform_5(%arg0: i32, %arg1: i32) -> (i32, i32, i32, i32) {
    %c0_i32 = arith.constant 0 : i32
    %c0_i32_0 = arith.constant 0 : i32
    %c0_i32_1 = arith.constant 0 : i32
    return %arg0, %arg1, %c0_i32, %c0_i32_0 : i32, i32, i32, i32
  }
}

module attributes {stable_mosaic.version = 11 : i64} {
  func.func @_bn_relu_conv2_kernel(%arg0: i32, %arg1: i32, %arg2: memref<1x8x16x8xf32, #tpu.memory_space<vmem>>, %arg3: memref<1x1x16x8xf32, #tpu.memory_space<vmem>>, %arg4: memref<1x1x16x8xf32, #tpu.memory_space<vmem>>, %arg5: memref<1x8xf32, #tpu.memory_space<vmem>>, %arg6: memref<1x8xf32, #tpu.memory_space<vmem>>, %arg7: memref<72x8xf32, #tpu.memory_space<vmem>>, %arg8: memref<1x8x16x8xf32, #tpu.memory_space<vmem>>, %arg9: memref<1x1x2x8xf32, #tpu.memory_space<vmem>>, %arg10: memref<10x18x8xf32, #tpu.memory_space<vmem>>, %arg11: memref<128x72xf32, #tpu.memory_space<vmem>>) attributes {dimension_semantics = [#tpu.dimension_semantics<parallel>, #tpu.dimension_semantics<parallel>], iteration_bounds = array<i64: 2, 2>, scalar_prefetch = 0 : i64, scratch_operands = 2 : i64, tpu.core_type = #tpu.core_type<tc>, window_params = [{transform_indices = @transform_0, window_bounds = array<i64: 1, 8, 16, 8>}, {transform_indices = @transform_1, window_bounds = array<i64: 1, 1, 16, 8>}, {transform_indices = @transform_2, window_bounds = array<i64: 1, 1, 16, 8>}, {pipeline_mode = #tpu.pipeline_mode<synchronous>, transform_indices = @transform_3, window_bounds = array<i64: 1, 8>}, {pipeline_mode = #tpu.pipeline_mode<synchronous>, transform_indices = @transform_4, window_bounds = array<i64: 1, 8>}, {pipeline_mode = #tpu.pipeline_mode<synchronous>, transform_indices = @transform_5, window_bounds = array<i64: 72, 8>}, {transform_indices = @transform_6, window_bounds = array<i64: 1, 8, 16, 8>}, {transform_indices = @transform_7, window_bounds = array<i64: 1, 1, 2, 8>}]} {
    %c0 = arith.constant 0 : index
    %c0_0 = arith.constant 0 : index
    %0 = vector.load %arg5[%c0, %c0_0] : memref<1x8xf32, #tpu.memory_space<vmem>>, vector<1x8xf32>
    %c0_1 = arith.constant 0 : index
    %c0_2 = arith.constant 0 : index
    %1 = vector.load %arg6[%c0_1, %c0_2] : memref<1x8xf32, #tpu.memory_space<vmem>>, vector<1x8xf32>
    %c0_i32 = arith.constant 0 : i32
    %2 = arith.cmpi eq, %arg1, %c0_i32 : i32
    %cst = arith.constant 0.000000e+00 : f32
    %cst_3 = arith.constant 1.000000e+00 : f32
    %3 = arith.select %2, %cst, %cst_3 : f32
    %c1_i32 = arith.constant 1 : i32
    %4 = arith.cmpi eq, %arg1, %c1_i32 : i32
    %cst_4 = arith.constant 0.000000e+00 : f32
    %cst_5 = arith.constant 1.000000e+00 : f32
    %5 = arith.select %4, %cst_4, %cst_5 : f32
    %c0_6 = arith.constant 0 : index
    %c0_7 = arith.constant 0 : index
    %c0_8 = arith.constant 0 : index
    %c0_9 = arith.constant 0 : index
    %6 = vector.load %arg3[%c0_6, %c0_7, %c0_8, %c0_9] : memref<1x1x16x8xf32, #tpu.memory_space<vmem>>, vector<1x1x16x8xf32>
    %7 = vector.shape_cast %6 : vector<1x1x16x8xf32> to vector<1x16x8xf32>
    %8 = vector.shape_cast %0 : vector<1x8xf32> to vector<1x1x8xf32>
    %9 = vector.broadcast %8 : vector<1x1x8xf32> to vector<1x16x8xf32>
    %10 = arith.mulf %7, %9 : vector<1x16x8xf32>
    %11 = vector.shape_cast %1 : vector<1x8xf32> to vector<1x1x8xf32>
    %12 = vector.broadcast %11 : vector<1x1x8xf32> to vector<1x16x8xf32>
    %13 = arith.addf %10, %12 : vector<1x16x8xf32>
    %cst_10 = arith.constant 0.000000e+00 : f32
    %14 = vector.broadcast %cst_10 : f32 to vector<1x16x8xf32>
    %15 = arith.maximumf %13, %14 : vector<1x16x8xf32>
    %16 = vector.broadcast %3 : f32 to vector<1x16x8xf32>
    %17 = arith.mulf %15, %16 : vector<1x16x8xf32>
    %c0_11 = arith.constant 0 : index
    %c1 = arith.constant 1 : index
    %c0_12 = arith.constant 0 : index
    %18 = vector.load %arg10[%c0_11, %c1, %c0_12] : memref<10x18x8xf32, #tpu.memory_space<vmem>>, vector<1x16x8xf32>
    tpu.vector_store %arg10[%c0_11, %c1, %c0_12], %17 {strides = array<i32>} : memref<10x18x8xf32, #tpu.memory_space<vmem>>, vector<1x16x8xf32>,
    %c0_13 = arith.constant 0 : index
    %c0_14 = arith.constant 0 : index
    %c0_15 = arith.constant 0 : index
    %c0_16 = arith.constant 0 : index
    %19 = vector.load %arg4[%c0_13, %c0_14, %c0_15, %c0_16] : memref<1x1x16x8xf32, #tpu.memory_space<vmem>>, vector<1x1x16x8xf32>
    %20 = vector.shape_cast %19 : vector<1x1x16x8xf32> to vector<1x16x8xf32>
    %21 = vector.shape_cast %0 : vector<1x8xf32> to vector<1x1x8xf32>
    %22 = vector.broadcast %21 : vector<1x1x8xf32> to vector<1x16x8xf32>
    %23 = arith.mulf %20, %22 : vector<1x16x8xf32>
    %24 = vector.shape_cast %1 : vector<1x8xf32> to vector<1x1x8xf32>
    %25 = vector.broadcast %24 : vector<1x1x8xf32> to vector<1x16x8xf32>
    %26 = arith.addf %23, %25 : vector<1x16x8xf32>
    %cst_17 = arith.constant 0.000000e+00 : f32
    %27 = vector.broadcast %cst_17 : f32 to vector<1x16x8xf32>
    %28 = arith.maximumf %26, %27 : vector<1x16x8xf32>
    %29 = vector.broadcast %5 : f32 to vector<1x16x8xf32>
    %30 = arith.mulf %28, %29 : vector<1x16x8xf32>
    %c9 = arith.constant 9 : index
    %c1_18 = arith.constant 1 : index
    %c0_19 = arith.constant 0 : index
    %31 = vector.load %arg10[%c9, %c1_18, %c0_19] : memref<10x18x8xf32, #tpu.memory_space<vmem>>, vector<1x16x8xf32>
    tpu.vector_store %arg10[%c9, %c1_18, %c0_19], %30 {strides = array<i32>} : memref<10x18x8xf32, #tpu.memory_space<vmem>>, vector<1x16x8xf32>,
    %c0_20 = arith.constant 0 : index
    %c0_21 = arith.constant 0 : index
    %c0_22 = arith.constant 0 : index
    %c0_23 = arith.constant 0 : index
    %32 = vector.load %arg2[%c0_20, %c0_21, %c0_22, %c0_23] : memref<1x8x16x8xf32, #tpu.memory_space<vmem>>, vector<1x8x16x8xf32>
    %33 = vector.shape_cast %32 : vector<1x8x16x8xf32> to vector<8x16x8xf32>
    %34 = vector.shape_cast %0 : vector<1x8xf32> to vector<1x1x8xf32>
    %35 = vector.broadcast %34 : vector<1x1x8xf32> to vector<8x16x8xf32>
    %36 = arith.mulf %33, %35 : vector<8x16x8xf32>
    %37 = vector.shape_cast %1 : vector<1x8xf32> to vector<1x1x8xf32>
    %38 = vector.broadcast %37 : vector<1x1x8xf32> to vector<8x16x8xf32>
    %39 = arith.addf %36, %38 : vector<8x16x8xf32>
    %cst_24 = arith.constant 0.000000e+00 : f32
    %40 = vector.broadcast %cst_24 : f32 to vector<8x16x8xf32>
    %41 = arith.maximumf %39, %40 : vector<8x16x8xf32>
    %c1_25 = arith.constant 1 : index
    %c1_26 = arith.constant 1 : index
    %c0_27 = arith.constant 0 : index
    %42 = vector.load %arg10[%c1_25, %c1_26, %c0_27] : memref<10x18x8xf32, #tpu.memory_space<vmem>>, vector<8x16x8xf32>
    tpu.vector_store %arg10[%c1_25, %c1_26, %c0_27], %41 {strides = array<i32>} : memref<10x18x8xf32, #tpu.memory_space<vmem>>, vector<8x16x8xf32>,
    %cst_28 = arith.constant 0.000000e+00 : f32
    %43 = vector.broadcast %cst_28 : f32 to vector<10x1x8xf32>
    %c0_29 = arith.constant 0 : index
    %c0_30 = arith.constant 0 : index
    %c0_31 = arith.constant 0 : index
    %44 = vector.load %arg10[%c0_29, %c0_30, %c0_31] : memref<10x18x8xf32, #tpu.memory_space<vmem>>, vector<10x1x8xf32>
    tpu.vector_store %arg10[%c0_29, %c0_30, %c0_31], %43 {strides = array<i32>} : memref<10x18x8xf32, #tpu.memory_space<vmem>>, vector<10x1x8xf32>,
    %cst_32 = arith.constant 0.000000e+00 : f32
    %45 = vector.broadcast %cst_32 : f32 to vector<10x1x8xf32>
    %c0_33 = arith.constant 0 : index
    %c17 = arith.constant 17 : index
    %c0_34 = arith.constant 0 : index
    %46 = vector.load %arg10[%c0_33, %c17, %c0_34] : memref<10x18x8xf32, #tpu.memory_space<vmem>>, vector<10x1x8xf32>
    tpu.vector_store %arg10[%c0_33, %c17, %c0_34], %45 {strides = array<i32>} : memref<10x18x8xf32, #tpu.memory_space<vmem>>, vector<10x1x8xf32>,
    %c0_35 = arith.constant 0 : index
    %c0_36 = arith.constant 0 : index
    %c0_37 = arith.constant 0 : index
    %47 = vector.load %arg10[%c0_35, %c0_36, %c0_37] : memref<10x18x8xf32, #tpu.memory_space<vmem>>, vector<10x18x8xf32>
    %48 = vector.extract_strided_slice %47 {offsets = [0, 0, 0], sizes = [8, 16, 8], strides = [1, 1, 1]} : vector<10x18x8xf32> to vector<8x16x8xf32>
    %49 = vector.shape_cast %48 : vector<8x16x8xf32> to vector<128x8xf32>
    %c0_38 = arith.constant 0 : index
    %c0_39 = arith.constant 0 : index
    %50 = vector.load %arg11[%c0_38, %c0_39] : memref<128x72xf32, #tpu.memory_space<vmem>>, vector<128x8xf32>
    tpu.vector_store %arg11[%c0_38, %c0_39], %49 {strides = array<i32>} : memref<128x72xf32, #tpu.memory_space<vmem>>, vector<128x8xf32>,
    %51 = vector.extract_strided_slice %47 {offsets = [0, 1, 0], sizes = [8, 16, 8], strides = [1, 1, 1]} : vector<10x18x8xf32> to vector<8x16x8xf32>
    %52 = vector.shape_cast %51 : vector<8x16x8xf32> to vector<128x8xf32>
    %c0_40 = arith.constant 0 : index
    %c8 = arith.constant 8 : index
    %53 = vector.load %arg11[%c0_40, %c8] : memref<128x72xf32, #tpu.memory_space<vmem>>, vector<128x8xf32>
    tpu.vector_store %arg11[%c0_40, %c8], %52 {strides = array<i32>} : memref<128x72xf32, #tpu.memory_space<vmem>>, vector<128x8xf32>,
    %54 = vector.extract_strided_slice %47 {offsets = [0, 2, 0], sizes = [8, 16, 8], strides = [1, 1, 1]} : vector<10x18x8xf32> to vector<8x16x8xf32>
    %55 = vector.shape_cast %54 : vector<8x16x8xf32> to vector<128x8xf32>
    %c0_41 = arith.constant 0 : index
    %c16 = arith.constant 16 : index
    %56 = vector.load %arg11[%c0_41, %c16] : memref<128x72xf32, #tpu.memory_space<vmem>>, vector<128x8xf32>
    tpu.vector_store %arg11[%c0_41, %c16], %55 {strides = array<i32>} : memref<128x72xf32, #tpu.memory_space<vmem>>, vector<128x8xf32>,
    %57 = vector.extract_strided_slice %47 {offsets = [1, 0, 0], sizes = [8, 16, 8], strides = [1, 1, 1]} : vector<10x18x8xf32> to vector<8x16x8xf32>
    %58 = vector.shape_cast %57 : vector<8x16x8xf32> to vector<128x8xf32>
    %c0_42 = arith.constant 0 : index
    %c24 = arith.constant 24 : index
    %59 = vector.load %arg11[%c0_42, %c24] : memref<128x72xf32, #tpu.memory_space<vmem>>, vector<128x8xf32>
    tpu.vector_store %arg11[%c0_42, %c24], %58 {strides = array<i32>} : memref<128x72xf32, #tpu.memory_space<vmem>>, vector<128x8xf32>,
    %60 = vector.extract_strided_slice %47 {offsets = [1, 1, 0], sizes = [8, 16, 8], strides = [1, 1, 1]} : vector<10x18x8xf32> to vector<8x16x8xf32>
    %61 = vector.shape_cast %60 : vector<8x16x8xf32> to vector<128x8xf32>
    %c0_43 = arith.constant 0 : index
    %c32 = arith.constant 32 : index
    %62 = vector.load %arg11[%c0_43, %c32] : memref<128x72xf32, #tpu.memory_space<vmem>>, vector<128x8xf32>
    tpu.vector_store %arg11[%c0_43, %c32], %61 {strides = array<i32>} : memref<128x72xf32, #tpu.memory_space<vmem>>, vector<128x8xf32>,
    %63 = vector.extract_strided_slice %47 {offsets = [1, 2, 0], sizes = [8, 16, 8], strides = [1, 1, 1]} : vector<10x18x8xf32> to vector<8x16x8xf32>
    %64 = vector.shape_cast %63 : vector<8x16x8xf32> to vector<128x8xf32>
    %c0_44 = arith.constant 0 : index
    %c40 = arith.constant 40 : index
    %65 = vector.load %arg11[%c0_44, %c40] : memref<128x72xf32, #tpu.memory_space<vmem>>, vector<128x8xf32>
    tpu.vector_store %arg11[%c0_44, %c40], %64 {strides = array<i32>} : memref<128x72xf32, #tpu.memory_space<vmem>>, vector<128x8xf32>,
    %66 = vector.extract_strided_slice %47 {offsets = [2, 0, 0], sizes = [8, 16, 8], strides = [1, 1, 1]} : vector<10x18x8xf32> to vector<8x16x8xf32>
    %67 = vector.shape_cast %66 : vector<8x16x8xf32> to vector<128x8xf32>
    %c0_45 = arith.constant 0 : index
    %c48 = arith.constant 48 : index
    %68 = vector.load %arg11[%c0_45, %c48] : memref<128x72xf32, #tpu.memory_space<vmem>>, vector<128x8xf32>
    tpu.vector_store %arg11[%c0_45, %c48], %67 {strides = array<i32>} : memref<128x72xf32, #tpu.memory_space<vmem>>, vector<128x8xf32>,
    %69 = vector.extract_strided_slice %47 {offsets = [2, 1, 0], sizes = [8, 16, 8], strides = [1, 1, 1]} : vector<10x18x8xf32> to vector<8x16x8xf32>
    %70 = vector.shape_cast %69 : vector<8x16x8xf32> to vector<128x8xf32>
    %c0_46 = arith.constant 0 : index
    %c56 = arith.constant 56 : index
    %71 = vector.load %arg11[%c0_46, %c56] : memref<128x72xf32, #tpu.memory_space<vmem>>, vector<128x8xf32>
    tpu.vector_store %arg11[%c0_46, %c56], %70 {strides = array<i32>} : memref<128x72xf32, #tpu.memory_space<vmem>>, vector<128x8xf32>,
    %72 = vector.extract_strided_slice %47 {offsets = [2, 2, 0], sizes = [8, 16, 8], strides = [1, 1, 1]} : vector<10x18x8xf32> to vector<8x16x8xf32>
    %73 = vector.shape_cast %72 : vector<8x16x8xf32> to vector<128x8xf32>
    %c0_47 = arith.constant 0 : index
    %c64 = arith.constant 64 : index
    %74 = vector.load %arg11[%c0_47, %c64] : memref<128x72xf32, #tpu.memory_space<vmem>>, vector<128x8xf32>
    tpu.vector_store %arg11[%c0_47, %c64], %73 {strides = array<i32>} : memref<128x72xf32, #tpu.memory_space<vmem>>, vector<128x8xf32>,
    %c0_48 = arith.constant 0 : index
    %c0_49 = arith.constant 0 : index
    %75 = vector.load %arg11[%c0_48, %c0_49] : memref<128x72xf32, #tpu.memory_space<vmem>>, vector<128x72xf32>
    %c0_50 = arith.constant 0 : index
    %c0_51 = arith.constant 0 : index
    %76 = vector.load %arg7[%c0_50, %c0_51] : memref<72x8xf32, #tpu.memory_space<vmem>>, vector<72x8xf32>
    %cst_52 = arith.constant dense<0.000000e+00> : vector<128x8xf32>
    %77 = tpu.matmul %75, %76, %cst_52 {dimension_numbers = #tpu.dot_dimension_numbers<[1], [0], [0], [1], [0, 0, 1, 1], [], []>} : vector<128x72xf32>, vector<72x8xf32>, vector<128x8xf32> -> vector<128x8xf32>
    %cst_53 = arith.constant dense<0.000000e+00> : vector<8xf32>
    %78 = vector.multi_reduction <add>, %77, %cst_53 [0] : vector<128x8xf32> to vector<8xf32>
    %79 = vector.shape_cast %78 : vector<8xf32> to vector<1x8xf32>
    %c0_54 = arith.constant 0 : index
    %c0_55 = arith.constant 0 : index
    %c0_56 = arith.constant 0 : index
    %c0_57 = arith.constant 0 : index
    %80 = vector.load %arg9[%c0_54, %c0_55, %c0_56, %c0_57] : memref<1x1x2x8xf32, #tpu.memory_space<vmem>>, vector<1x1x1x8xf32>
    %81 = vector.shape_cast %80 : vector<1x1x1x8xf32> to vector<1x8xf32>
    %82 = vector.shape_cast %79 : vector<1x8xf32> to vector<1x1x1x8xf32>
    tpu.vector_store %arg9[%c0_54, %c0_55, %c0_56, %c0_57], %82 {strides = array<i32>} : memref<1x1x2x8xf32, #tpu.memory_space<vmem>>, vector<1x1x1x8xf32>,
    %83 = arith.mulf %77, %77 : vector<128x8xf32>
    %cst_58 = arith.constant dense<0.000000e+00> : vector<8xf32>
    %84 = vector.multi_reduction <add>, %83, %cst_58 [0] : vector<128x8xf32> to vector<8xf32>
    %85 = vector.shape_cast %84 : vector<8xf32> to vector<1x8xf32>
    %c0_59 = arith.constant 0 : index
    %c0_60 = arith.constant 0 : index
    %c1_61 = arith.constant 1 : index
    %c0_62 = arith.constant 0 : index
    %86 = vector.load %arg9[%c0_59, %c0_60, %c1_61, %c0_62] : memref<1x1x2x8xf32, #tpu.memory_space<vmem>>, vector<1x1x1x8xf32>
    %87 = vector.shape_cast %86 : vector<1x1x1x8xf32> to vector<1x8xf32>
    %88 = vector.shape_cast %85 : vector<1x8xf32> to vector<1x1x1x8xf32>
    tpu.vector_store %arg9[%c0_59, %c0_60, %c1_61, %c0_62], %88 {strides = array<i32>} : memref<1x1x2x8xf32, #tpu.memory_space<vmem>>, vector<1x1x1x8xf32>,
    %89 = vector.shape_cast %77 : vector<128x8xf32> to vector<8x16x8xf32>
    %c0_63 = arith.constant 0 : index
    %c0_64 = arith.constant 0 : index
    %c0_65 = arith.constant 0 : index
    %c0_66 = arith.constant 0 : index
    %90 = vector.load %arg8[%c0_63, %c0_64, %c0_65, %c0_66] : memref<1x8x16x8xf32, #tpu.memory_space<vmem>>, vector<1x8x16x8xf32>
    %91 = vector.shape_cast %90 : vector<1x8x16x8xf32> to vector<8x16x8xf32>
    %92 = vector.shape_cast %89 : vector<8x16x8xf32> to vector<1x8x16x8xf32>
    tpu.vector_store %arg8[%c0_63, %c0_64, %c0_65, %c0_66], %92 {strides = array<i32>} : memref<1x8x16x8xf32, #tpu.memory_space<vmem>>, vector<1x8x16x8xf32>,
    return
  }
  func.func @transform_0(%arg0: i32, %arg1: i32) -> (i32, i32, i32, i32) {
    %c0_i32 = arith.constant 0 : i32
    %c0_i32_0 = arith.constant 0 : i32
    %c0_i32_1 = arith.constant 0 : i32
    return %arg0, %arg1, %c0_i32, %c0_i32_0 : i32, i32, i32, i32
  }
  func.func @transform_1(%arg0: i32, %arg1: i32) -> (i32, i32, i32, i32) {
    %c8_i32 = arith.constant 8 : i32
    %0 = arith.muli %arg1, %c8_i32 : i32
    %c1_i32 = arith.constant 1 : i32
    %1 = arith.subi %0, %c1_i32 : i32
    %c0_i32 = arith.constant 0 : i32
    %2 = arith.maxsi %1, %c0_i32 : i32
    %c0_i32_0 = arith.constant 0 : i32
    %c0_i32_1 = arith.constant 0 : i32
    %c0_i32_2 = arith.constant 0 : i32
    return %arg0, %2, %c0_i32_0, %c0_i32_1 : i32, i32, i32, i32
  }
  func.func @transform_2(%arg0: i32, %arg1: i32) -> (i32, i32, i32, i32) {
    %c8_i32 = arith.constant 8 : i32
    %0 = arith.muli %arg1, %c8_i32 : i32
    %c8_i32_0 = arith.constant 8 : i32
    %1 = arith.addi %0, %c8_i32_0 : i32
    %c15_i32 = arith.constant 15 : i32
    %2 = arith.minsi %1, %c15_i32 : i32
    %c0_i32 = arith.constant 0 : i32
    %c0_i32_1 = arith.constant 0 : i32
    %c0_i32_2 = arith.constant 0 : i32
    return %arg0, %2, %c0_i32, %c0_i32_1 : i32, i32, i32, i32
  }
  func.func @transform_3(%arg0: i32, %arg1: i32) -> (i32, i32) {
    %c0_i32 = arith.constant 0 : i32
    %c0_i32_0 = arith.constant 0 : i32
    %c0_i32_1 = arith.constant 0 : i32
    return %c0_i32, %c0_i32_0 : i32, i32
  }
  func.func @transform_4(%arg0: i32, %arg1: i32) -> (i32, i32) {
    %c0_i32 = arith.constant 0 : i32
    %c0_i32_0 = arith.constant 0 : i32
    %c0_i32_1 = arith.constant 0 : i32
    return %c0_i32, %c0_i32_0 : i32, i32
  }
  func.func @transform_5(%arg0: i32, %arg1: i32) -> (i32, i32) {
    %c0_i32 = arith.constant 0 : i32
    %c0_i32_0 = arith.constant 0 : i32
    %c0_i32_1 = arith.constant 0 : i32
    return %c0_i32, %c0_i32_0 : i32, i32
  }
  func.func @transform_6(%arg0: i32, %arg1: i32) -> (i32, i32, i32, i32) {
    %c0_i32 = arith.constant 0 : i32
    %c0_i32_0 = arith.constant 0 : i32
    %c0_i32_1 = arith.constant 0 : i32
    return %arg0, %arg1, %c0_i32, %c0_i32_0 : i32, i32, i32, i32
  }
  func.func @transform_7(%arg0: i32, %arg1: i32) -> (i32, i32, i32, i32) {
    %c0_i32 = arith.constant 0 : i32
    %c0_i32_0 = arith.constant 0 : i32
    %c0_i32_1 = arith.constant 0 : i32
    return %arg0, %arg1, %c0_i32, %c0_i32_0 : i32, i32, i32, i32
  }
}

</mosaic_0001>

<llo_original>
// kernel: double_conv.5
$region0: #{double_conv.5}
  #allocation0 [shape = 'u32[]', space=smem, size = 0x4, offset = 0x4, fixed_abs, tag = 'smem constant byte address 0x4 - core index']
  #allocation1 [shape = 'u32[72,128]{1,0:T(1,128)}', space=vmem, size = 0x9000, scoped, tag = 'internal scratch']
  %s0 = inlined_call_operand.vmem [shape: f32[2,16,16,8], index: 0, kind: input, shape index: {}]
  %s1 = inlined_call_operand.vmem [shape: f32[1,8], index: 1, kind: input, shape index: {}]
  %s2 = inlined_call_operand.vmem [shape: f32[1,8], index: 2, kind: input, shape index: {}]
  %s3 = inlined_call_operand.vmem [shape: f32[2,16,16,8], index: 3, kind: output, shape index: {}]
  %s4 = sld [smem:[#allocation0]]
  $region45: #{double_conv.5} parent=0
    _
  %s6 = ssub.s32 1, %s4
  %s7 = scalar_select 0, %s6, %s4
  loop: start=0, step=1, limit=6
  $region2: #{double_conv.5} parent=0 // loop_pre_header
    _
  $region3: #{double_conv.5} parent=0 // loop_header
    %s9 = sphi 0, %s13
    %p10 = scmp.ge.s32.totalorder %s9, 6
    %s16 = sphi 0, %s28
    %s17 = sphi 0, %s24
    %s18 = sphi 0, %s16
    %s19 = sphi 0, %s17
    %s20 = sphi 0, %s18
    %s21 = sphi 0, %s19
    %s33 = sphi 0, %s35
    %s36 = sphi 0, %s33
    %s37 = sphi 0, %s36
    %s53 = sphi 0, %s37
    %s57 = sphi 0, %s57
    %s59 = sphi 0, %s57
    %s60 = sphi 0, %s59
    %s74 = sphi 0, %s60
    %s78 = sphi 0, %s78
    %s80 = sphi 0, %s78
    %s81 = sphi 0, %s80
    %s95 = sphi 0, %s81
    %s103 = sphi 0, %s105
    %s106 = sphi 0, %s103
    %s107 = sphi 0, %s106
    %s123 = sphi 0, %s107
  $region4: #{double_conv.5} parent=0 // loop_header_branch
    %12 = sbr.rel (%p10) target = $region8
  $region5: #{double_conv.5} parent=0 // loop_body
    %s14 = ssub.s32 %s9, 1
    %s15 = ssub.s32 %s9, 2
    %s22 = sadd.s32 1, %s17
    %p23 = scmp.ge.s32.totalorder %s22, 2
    %s24 = scalar_select %p23, 0, %s22
    %s25 = sadd.s32 1, %s16
    %s26 = scalar_select %p23, %s25, %s16
    %p27 = scmp.ge.s32.totalorder %s26, 2
    %s28 = scalar_select %p27, 0, %s26
    %s29 = ssub.s32 %s16, %s28
    %s30 = ssub.s32 %s17, %s24
    %s31 = sor.u32 %s29, %s30
    %p32 = scmp.eq.s32.totalorder %s31, 0
    %s34 = sadd.s32 %s33, 1
    %s35 = scalar_select %p32, %s33, %s34
    %p38 = pneg %p32
    %p39 = scmp.eq.s32.totalorder %s9, 3
    %p40 = por %p38, %p39
    %p41 = scmp.ne.s32.totalorder %s33, %s36
    %p42 = scmp.eq.s32.totalorder %s9, 0
    %p43 = por %p41, %p42
    %p44 = scmp.ne.s32.totalorder %s33, %s36
    %p45 = scmp.eq.s32.totalorder %s14, 3
    %p46 = por %p44, %p45
    %p47 = scmp.ne.s32.totalorder %s36, %s37
    %p48 = scmp.eq.s32.totalorder %s14, 0
    %p49 = por %p47, %p48
    %p50 = scmp.ne.s32.totalorder %s36, %s37
    %p51 = scmp.eq.s32.totalorder %s15, 3
    %p52 = por %p50, %p51
    %p54 = scmp.ne.s32.totalorder %s37, %s53
    %p55 = scmp.eq.s32.totalorder %s15, 0
    %p56 = por %p54, %p55
    %s58 = sadd.s32 %s57, 1
    %p61 = scmp.eq.s32.totalorder %s9, 3
    %p62 = scmp.ne.s32.totalorder %s57, %s59
    %p63 = scmp.eq.s32.totalorder %s9, 0
    %p64 = por %p62, %p63
    %p65 = scmp.ne.s32.totalorder %s57, %s59
    %p66 = scmp.eq.s32.totalorder %s14, 3
    %p67 = por %p65, %p66
    %p68 = scmp.ne.s32.totalorder %s59, %s60
    %p69 = scmp.eq.s32.totalorder %s14, 0
    %p70 = por %p68, %p69
    %p71 = scmp.ne.s32.totalorder %s59, %s60
    %p72 = scmp.eq.s32.totalorder %s15, 3
    %p73 = por %p71, %p72
    %p75 = scmp.ne.s32.totalorder %s60, %s74
    %p76 = scmp.eq.s32.totalorder %s15, 0
    %p77 = por %p75, %p76
    %s79 = sadd.s32 %s78, 1
    %p82 = scmp.eq.s32.totalorder %s9, 3
    %p83 = scmp.ne.s32.totalorder %s78, %s80
    %p84 = scmp.eq.s32.totalorder %s9, 0
    %p85 = por %p83, %p84
    %p86 = scmp.ne.s32.totalorder %s78, %s80
    %p87 = scmp.eq.s32.totalorder %s14, 3
    %p88 = por %p86, %p87
    %p89 = scmp.ne.s32.totalorder %s80, %s81
    %p90 = scmp.eq.s32.totalorder %s14, 0
    %p91 = por %p89, %p90
    %p92 = scmp.ne.s32.totalorder %s80, %s81
    %p93 = scmp.eq.s32.totalorder %s15, 3
    %p94 = por %p92, %p93
    %p96 = scmp.ne.s32.totalorder %s81, %s95
    %p97 = scmp.eq.s32.totalorder %s15, 0
    %p98 = por %p96, %p97
    %s99 = ssub.s32 %s16, %s28
    %s100 = ssub.s32 %s17, %s24
    %s101 = sor.u32 %s99, %s100
    %p102 = scmp.eq.s32.totalorder %s101, 0
    %s104 = sadd.s32 %s103, 1
    %s105 = scalar_select %p102, %s103, %s104
    %p108 = pneg %p102
    %p109 = scmp.eq.s32.totalorder %s9, 3
    %p110 = por %p108, %p109
    %p111 = scmp.ne.s32.totalorder %s103, %s106
    %p112 = scmp.eq.s32.totalorder %s9, 0
    %p113 = por %p111, %p112
    %p114 = scmp.ne.s32.totalorder %s103, %s106
    %p115 = scmp.eq.s32.totalorder %s14, 3
    %p116 = por %p114, %p115
    %p117 = scmp.ne.s32.totalorder %s106, %s107
    %p118 = scmp.eq.s32.totalorder %s14, 0
    %p119 = por %p117, %p118
    %p120 = scmp.ne.s32.totalorder %s106, %s107
    %p121 = scmp.eq.s32.totalorder %s15, 3
    %p122 = por %p120, %p121
    %p124 = scmp.ne.s32.totalorder %s107, %s123
    %p125 = scmp.eq.s32.totalorder %s15, 0
    %p126 = por %p124, %p125
    %p127 = scmp.le.s32.totalorder 1, %s9
    %p128 = scmp.lt.s32.totalorder %s9, 5
    %p129 = pnand %p127, %p128
    %p130 = pneg %p129
    // Predicated region
    $region9: #{double_conv.5} parent=5 // pred_check
      _
    $region10: #{double_conv.5} parent=5 // pred_check_branch
      %132 = sbr.rel (%p129) target = $region12
    $region11: #{double_conv.5} parent=5 // pred_region
      %s133 = ssub.s32 %s9, 1
      // Predicated region
      $region13: #{double_conv.5} parent=11 // pred_check
        %p134 = pneg %p70
      $region14: #{double_conv.5} parent=11 // pred_check_branch
        %136 = sbr.rel (%p134) target = $region16
      $region15: #{double_conv.5} parent=11 // pred_region
        _
      $region16: #{double_conv.5} parent=11 // pred_fallthru
        _
      // Predicated region
      $region17: #{double_conv.5} parent=11 // pred_check
        %p137 = pneg %p91
      $region18: #{double_conv.5} parent=11 // pred_check_branch
        %139 = sbr.rel (%p137) target = $region20
      $region19: #{double_conv.5} parent=11 // pred_region
        _
      $region20: #{double_conv.5} parent=11 // pred_fallthru
        _
    $region12: #{double_conv.5} parent=5 // pred_fallthru
      _
    %p140 = scmp.lt.s32.totalorder %s9, 4
    // Predicated region
    $region21: #{double_conv.5} parent=5 // pred_check
      %p141 = pneg %p140
    $region22: #{double_conv.5} parent=5 // pred_check_branch
      %143 = sbr.rel (%p141) target = $region24
    $region23: #{double_conv.5} parent=5 // pred_region
      // Predicated region
      $region25: #{double_conv.5} parent=23 // pred_check
        %p144 = pneg %p43
      $region26: #{double_conv.5} parent=23 // pred_check_branch
        %146 = sbr.rel (%p144) target = $region28
      $region27: #{double_conv.5} parent=23 // pred_region
        %s147 = smul.u32 8, %s17
        %p148 = scmp.lt.s32.totalorder %s16, 1
        %s149 = scalar_select %p148, %s16, 1
        %p150 = scmp.lt.s32.totalorder %s147, 15
        %s151 = scalar_select %p150, %s147, 15
        %s152 = smul.addr %s151, 2
        %s153 = smul.addr %s149, 32
        %s154 = sadd.s32 %s152, %s153
        %s155 = smul.addr %s154, 8
        %s156 = scalar_lea.vmem %s0, %s155
        %s157 = smul.u32 8, %s17
      $region28: #{double_conv.5} parent=23 // pred_fallthru
        _
    $region24: #{double_conv.5} parent=5 // pred_fallthru
      _
    %p158 = scmp.le.s32.totalorder 1, %s9
    %p159 = scmp.lt.s32.totalorder %s9, 5
    %p160 = pnand %p158, %p159
    %p161 = pneg %p160
    // Predicated region
    $region29: #{double_conv.5} parent=5 // pred_check
      _
    $region30: #{double_conv.5} parent=5 // pred_check_branch
      %163 = sbr.rel (%p160) target = $region32
    $region31: #{double_conv.5} parent=5 // pred_region
      %s164 = ssub.s32 %s9, 1
      %s165 = smul.u32 8, %s19
      %p166 = scmp.lt.s32.totalorder %s18, 1
      %s167 = scalar_select %p166, %s18, 1
      %p168 = scmp.lt.s32.totalorder %s165, 15
      %s169 = scalar_select %p168, %s165, 15
      %s170 = smul.addr %s169, 2
      %s171 = smul.addr %s167, 32
      %s172 = sadd.s32 %s170, %s171
      %s173 = smul.addr %s172, 8
      %s174 = scalar_lea.vmem %s0, %s173
      %p175 = pneg %p49
      %p176 = pneg %p46
      %p177 = pneg %p70
      %p178 = pneg %p67
      %p179 = pneg %p91
      %p180 = pneg %p88
      %p181 = pneg %p119
      %p182 = pneg %p116
      %s183 = smul.u32 8, %s19
      %p184 = scmp.lt.s32.totalorder %s18, 1
      %s185 = scalar_select %p184, %s18, 1
      %p186 = scmp.lt.s32.totalorder %s183, 15
      %s187 = scalar_select %p186, %s183, 15
      %s188 = smul.addr %s187, 2
      %s189 = smul.addr %s185, 32
      %s190 = sadd.s32 %s188, %s189
      %s191 = smul.addr %s190, 8
      %s192 = scalar_lea.vmem %s3, %s191
      %s193 = smul.u32 8, %s19
      %p194 = scmp.lt.s32.totalorder %s18, 1
      %s195 = scalar_select %p194, %s18, 1
      %p196 = scmp.lt.s32.totalorder %s193, 15
      %s197 = scalar_select %p196, %s193, 15
      %s198 = smul.addr %s197, 2
      %s199 = smul.addr %s195, 32
      %s200 = sadd.s32 %s198, %s199
      %s201 = smul.addr %s200, 8
      %s202 = scalar_lea.vmem %s0, %s201
      %s203 = smul.u32 8, %s19
      %s204 = smul.u32 8, %s19
      %p205 = scmp.lt.s32.totalorder %s18, 1
      %s206 = scalar_select %p205, %s18, 1
      %p207 = scmp.lt.s32.totalorder %s204, 15
      %s208 = scalar_select %p207, %s204, 15
      %s209 = smul.addr %s208, 2
      %s210 = smul.addr %s206, 32
      %s211 = sadd.s32 %s209, %s210
      %s212 = smul.addr %s211, 8
      %s213 = scalar_lea.vmem %s3, %s212
      %s214 = smul.u32 8, %s19
      %v215 = vld [vmem:[%s202] sm:$0xff]
      %v216 = vld [vmem:[%s202 + $0x8] sm:$0xff]
      %v217 = vld [vmem:[%s202 + $0x10] sm:$0xff]
      %v218 = vld [vmem:[%s202 + $0x18] sm:$0xff]
      %v219 = vld [vmem:[%s202 + $0x20] sm:$0xff]
      %v220 = vld [vmem:[%s202 + $0x28] sm:$0xff]
      %v221 = vld [vmem:[%s202 + $0x30] sm:$0xff]
      %v222 = vld [vmem:[%s202 + $0x38] sm:$0xff]
      %v223 = vld [vmem:[%s202 + $0x40] sm:$0xff]
      %v224 = vld [vmem:[%s202 + $0x48] sm:$0xff]
      %v225 = vld [vmem:[%s202 + $0x50] sm:$0xff]
      %v226 = vld [vmem:[%s202 + $0x58] sm:$0xff]
      %v227 = vld [vmem:[%s202 + $0x60] sm:$0xff]
      %v228 = vld [vmem:[%s202 + $0x68] sm:$0xff]
      %v229 = vld [vmem:[%s202 + $0x70] sm:$0xff]
      %v230 = vld [vmem:[%s202 + $0x78] sm:$0xff]
      %v231 = vld [vmem:[%s1] sm:$0x1]
      %v233 = vperm.slane %v231, 0
      %v235 = vmul.f32 %v215, %v233
      %v236 = vmul.f32 %v216, %v233
      %v237 = vmul.f32 %v217, %v233
      %v238 = vmul.f32 %v218, %v233
      %v239 = vmul.f32 %v219, %v233
      %v240 = vmul.f32 %v220, %v233
      %v241 = vmul.f32 %v221, %v233
      %v242 = vmul.f32 %v222, %v233
      %v243 = vmul.f32 %v223, %v233
      %v244 = vmul.f32 %v224, %v233
      %v245 = vmul.f32 %v225, %v233
      %v246 = vmul.f32 %v226, %v233
      %v247 = vmul.f32 %v227, %v233
      %v248 = vmul.f32 %v228, %v233
      %v249 = vmul.f32 %v229, %v233
      %v250 = vmul.f32 %v230, %v233
      %v251 = vld [vmem:[%s2] sm:$0x1]
      %v253 = vperm.slane %v251, 0
      %v255 = vadd.f32 %v235, %v253
      %v256 = vadd.f32 %v236, %v253
      %v257 = vadd.f32 %v237, %v253
      %v258 = vadd.f32 %v238, %v253
      %v259 = vadd.f32 %v239, %v253
      %v260 = vadd.f32 %v240, %v253
      %v261 = vadd.f32 %v241, %v253
      %v262 = vadd.f32 %v242, %v253
      %v263 = vadd.f32 %v243, %v253
      %v264 = vadd.f32 %v244, %v253
      %v265 = vadd.f32 %v245, %v253
      %v266 = vadd.f32 %v246, %v253
      %v267 = vadd.f32 %v247, %v253
      %v268 = vadd.f32 %v248, %v253
      %v269 = vadd.f32 %v249, %v253
      %v270 = vadd.f32 %v250, %v253
      %v271 = vmax.f32 %v255, 0.0
      %v272 = vmax.f32 %v256, 0.0
      %v273 = vmax.f32 %v257, 0.0
      %v274 = vmax.f32 %v258, 0.0
      %v275 = vmax.f32 %v259, 0.0
      %v276 = vmax.f32 %v260, 0.0
      %v277 = vmax.f32 %v261, 0.0
      %v278 = vmax.f32 %v262, 0.0
      %v279 = vmax.f32 %v263, 0.0
      %v280 = vmax.f32 %v264, 0.0
      %v281 = vmax.f32 %v265, 0.0
      %v282 = vmax.f32 %v266, 0.0
      %v283 = vmax.f32 %v267, 0.0
      %v284 = vmax.f32 %v268, 0.0
      %v285 = vmax.f32 %v269, 0.0
      %v286 = vmax.f32 %v270, 0.0
      %vm287 = vcmask 64512
      %288 = vst.msk [vmem:[%s213] sm:$0xff] %vm287, %v271
      %289 = vst.msk [vmem:[%s213 + $0x8] sm:$0xff] %vm287, %v272
      %290 = vst.msk [vmem:[%s213 + $0x10] sm:$0xff] %vm287, %v273
      %291 = vst.msk [vmem:[%s213 + $0x18] sm:$0xff] %vm287, %v274
      %292 = vst.msk [vmem:[%s213 + $0x20] sm:$0xff] %vm287, %v275
      %293 = vst.msk [vmem:[%s213 + $0x28] sm:$0xff] %vm287, %v276
      %294 = vst.msk [vmem:[%s213 + $0x30] sm:$0xff] %vm287, %v277
      %295 = vst.msk [vmem:[%s213 + $0x38] sm:$0xff] %vm287, %v278
      %296 = vst.msk [vmem:[%s213 + $0x40] sm:$0xff] %vm287, %v279
      %297 = vst.msk [vmem:[%s213 + $0x48] sm:$0xff] %vm287, %v280
      %298 = vst.msk [vmem:[%s213 + $0x50] sm:$0xff] %vm287, %v281
      %299 = vst.msk [vmem:[%s213 + $0x58] sm:$0xff] %vm287, %v282
      %300 = vst.msk [vmem:[%s213 + $0x60] sm:$0xff] %vm287, %v283
      %301 = vst.msk [vmem:[%s213 + $0x68] sm:$0xff] %vm287, %v284
      %302 = vst.msk [vmem:[%s213 + $0x70] sm:$0xff] %vm287, %v285
      %303 = vst.msk [vmem:[%s213 + $0x78] sm:$0xff] %vm287, %v286
      %s304 = smul.u32 8, %s19
      %p305 = scmp.lt.s32.totalorder %s18, 1
      %s306 = scalar_select %p305, %s18, 1
      %p307 = scmp.lt.s32.totalorder %s304, 15
      %s308 = scalar_select %p307, %s304, 15
      %s309 = smul.addr %s308, 2
      %s310 = smul.addr %s306, 32
      %s311 = sadd.s32 %s309, %s310
      %s312 = smul.addr %s311, 8
      %s313 = scalar_lea.vmem %s3, %s312
      // Predicated region
      $region33: #{double_conv.5} parent=31 // pred_check
        %p314 = pneg %p116
      $region34: #{double_conv.5} parent=31 // pred_check_branch
        %316 = sbr.rel (%p314) target = $region36
      $region35: #{double_conv.5} parent=31 // pred_region
        %s317 = smul.u32 8, %s19
      $region36: #{double_conv.5} parent=31 // pred_fallthru
        _
    $region32: #{double_conv.5} parent=5 // pred_fallthru
      _
    %p318 = scmp.le.s32.totalorder 2, %s9
    // Predicated region
    $region37: #{double_conv.5} parent=5 // pred_check
      %p319 = pneg %p318
    $region38: #{double_conv.5} parent=5 // pred_check_branch
      %321 = sbr.rel (%p319) target = $region40
    $region39: #{double_conv.5} parent=5 // pred_region
      %s322 = ssub.s32 %s9, 2
      // Predicated region
      $region41: #{double_conv.5} parent=39 // pred_check
        %p323 = pneg %p122
      $region42: #{double_conv.5} parent=39 // pred_check_branch
        %325 = sbr.rel (%p323) target = $region44
      $region43: #{double_conv.5} parent=39 // pred_region
        %s326 = smul.u32 8, %s21
        %p327 = scmp.lt.s32.totalorder %s20, 1
        %s328 = scalar_select %p327, %s20, 1
        %p329 = scmp.lt.s32.totalorder %s326, 15
        %s330 = scalar_select %p329, %s326, 15
        %s331 = smul.addr %s330, 2
        %s332 = smul.addr %s328, 32
        %s333 = sadd.s32 %s331, %s332
        %s334 = smul.addr %s333, 8
        %s335 = scalar_lea.vmem %s3, %s334
      $region44: #{double_conv.5} parent=39 // pred_fallthru
        _
    $region40: #{double_conv.5} parent=5 // pred_fallthru
      _
  $region6: #{double_conv.5} parent=0 // loop_footer
    %s13 = sadd.s32 1, %s9
  $region7: #{double_conv.5} parent=0 // loop_footer_branch
    %8 = sbr.rel target = $region3
  $region8: #{double_conv.5} parent=0 // loop_exit
    _

// kernel: double_conv.4
$region0: #{double_conv.4}
  #allocation0 [shape = 'u32[]', space=smem, size = 0x4, offset = 0x4, fixed_abs, tag = 'smem constant byte address 0x4 - core index']
  #allocation1 [shape = 'u32[72,128]{1,0:T(1,128)}', space=vmem, size = 0x9000, scoped, tag = 'internal scratch']
  #allocation2 [shape = 'f32[10,18,8]{2,1,0:T(8,128)}', space=vmem, size = 0x1e000, scoped, tag = 'scratch operand']
  #allocation3 [shape = 'f32[128,72]{1,0:T(8,128)}', space=vmem, size = 0x10000, scoped, tag = 'scratch operand']
  %s0 = inlined_call_operand.vmem [shape: f32[2,16,16,8], index: 0, kind: input, shape index: {}, may-alias: {0,1,2}]
  %s1 = inlined_call_operand.vmem [shape: f32[2,16,16,8], index: 1, kind: input, shape index: {}, may-alias: {0,1,2}]
  %s2 = inlined_call_operand.vmem [shape: f32[2,16,16,8], index: 2, kind: input, shape index: {}, may-alias: {0,1,2}]
  %s3 = inlined_call_operand.vmem [shape: f32[1,8], index: 3, kind: input, shape index: {}]
  %s4 = inlined_call_operand.vmem [shape: f32[1,8], index: 4, kind: input, shape index: {}]
  %s5 = inlined_call_operand.vmem [shape: f32[72,8], index: 5, kind: input, shape index: {}]
  %s6 = inlined_call_operand.vmem [shape: f32[2,16,16,8], index: 6, kind: output, shape index: {0}]
  %s7 = inlined_call_operand.vmem [shape: f32[2,2,2,8], index: 7, kind: output, shape index: {1}]
  %8 = xla_tuple %s6, %s7
  %s9 = sld [smem:[#allocation0]]
  $region65: #{double_conv.4} parent=0
    _
  %s11 = ssub.s32 1, %s9
  %s12 = scalar_select 0, %s11, %s9
  loop: start=0, step=1, limit=6
  $region2: #{double_conv.4} parent=0 // loop_pre_header
    _
  $region3: #{double_conv.4} parent=0 // loop_header
    %s14 = sphi 0, %s18
    %p15 = scmp.ge.s32.totalorder %s14, 6
    %s21 = sphi 0, %s33
    %s22 = sphi 0, %s29
    %s23 = sphi 0, %s21
    %s24 = sphi 0, %s22
    %s25 = sphi 0, %s23
    %s26 = sphi 0, %s24
    %s38 = sphi 0, %s40
    %s41 = sphi 0, %s38
    %s42 = sphi 0, %s41
    %s58 = sphi 0, %s42
    %s74 = sphi 0, %s76
    %s77 = sphi 0, %s74
    %s78 = sphi 0, %s77
    %s94 = sphi 0, %s78
    %s110 = sphi 0, %s112
    %s113 = sphi 0, %s110
    %s114 = sphi 0, %s113
    %s130 = sphi 0, %s114
    %s134 = sphi 0, %s134
    %s136 = sphi 0, %s134
    %s137 = sphi 0, %s136
    %s151 = sphi 0, %s137
    %s155 = sphi 0, %s155
    %s157 = sphi 0, %s155
    %s158 = sphi 0, %s157
    %s172 = sphi 0, %s158
    %s176 = sphi 0, %s176
    %s178 = sphi 0, %s176
    %s179 = sphi 0, %s178
    %s193 = sphi 0, %s179
    %s201 = sphi 0, %s203
    %s204 = sphi 0, %s201
    %s205 = sphi 0, %s204
    %s221 = sphi 0, %s205
    %s229 = sphi 0, %s231
    %s232 = sphi 0, %s229
    %s233 = sphi 0, %s232
    %s249 = sphi 0, %s233
  $region4: #{double_conv.4} parent=0 // loop_header_branch
    %17 = sbr.rel (%p15) target = $region8
  $region5: #{double_conv.4} parent=0 // loop_body
    %s19 = ssub.s32 %s14, 1
    %s20 = ssub.s32 %s14, 2
    %s27 = sadd.s32 1, %s22
    %p28 = scmp.ge.s32.totalorder %s27, 2
    %s29 = scalar_select %p28, 0, %s27
    %s30 = sadd.s32 1, %s21
    %s31 = scalar_select %p28, %s30, %s21
    %p32 = scmp.ge.s32.totalorder %s31, 2
    %s33 = scalar_select %p32, 0, %s31
    %s34 = ssub.s32 %s21, %s33
    %s35 = ssub.s32 %s22, %s29
    %s36 = sor.u32 %s34, %s35
    %p37 = scmp.eq.s32.totalorder %s36, 0
    %s39 = sadd.s32 %s38, 1
    %s40 = scalar_select %p37, %s38, %s39
    %p43 = pneg %p37
    %p44 = scmp.eq.s32.totalorder %s14, 3
    %p45 = por %p43, %p44
    %p46 = scmp.ne.s32.totalorder %s38, %s41
    %p47 = scmp.eq.s32.totalorder %s14, 0
    %p48 = por %p46, %p47
    %p49 = scmp.ne.s32.totalorder %s38, %s41
    %p50 = scmp.eq.s32.totalorder %s19, 3
    %p51 = por %p49, %p50
    %p52 = scmp.ne.s32.totalorder %s41, %s42
    %p53 = scmp.eq.s32.totalorder %s19, 0
    %p54 = por %p52, %p53
    %p55 = scmp.ne.s32.totalorder %s41, %s42
    %p56 = scmp.eq.s32.totalorder %s20, 3
    %p57 = por %p55, %p56
    %p59 = scmp.ne.s32.totalorder %s42, %s58
    %p60 = scmp.eq.s32.totalorder %s20, 0
    %p61 = por %p59, %p60
    %s62 = smul.u32 %s22, 8
    %s63 = ssub.s32 %s62, 1
    %p64 = scmp.gt.s32.totalorder %s63, 0
    %s65 = scalar_select %p64, %s63, 0
    %s66 = smul.u32 %s29, 8
    %s67 = ssub.s32 %s66, 1
    %p68 = scmp.gt.s32.totalorder %s67, 0
    %s69 = scalar_select %p68, %s67, 0
    %s70 = ssub.s32 %s21, %s33
    %s71 = ssub.s32 %s65, %s69
    %s72 = sor.u32 %s70, %s71
    %p73 = scmp.eq.s32.totalorder %s72, 0
    %s75 = sadd.s32 %s74, 1
    %s76 = scalar_select %p73, %s74, %s75
    %p79 = pneg %p73
    %p80 = scmp.eq.s32.totalorder %s14, 3
    %p81 = por %p79, %p80
    %p82 = scmp.ne.s32.totalorder %s74, %s77
    %p83 = scmp.eq.s32.totalorder %s14, 0
    %p84 = por %p82, %p83
    %p85 = scmp.ne.s32.totalorder %s74, %s77
    %p86 = scmp.eq.s32.totalorder %s19, 3
    %p87 = por %p85, %p86
    %p88 = scmp.ne.s32.totalorder %s77, %s78
    %p89 = scmp.eq.s32.totalorder %s19, 0
    %p90 = por %p88, %p89
    %p91 = scmp.ne.s32.totalorder %s77, %s78
    %p92 = scmp.eq.s32.totalorder %s20, 3
    %p93 = por %p91, %p92
    %p95 = scmp.ne.s32.totalorder %s78, %s94
    %p96 = scmp.eq.s32.totalorder %s20, 0
    %p97 = por %p95, %p96
    %s98 = smul.u32 %s22, 8
    %s99 = sadd.s32 %s98, 8
    %p100 = scmp.lt.s32.totalorder %s99, 15
    %s101 = scalar_select %p100, %s99, 15
    %s102 = smul.u32 %s29, 8
    %s103 = sadd.s32 %s102, 8
    %p104 = scmp.lt.s32.totalorder %s103, 15
    %s105 = scalar_select %p104, %s103, 15
    %s106 = ssub.s32 %s21, %s33
    %s107 = ssub.s32 %s101, %s105
    %s108 = sor.u32 %s106, %s107
    %p109 = scmp.eq.s32.totalorder %s108, 0
    %s111 = sadd.s32 %s110, 1
    %s112 = scalar_select %p109, %s110, %s111
    %p115 = pneg %p109
    %p116 = scmp.eq.s32.totalorder %s14, 3
    %p117 = por %p115, %p116
    %p118 = scmp.ne.s32.totalorder %s110, %s113
    %p119 = scmp.eq.s32.totalorder %s14, 0
    %p120 = por %p118, %p119
    %p121 = scmp.ne.s32.totalorder %s110, %s113
    %p122 = scmp.eq.s32.totalorder %s19, 3
    %p123 = por %p121, %p122
    %p124 = scmp.ne.s32.totalorder %s113, %s114
    %p125 = scmp.eq.s32.totalorder %s19, 0
    %p126 = por %p124, %p125
    %p127 = scmp.ne.s32.totalorder %s113, %s114
    %p128 = scmp.eq.s32.totalorder %s20, 3
    %p129 = por %p127, %p128
    %p131 = scmp.ne.s32.totalorder %s114, %s130
    %p132 = scmp.eq.s32.totalorder %s20, 0
    %p133 = por %p131, %p132
    %s135 = sadd.s32 %s134, 1
    %p138 = scmp.eq.s32.totalorder %s14, 3
    %p139 = scmp.ne.s32.totalorder %s134, %s136
    %p140 = scmp.eq.s32.totalorder %s14, 0
    %p141 = por %p139, %p140
    %p142 = scmp.ne.s32.totalorder %s134, %s136
    %p143 = scmp.eq.s32.totalorder %s19, 3
    %p144 = por %p142, %p143
    %p145 = scmp.ne.s32.totalorder %s136, %s137
    %p146 = scmp.eq.s32.totalorder %s19, 0
    %p147 = por %p145, %p146
    %p148 = scmp.ne.s32.totalorder %s136, %s137
    %p149 = scmp.eq.s32.totalorder %s20, 3
    %p150 = por %p148, %p149
    %p152 = scmp.ne.s32.totalorder %s137, %s151
    %p153 = scmp.eq.s32.totalorder %s20, 0
    %p154 = por %p152, %p153
    %s156 = sadd.s32 %s155, 1
    %p159 = scmp.eq.s32.totalorder %s14, 3
    %p160 = scmp.ne.s32.totalorder %s155, %s157
    %p161 = scmp.eq.s32.totalorder %s14, 0
    %p162 = por %p160, %p161
    %p163 = scmp.ne.s32.totalorder %s155, %s157
    %p164 = scmp.eq.s32.totalorder %s19, 3
    %p165 = por %p163, %p164
    %p166 = scmp.ne.s32.totalorder %s157, %s158
    %p167 = scmp.eq.s32.totalorder %s19, 0
    %p168 = por %p166, %p167
    %p169 = scmp.ne.s32.totalorder %s157, %s158
    %p170 = scmp.eq.s32.totalorder %s20, 3
    %p171 = por %p169, %p170
    %p173 = scmp.ne.s32.totalorder %s158, %s172
    %p174 = scmp.eq.s32.totalorder %s20, 0
    %p175 = por %p173, %p174
    %s177 = sadd.s32 %s176, 1
    %p180 = scmp.eq.s32.totalorder %s14, 3
    %p181 = scmp.ne.s32.totalorder %s176, %s178
    %p182 = scmp.eq.s32.totalorder %s14, 0
    %p183 = por %p181, %p182
    %p184 = scmp.ne.s32.totalorder %s176, %s178
    %p185 = scmp.eq.s32.totalorder %s19, 3
    %p186 = por %p184, %p185
    %p187 = scmp.ne.s32.totalorder %s178, %s179
    %p188 = scmp.eq.s32.totalorder %s19, 0
    %p189 = por %p187, %p188
    %p190 = scmp.ne.s32.totalorder %s178, %s179
    %p191 = scmp.eq.s32.totalorder %s20, 3
    %p192 = por %p190, %p191
    %p194 = scmp.ne.s32.totalorder %s179, %s193
    %p195 = scmp.eq.s32.totalorder %s20, 0
    %p196 = por %p194, %p195
    %s197 = ssub.s32 %s21, %s33
    %s198 = ssub.s32 %s22, %s29
    %s199 = sor.u32 %s197, %s198
    %p200 = scmp.eq.s32.totalorder %s199, 0
    %s202 = sadd.s32 %s201, 1
    %s203 = scalar_select %p200, %s201, %s202
    %p206 = pneg %p200
    %p207 = scmp.eq.s32.totalorder %s14, 3
    %p208 = por %p206, %p207
    %p209 = scmp.ne.s32.totalorder %s201, %s204
    %p210 = scmp.eq.s32.totalorder %s14, 0
    %p211 = por %p209, %p210
    %p212 = scmp.ne.s32.totalorder %s201, %s204
    %p213 = scmp.eq.s32.totalorder %s19, 3
    %p214 = por %p212, %p213
    %p215 = scmp.ne.s32.totalorder %s204, %s205
    %p216 = scmp.eq.s32.totalorder %s19, 0
    %p217 = por %p215, %p216
    %p218 = scmp.ne.s32.totalorder %s204, %s205
    %p219 = scmp.eq.s32.totalorder %s20, 3
    %p220 = por %p218, %p219
    %p222 = scmp.ne.s32.totalorder %s205, %s221
    %p223 = scmp.eq.s32.totalorder %s20, 0
    %p224 = por %p222, %p223
    %s225 = ssub.s32 %s21, %s33
    %s226 = ssub.s32 %s22, %s29
    %s227 = sor.u32 %s225, %s226
    %p228 = scmp.eq.s32.totalorder %s227, 0
    %s230 = sadd.s32 %s229, 1
    %s231 = scalar_select %p228, %s229, %s230
    %p234 = pneg %p228
    %p235 = scmp.eq.s32.totalorder %s14, 3
    %p236 = por %p234, %p235
    %p237 = scmp.ne.s32.totalorder %s229, %s232
    %p238 = scmp.eq.s32.totalorder %s14, 0
    %p239 = por %p237, %p238
    %p240 = scmp.ne.s32.totalorder %s229, %s232
    %p241 = scmp.eq.s32.totalorder %s19, 3
    %p242 = por %p240, %p241
    %p243 = scmp.ne.s32.totalorder %s232, %s233
    %p244 = scmp.eq.s32.totalorder %s19, 0
    %p245 = por %p243, %p244
    %p246 = scmp.ne.s32.totalorder %s232, %s233
    %p247 = scmp.eq.s32.totalorder %s20, 3
    %p248 = por %p246, %p247
    %p250 = scmp.ne.s32.totalorder %s233, %s249
    %p251 = scmp.eq.s32.totalorder %s20, 0
    %p252 = por %p250, %p251
    %p253 = scmp.le.s32.totalorder 1, %s14
    %p254 = scmp.lt.s32.totalorder %s14, 5
    %p255 = pnand %p253, %p254
    %p256 = pneg %p255
    // Predicated region
    $region9: #{double_conv.4} parent=5 // pred_check
      _
    $region10: #{double_conv.4} parent=5 // pred_check_branch
      %258 = sbr.rel (%p255) target = $region12
    $region11: #{double_conv.4} parent=5 // pred_region
      %s259 = ssub.s32 %s14, 1
      // Predicated region
      $region13: #{double_conv.4} parent=11 // pred_check
        %p260 = pneg %p147
      $region14: #{double_conv.4} parent=11 // pred_check_branch
        %262 = sbr.rel (%p260) target = $region16
      $region15: #{double_conv.4} parent=11 // pred_region
        _
      $region16: #{double_conv.4} parent=11 // pred_fallthru
        _
      // Predicated region
      $region17: #{double_conv.4} parent=11 // pred_check
        %p263 = pneg %p168
      $region18: #{double_conv.4} parent=11 // pred_check_branch
        %265 = sbr.rel (%p263) target = $region20
      $region19: #{double_conv.4} parent=11 // pred_region
        _
      $region20: #{double_conv.4} parent=11 // pred_fallthru
        _
      // Predicated region
      $region21: #{double_conv.4} parent=11 // pred_check
        %p266 = pneg %p189
      $region22: #{double_conv.4} parent=11 // pred_check_branch
        %268 = sbr.rel (%p266) target = $region24
      $region23: #{double_conv.4} parent=11 // pred_region
        _
      $region24: #{double_conv.4} parent=11 // pred_fallthru
        _
    $region12: #{double_conv.4} parent=5 // pred_fallthru
      _
    %p269 = scmp.lt.s32.totalorder %s14, 4
    // Predicated region
    $region25: #{double_conv.4} parent=5 // pred_check
      %p270 = pneg %p269
    $region26: #{double_conv.4} parent=5 // pred_check_branch
      %272 = sbr.rel (%p270) target = $region28
    $region27: #{double_conv.4} parent=5 // pred_region
      // Predicated region
      $region29: #{double_conv.4} parent=27 // pred_check
        %p273 = pneg %p48
      $region30: #{double_conv.4} parent=27 // pred_check_branch
        %275 = sbr.rel (%p273) target = $region32
      $region31: #{double_conv.4} parent=27 // pred_region
        %s276 = smul.u32 8, %s22
        %p277 = scmp.lt.s32.totalorder %s21, 1
        %s278 = scalar_select %p277, %s21, 1
        %p279 = scmp.lt.s32.totalorder %s276, 15
        %s280 = scalar_select %p279, %s276, 15
        %s281 = smul.addr %s280, 2
        %s282 = smul.addr %s278, 32
        %s283 = sadd.s32 %s281, %s282
        %s284 = smul.addr %s283, 8
        %s285 = scalar_lea.vmem %s0, %s284
        %s286 = smul.u32 8, %s22
      $region32: #{double_conv.4} parent=27 // pred_fallthru
        _
      // Predicated region
      $region33: #{double_conv.4} parent=27 // pred_check
        %p287 = pneg %p84
      $region34: #{double_conv.4} parent=27 // pred_check_branch
        %289 = sbr.rel (%p287) target = $region36
      $region35: #{double_conv.4} parent=27 // pred_region
        %s290 = smul.u32 %s22, 8
        %s291 = ssub.s32 %s290, 1
        %p292 = scmp.gt.s32.totalorder %s291, 0
        %s293 = scalar_select %p292, %s291, 0
        %p294 = scmp.lt.s32.totalorder %s21, 1
        %s295 = scalar_select %p294, %s21, 1
        %p296 = scmp.lt.s32.totalorder %s293, 15
        %s297 = scalar_select %p296, %s293, 15
        %s298 = smul.addr %s297, 2
        %s299 = smul.addr %s295, 32
        %s300 = sadd.s32 %s298, %s299
        %s301 = smul.addr %s300, 8
        %s302 = scalar_lea.vmem %s1, %s301
        %s303 = smul.u32 %s22, 8
        %s304 = ssub.s32 %s303, 1
        %p305 = scmp.gt.s32.totalorder %s304, 0
        %s306 = scalar_select %p305, %s304, 0
      $region36: #{double_conv.4} parent=27 // pred_fallthru
        _
      // Predicated region
      $region37: #{double_conv.4} parent=27 // pred_check
        %p307 = pneg %p120
      $region38: #{double_conv.4} parent=27 // pred_check_branch
        %309 = sbr.rel (%p307) target = $region40
      $region39: #{double_conv.4} parent=27 // pred_region
        %s310 = smul.u32 %s22, 8
        %s311 = sadd.s32 %s310, 8
        %p312 = scmp.lt.s32.totalorder %s311, 15
        %s313 = scalar_select %p312, %s311, 15
        %p314 = scmp.lt.s32.totalorder %s21, 1
        %s315 = scalar_select %p314, %s21, 1
        %p316 = scmp.lt.s32.totalorder %s313, 15
        %s317 = scalar_select %p316, %s313, 15
        %s318 = smul.addr %s317, 2
        %s319 = smul.addr %s315, 32
        %s320 = sadd.s32 %s318, %s319
        %s321 = smul.addr %s320, 8
        %s322 = scalar_lea.vmem %s2, %s321
        %s323 = smul.u32 %s22, 8
        %s324 = sadd.s32 %s323, 8
        %p325 = scmp.lt.s32.totalorder %s324, 15
        %s326 = scalar_select %p325, %s324, 15
      $region40: #{double_conv.4} parent=27 // pred_fallthru
        _
    $region28: #{double_conv.4} parent=5 // pred_fallthru
      _
    %p327 = scmp.le.s32.totalorder 1, %s14
    %p328 = scmp.lt.s32.totalorder %s14, 5
    %p329 = pnand %p327, %p328
    %p330 = pneg %p329
    // Predicated region
    $region41: #{double_conv.4} parent=5 // pred_check
      _
    $region42: #{double_conv.4} parent=5 // pred_check_branch
      %332 = sbr.rel (%p329) target = $region44
    $region43: #{double_conv.4} parent=5 // pred_region
      %s333 = ssub.s32 %s14, 1
      %s334 = smul.u32 8, %s24
      %p335 = scmp.lt.s32.totalorder %s23, 1
      %s336 = scalar_select %p335, %s23, 1
      %p337 = scmp.lt.s32.totalorder %s334, 15
      %s338 = scalar_select %p337, %s334, 15
      %s339 = smul.addr %s338, 2
      %s340 = smul.addr %s336, 32
      %s341 = sadd.s32 %s339, %s340
      %s342 = smul.addr %s341, 8
      %s343 = scalar_lea.vmem %s0, %s342
      %p344 = pneg %p54
      %p345 = pneg %p51
      %s346 = smul.u32 %s24, 8
      %s347 = ssub.s32 %s346, 1
      %p348 = scmp.gt.s32.totalorder %s347, 0
      %s349 = scalar_select %p348, %s347, 0
      %p350 = scmp.lt.s32.totalorder %s23, 1
      %s351 = scalar_select %p350, %s23, 1
      %p352 = scmp.lt.s32.totalorder %s349, 15
      %s353 = scalar_select %p352, %s349, 15
      %s354 = smul.addr %s353, 2
      %s355 = smul.addr %s351, 32
      %s356 = sadd.s32 %s354, %s355
      %s357 = smul.addr %s356, 8
      %s358 = scalar_lea.vmem %s1, %s357
      %p359 = pneg %p90
      %p360 = pneg %p87
      %s361 = smul.u32 %s24, 8
      %s362 = sadd.s32 %s361, 8
      %p363 = scmp.lt.s32.totalorder %s362, 15
      %s364 = scalar_select %p363, %s362, 15
      %p365 = scmp.lt.s32.totalorder %s23, 1
      %s366 = scalar_select %p365, %s23, 1
      %p367 = scmp.lt.s32.totalorder %s364, 15
      %s368 = scalar_select %p367, %s364, 15
      %s369 = smul.addr %s368, 2
      %s370 = smul.addr %s366, 32
      %s371 = sadd.s32 %s369, %s370
      %s372 = smul.addr %s371, 8
      %s373 = scalar_lea.vmem %s2, %s372
      %p374 = pneg %p126
      %p375 = pneg %p123
      %p376 = pneg %p147
      %p377 = pneg %p144
      %p378 = pneg %p168
      %p379 = pneg %p165
      %p380 = pneg %p189
      %p381 = pneg %p186
      %p382 = pneg %p217
      %p383 = pneg %p214
      %s384 = smul.u32 8, %s24
      %p385 = scmp.lt.s32.totalorder %s23, 1
      %s386 = scalar_select %p385, %s23, 1
      %p387 = scmp.lt.s32.totalorder %s384, 15
      %s388 = scalar_select %p387, %s384, 15
      %s389 = smul.addr %s388, 2
      %s390 = smul.addr %s386, 32
      %s391 = sadd.s32 %s389, %s390
      %s392 = smul.addr %s391, 8
      %s393 = scalar_lea.vmem %s6, %s392
      %p394 = pneg %p245
      %p395 = pneg %p242
      %p396 = scmp.lt.s32.totalorder %s23, 1
      %s397 = scalar_select %p396, %s23, 1
      %p398 = scmp.lt.s32.totalorder %s24, 1
      %s399 = scalar_select %p398, %s24, 1
      %s400 = smul.addr %s397, 2
      %s401 = sadd.s32 %s399, %s400
      %s402 = smul.addr %s401, 2
      %s403 = scalar_lea.vmem %s7, %s402
      %s404 = smul.u32 8, %s24
      %p405 = scmp.lt.s32.totalorder %s23, 1
      %s406 = scalar_select %p405, %s23, 1
      %p407 = scmp.lt.s32.totalorder %s404, 15
      %s408 = scalar_select %p407, %s404, 15
      %s409 = smul.addr %s408, 2
      %s410 = smul.addr %s406, 32
      %s411 = sadd.s32 %s409, %s410
      %s412 = smul.addr %s411, 8
      %s413 = scalar_lea.vmem %s0, %s412
      %s414 = smul.u32 8, %s24
      %s415 = smul.u32 %s24, 8
      %s416 = ssub.s32 %s415, 1
      %p417 = scmp.gt.s32.totalorder %s416, 0
      %s418 = scalar_select %p417, %s416, 0
      %p419 = scmp.lt.s32.totalorder %s23, 1
      %s420 = scalar_select %p419, %s23, 1
      %p421 = scmp.lt.s32.totalorder %s418, 15
      %s422 = scalar_select %p421, %s418, 15
      %s423 = smul.addr %s422, 2
      %s424 = smul.addr %s420, 32
      %s425 = sadd.s32 %s423, %s424
      %s426 = smul.addr %s425, 8
      %s427 = scalar_lea.vmem %s1, %s426
      %s428 = smul.u32 %s24, 8
      %s429 = ssub.s32 %s428, 1
      %p430 = scmp.gt.s32.totalorder %s429, 0
      %s431 = scalar_select %p430, %s429, 0
      %s432 = smul.u32 %s24, 8
      %s433 = sadd.s32 %s432, 8
      %p434 = scmp.lt.s32.totalorder %s433, 15
      %s435 = scalar_select %p434, %s433, 15
      %p436 = scmp.lt.s32.totalorder %s23, 1
      %s437 = scalar_select %p436, %s23, 1
      %p438 = scmp.lt.s32.totalorder %s435, 15
      %s439 = scalar_select %p438, %s435, 15
      %s440 = smul.addr %s439, 2
      %s441 = smul.addr %s437, 32
      %s442 = sadd.s32 %s440, %s441
      %s443 = smul.addr %s442, 8
      %s444 = scalar_lea.vmem %s2, %s443
      %s445 = smul.u32 %s24, 8
      %s446 = sadd.s32 %s445, 8
      %p447 = scmp.lt.s32.totalorder %s446, 15
      %s448 = scalar_select %p447, %s446, 15
      %s449 = smul.u32 8, %s24
      %p450 = scmp.lt.s32.totalorder %s23, 1
      %s451 = scalar_select %p450, %s23, 1
      %p452 = scmp.lt.s32.totalorder %s449, 15
      %s453 = scalar_select %p452, %s449, 15
      %s454 = smul.addr %s453, 2
      %s455 = smul.addr %s451, 32
      %s456 = sadd.s32 %s454, %s455
      %s457 = smul.addr %s456, 8
      %s458 = scalar_lea.vmem %s6, %s457
      %s459 = smul.u32 8, %s24
      %p460 = scmp.lt.s32.totalorder %s23, 1
      %s461 = scalar_select %p460, %s23, 1
      %p462 = scmp.lt.s32.totalorder %s24, 1
      %s463 = scalar_select %p462, %s24, 1
      %s464 = smul.addr %s461, 2
      %s465 = sadd.s32 %s463, %s464
      %s466 = smul.addr %s465, 2
      %s467 = scalar_lea.vmem %s7, %s466
      %v468 = vld [vmem:[%s3] sm:$0x1]
      %v469 = vld [vmem:[%s4] sm:$0x1]
      %p470 = scmp.eq.s32.totalorder %s24, 0
      %s471 = scalar_select %p470, 0.0, 1.0
      %p472 = scmp.eq.s32.totalorder %s24, 1
      %s473 = scalar_select %p472, 0.0, 1.0
      %v474 = vld [vmem:[%s427] sm:$0xff]
      %v475 = vld [vmem:[%s427 + $0x8] sm:$0xff]
      %v477 = vperm.slane %v468, 0
      %v479 = vmul.f32 %v474, %v477
      %v480 = vmul.f32 %v475, %v477
      %v482 = vperm.slane %v469, 0
      %v484 = vadd.f32 %v479, %v482
      %v485 = vadd.f32 %v480, %v482
      %v486 = vmax.f32 %v484, 0.0
      %v487 = vmax.f32 %v485, 0.0
      %v488 = vstv %s471
      %v489 = vmul.f32 %v486, %v488
      %v490 = vmul.f32 %v487, %v488
      %vm491 = vcmask 64512
      %492 = vst.msk [vmem:[#allocation2 + $0x1] sm:$0xff] %vm491, %v489
      %493 = vst.msk [vmem:[#allocation2 + $0x9] sm:$0xff] %vm491, %v490
      %v494 = vld [vmem:[%s444] sm:$0xff]
      %v495 = vld [vmem:[%s444 + $0x8] sm:$0xff]
      %v496 = vmul.f32 %v494, %v477
      %v497 = vmul.f32 %v495, %v477
      %v498 = vadd.f32 %v496, %v482
      %v499 = vadd.f32 %v497, %v482
      %v500 = vmax.f32 %v498, 0.0
      %v501 = vmax.f32 %v499, 0.0
      %v502 = vstv %s473
      %v503 = vmul.f32 %v500, %v502
      %v504 = vmul.f32 %v501, %v502
      %s505 = scalar_lea.vmem [#allocation2], 216
      %506 = vst.msk [vmem:[%s505 + $0x1] sm:$0xff] %vm491, %v503
      %507 = vst.msk [vmem:[%s505 + $0x9] sm:$0xff] %vm491, %v504
      %v508 = vld [vmem:[%s413] sm:$0xff]
      %v509 = vld [vmem:[%s413 + $0x8] sm:$0xff]
      %v510 = vld [vmem:[%s413 + $0x10] sm:$0xff]
      %v511 = vld [vmem:[%s413 + $0x18] sm:$0xff]
      %v512 = vld [vmem:[%s413 + $0x20] sm:$0xff]
      %v513 = vld [vmem:[%s413 + $0x28] sm:$0xff]
      %v514 = vld [vmem:[%s413 + $0x30] sm:$0xff]
      %v515 = vld [vmem:[%s413 + $0x38] sm:$0xff]
      %v516 = vld [vmem:[%s413 + $0x40] sm:$0xff]
      %v517 = vld [vmem:[%s413 + $0x48] sm:$0xff]
      %v518 = vld [vmem:[%s413 + $0x50] sm:$0xff]
      %v519 = vld [vmem:[%s413 + $0x58] sm:$0xff]
      %v520 = vld [vmem:[%s413 + $0x60] sm:$0xff]
      %v521 = vld [vmem:[%s413 + $0x68] sm:$0xff]
      %v522 = vld [vmem:[%s413 + $0x70] sm:$0xff]
      %v523 = vld [vmem:[%s413 + $0x78] sm:$0xff]
      %v524 = vmul.f32 %v508, %v477
      %v525 = vmul.f32 %v509, %v477
      %v526 = vmul.f32 %v510, %v477
      %v527 = vmul.f32 %v511, %v477
      %v528 = vmul.f32 %v512, %v477
      %v529 = vmul.f32 %v513, %v477
      %v530 = vmul.f32 %v514, %v477
      %v531 = vmul.f32 %v515, %v477
      %v532 = vmul.f32 %v516, %v477
      %v533 = vmul.f32 %v517, %v477
      %v534 = vmul.f32 %v518, %v477
      %v535 = vmul.f32 %v519, %v477
      %v536 = vmul.f32 %v520, %v477
      %v537 = vmul.f32 %v521, %v477
      %v538 = vmul.f32 %v522, %v477
      %v539 = vmul.f32 %v523, %v477
      %v540 = vadd.f32 %v524, %v482
      %v541 = vadd.f32 %v525, %v482
      %v542 = vadd.f32 %v526, %v482
      %v543 = vadd.f32 %v527, %v482
      %v544 = vadd.f32 %v528, %v482
      %v545 = vadd.f32 %v529, %v482
      %v546 = vadd.f32 %v530, %v482
      %v547 = vadd.f32 %v531, %v482
      %v548 = vadd.f32 %v532, %v482
      %v549 = vadd.f32 %v533, %v482
      %v550 = vadd.f32 %v534, %v482
      %v551 = vadd.f32 %v535, %v482
      %v552 = vadd.f32 %v536, %v482
      %v553 = vadd.f32 %v537, %v482
      %v554 = vadd.f32 %v538, %v482
      %v555 = vadd.f32 %v539, %v482
      %v556 = vmax.f32 %v540, 0.0
      %v557 = vmax.f32 %v541, 0.0
      %v558 = vmax.f32 %v542, 0.0
      %v559 = vmax.f32 %v543, 0.0
      %v560 = vmax.f32 %v544, 0.0
      %v561 = vmax.f32 %v545, 0.0
      %v562 = vmax.f32 %v546, 0.0
      %v563 = vmax.f32 %v547, 0.0
      %v564 = vmax.f32 %v548, 0.0
      %v565 = vmax.f32 %v549, 0.0
      %v566 = vmax.f32 %v550, 0.0
      %v567 = vmax.f32 %v551, 0.0
      %v568 = vmax.f32 %v552, 0.0
      %v569 = vmax.f32 %v553, 0.0
      %v570 = vmax.f32 %v554, 0.0
      %v571 = vmax.f32 %v555, 0.0
      %s572 = scalar_lea.vmem [#allocation2], 24
      %573 = vst.msk [vmem:[%s572 + $0x1] sm:$0xff] %vm491, %v556
      %574 = vst.msk [vmem:[%s572 + $0x9] sm:$0xff] %vm491, %v557
      %575 = vst.msk [vmem:[%s572 + $0x19] sm:$0xff] %vm491, %v558
      %576 = vst.msk [vmem:[%s572 + $0x21] sm:$0xff] %vm491, %v559
      %577 = vst.msk [vmem:[%s572 + $0x31] sm:$0xff] %vm491, %v560
      %578 = vst.msk [vmem:[%s572 + $0x39] sm:$0xff] %vm491, %v561
      %579 = vst.msk [vmem:[%s572 + $0x49] sm:$0xff] %vm491, %v562
      %580 = vst.msk [vmem:[%s572 + $0x51] sm:$0xff] %vm491, %v563
      %581 = vst.msk [vmem:[%s572 + $0x61] sm:$0xff] %vm491, %v564
      %582 = vst.msk [vmem:[%s572 + $0x69] sm:$0xff] %vm491, %v565
      %583 = vst.msk [vmem:[%s572 + $0x79] sm:$0xff] %vm491, %v566
      %584 = vst.msk [vmem:[%s572 + $0x81] sm:$0xff] %vm491, %v567
      %585 = vst.msk [vmem:[%s572 + $0x91] sm:$0xff] %vm491, %v568
      %586 = vst.msk [vmem:[%s572 + $0x99] sm:$0xff] %vm491, %v569
      %587 = vst.msk [vmem:[%s572 + $0xa9] sm:$0xff] %vm491, %v570
      %588 = vst.msk [vmem:[%s572 + $0xb1] sm:$0xff] %vm491, %v571
      %vm589 = vcmask 57344
      %590 = vst.msk [vmem:[#allocation2] sm:$0x1] %vm589, 0.0
      %591 = vst.msk [vmem:[#allocation2 + $0x18] sm:$0x1] %vm589, 0.0
      %592 = vst.msk [vmem:[#allocation2 + $0x30] sm:$0x1] %vm589, 0.0
      %593 = vst.msk [vmem:[#allocation2 + $0x48] sm:$0x1] %vm589, 0.0
      %594 = vst.msk [vmem:[#allocation2 + $0x60] sm:$0x1] %vm589, 0.0
      %595 = vst.msk [vmem:[#allocation2 + $0x78] sm:$0x1] %vm589, 0.0
      %596 = vst.msk [vmem:[#allocation2 + $0x90] sm:$0x1] %vm589, 0.0
      %597 = vst.msk [vmem:[#allocation2 + $0xa8] sm:$0x1] %vm589, 0.0
      %598 = vst.msk [vmem:[#allocation2 + $0xc0] sm:$0x1] %vm589, 0.0
      %599 = vst.msk [vmem:[#allocation2 + $0xd8] sm:$0x1] %vm589, 0.0
      %600 = vst.msk [vmem:[#allocation2 + $0x11] sm:$0x1] %vm589, 0.0
      %601 = vst.msk [vmem:[#allocation2 + $0x29] sm:$0x1] %vm589, 0.0
      %602 = vst.msk [vmem:[#allocation2 + $0x41] sm:$0x1] %vm589, 0.0
      %603 = vst.msk [vmem:[#allocation2 + $0x59] sm:$0x1] %vm589, 0.0
      %604 = vst.msk [vmem:[#allocation2 + $0x71] sm:$0x1] %vm589, 0.0
      %605 = vst.msk [vmem:[#allocation2 + $0x89] sm:$0x1] %vm589, 0.0
      %606 = vst.msk [vmem:[#allocation2 + $0xa1] sm:$0x1] %vm589, 0.0
      %607 = vst.msk [vmem:[#allocation2 + $0xb9] sm:$0x1] %vm589, 0.0
      %608 = vst.msk [vmem:[#allocation2 + $0xd1] sm:$0x1] %vm589, 0.0
      %609 = vst.msk [vmem:[#allocation2 + $0xe9] sm:$0x1] %vm589, 0.0
      %v610 = vld [vmem:[#allocation2] sm:$0xff]
      %v611 = vld [vmem:[#allocation2 + $0x8] sm:$0xff]
      %v612 = vld [vmem:[#allocation2 + $0x10] sm:$0x3]
      %v613 = vld [vmem:[#allocation2 + $0x18] sm:$0xff]
      %v614 = vld [vmem:[#allocation2 + $0x20] sm:$0xff]
      %v615 = vld [vmem:[#allocation2 + $0x28] sm:$0x3]
      %v616 = vld [vmem:[#allocation2 + $0x30] sm:$0xff]
      %v617 = vld [vmem:[#allocation2 + $0x38] sm:$0xff]
      %v618 = vld [vmem:[#allocation2 + $0x40] sm:$0x3]
      %v619 = vld [vmem:[#allocation2 + $0x48] sm:$0xff]
      %v620 = vld [vmem:[#allocation2 + $0x50] sm:$0xff]
      %v621 = vld [vmem:[#allocation2 + $0x58] sm:$0x3]
      %v622 = vld [vmem:[#allocation2 + $0x60] sm:$0xff]
      %v623 = vld [vmem:[#allocation2 + $0x68] sm:$0xff]
      %v624 = vld [vmem:[#allocation2 + $0x70] sm:$0x3]
      %v625 = vld [vmem:[#allocation2 + $0x78] sm:$0xff]
      %v626 = vld [vmem:[#allocation2 + $0x80] sm:$0xff]
      %v627 = vld [vmem:[#allocation2 + $0x88] sm:$0x3]
      %v628 = vld [vmem:[#allocation2 + $0x90] sm:$0xff]
      %v629 = vld [vmem:[#allocation2 + $0x98] sm:$0xff]
      %v630 = vld [vmem:[#allocation2 + $0xa0] sm:$0x3]
      %v631 = vld [vmem:[#allocation2 + $0xa8] sm:$0xff]
      %v632 = vld [vmem:[#allocation2 + $0xb0] sm:$0xff]
      %v633 = vld [vmem:[#allocation2 + $0xb8] sm:$0x3]
      %v634 = vld [vmem:[#allocation2 + $0xc0] sm:$0xff]
      %v635 = vld [vmem:[#allocation2 + $0xc8] sm:$0xff]
      %v636 = vld [vmem:[#allocation2 + $0xd0] sm:$0x3]
      %v637 = vld [vmem:[#allocation2 + $0xd8] sm:$0xff]
      %v638 = vld [vmem:[#allocation2 + $0xe0] sm:$0xff]
      %v639 = vld [vmem:[#allocation2 + $0xe8] sm:$0x3]
      %640 = vst.msk [vmem:[#allocation3] sm:$0xff] %vm491, %v610
      %641 = vst.msk [vmem:[#allocation3 + $0x8] sm:$0xff] %vm491, %v611
      %642 = vst.msk [vmem:[#allocation3 + $0x10] sm:$0xff] %vm491, %v613
      %643 = vst.msk [vmem:[#allocation3 + $0x18] sm:$0xff] %vm491, %v614
      %644 = vst.msk [vmem:[#allocation3 + $0x20] sm:$0xff] %vm491, %v616
      %645 = vst.msk [vmem:[#allocation3 + $0x28] sm:$0xff] %vm491, %v617
      %646 = vst.msk [vmem:[#allocation3 + $0x30] sm:$0xff] %vm491, %v619
      %647 = vst.msk [vmem:[#allocation3 + $0x38] sm:$0xff] %vm491, %v620
      %648 = vst.msk [vmem:[#allocation3 + $0x40] sm:$0xff] %vm491, %v622
      %649 = vst.msk [vmem:[#allocation3 + $0x48] sm:$0xff] %vm491, %v623
      %650 = vst.msk [vmem:[#allocation3 + $0x50] sm:$0xff] %vm491, %v625
      %651 = vst.msk [vmem:[#allocation3 + $0x58] sm:$0xff] %vm491, %v626
      %652 = vst.msk [vmem:[#allocation3 + $0x60] sm:$0xff] %vm491, %v628
      %653 = vst.msk [vmem:[#allocation3 + $0x68] sm:$0xff] %vm491, %v629
      %654 = vst.msk [vmem:[#allocation3 + $0x70] sm:$0xff] %vm491, %v631
      %655 = vst.msk [vmem:[#allocation3 + $0x78] sm:$0xff] %vm491, %v632
      %vm680 = vcmask 1046528
      %v681 = vrot.slane %v610, 1
      %v682 = vrot.slane %v611, 1
      %v683 = vsel %vm680, %v681, %v682
      %v684 = vrot.slane %v612, 1
      %v685 = vsel %vm680, %v682, %v684
      %v686 = vrot.slane %v613, 1
      %v687 = vrot.slane %v614, 1
      %v688 = vsel %vm680, %v686, %v687
      %v689 = vrot.slane %v615, 1
      %v690 = vsel %vm680, %v687, %v689
      %v691 = vrot.slane %v616, 1
      %v692 = vrot.slane %v617, 1
      %v693 = vsel %vm680, %v691, %v692
      %v694 = vrot.slane %v618, 1
      %v695 = vsel %vm680, %v692, %v694
      %v696 = vrot.slane %v619, 1
      %v697 = vrot.slane %v620, 1
      %v698 = vsel %vm680, %v696, %v697
      %v699 = vrot.slane %v621, 1
      %v700 = vsel %vm680, %v697, %v699
      %v701 = vrot.slane %v622, 1
      %v702 = vrot.slane %v623, 1
      %v703 = vsel %vm680, %v701, %v702
      %v704 = vrot.slane %v624, 1
      %v705 = vsel %vm680, %v702, %v704
      %v706 = vrot.slane %v625, 1
      %v707 = vrot.slane %v626, 1
      %v708 = vsel %vm680, %v706, %v707
      %v709 = vrot.slane %v627, 1
      %v710 = vsel %vm680, %v707, %v709
      %v711 = vrot.slane %v628, 1
      %v712 = vrot.slane %v629, 1
      %v713 = vsel %vm680, %v711, %v712
      %v714 = vrot.slane %v630, 1
      %v715 = vsel %vm680, %v712, %v714
      %v716 = vrot.slane %v631, 1
      %v717 = vrot.slane %v632, 1
      %v718 = vsel %vm680, %v716, %v717
      %v719 = vrot.slane %v633, 1
      %v720 = vsel %vm680, %v717, %v719
      %721 = vrot.lane.b32.xlu0 %v683, 8
      %v722 = vpop.permute.xlu0 %721
      %723 = vrot.lane.b32.xlu0 %v685, 8
      %v724 = vpop.permute.xlu0 %723
      %725 = vrot.lane.b32.xlu0 %v688, 8
      %v726 = vpop.permute.xlu0 %725
      %727 = vrot.lane.b32.xlu0 %v690, 8
      %v728 = vpop.permute.xlu0 %727
      %729 = vrot.lane.b32.xlu0 %v693, 8
      %v730 = vpop.permute.xlu0 %729
      %731 = vrot.lane.b32.xlu0 %v695, 8
      %v732 = vpop.permute.xlu0 %731
      %733 = vrot.lane.b32.xlu0 %v698, 8
      %v734 = vpop.permute.xlu0 %733
      %735 = vrot.lane.b32.xlu0 %v700, 8
      %v736 = vpop.permute.xlu0 %735
      %737 = vrot.lane.b32.xlu0 %v703, 8
      %v738 = vpop.permute.xlu0 %737
      %739 = vrot.lane.b32.xlu0 %v705, 8
      %v740 = vpop.permute.xlu0 %739
      %741 = vrot.lane.b32.xlu0 %v708, 8
      %v742 = vpop.permute.xlu0 %741
      %743 = vrot.lane.b32.xlu0 %v710, 8
      %v744 = vpop.permute.xlu0 %743
      %745 = vrot.lane.b32.xlu0 %v713, 8
      %v746 = vpop.permute.xlu0 %745
      %747 = vrot.lane.b32.xlu0 %v715, 8
      %v748 = vpop.permute.xlu0 %747
      %749 = vrot.lane.b32.xlu0 %v718, 8
      %v750 = vpop.permute.xlu0 %749
      %751 = vrot.lane.b32.xlu0 %v720, 8
      %v752 = vpop.permute.xlu0 %751
      %vm769 = vcmask 130112
      %770 = vst.msk [vmem:[#allocation3] sm:$0xff] %vm769, %v722
      %771 = vst.msk [vmem:[#allocation3 + $0x8] sm:$0xff] %vm769, %v724
      %772 = vst.msk [vmem:[#allocation3 + $0x10] sm:$0xff] %vm769, %v726
      %773 = vst.msk [vmem:[#allocation3 + $0x18] sm:$0xff] %vm769, %v728
      %774 = vst.msk [vmem:[#allocation3 + $0x20] sm:$0xff] %vm769, %v730
      %775 = vst.msk [vmem:[#allocation3 + $0x28] sm:$0xff] %vm769, %v732
      %776 = vst.msk [vmem:[#allocation3 + $0x30] sm:$0xff] %vm769, %v734
      %777 = vst.msk [vmem:[#allocation3 + $0x38] sm:$0xff] %vm769, %v736
      %778 = vst.msk [vmem:[#allocation3 + $0x40] sm:$0xff] %vm769, %v738
      %779 = vst.msk [vmem:[#allocation3 + $0x48] sm:$0xff] %vm769, %v740
      %780 = vst.msk [vmem:[#allocation3 + $0x50] sm:$0xff] %vm769, %v742
      %781 = vst.msk [vmem:[#allocation3 + $0x58] sm:$0xff] %vm769, %v744
      %782 = vst.msk [vmem:[#allocation3 + $0x60] sm:$0xff] %vm769, %v746
      %783 = vst.msk [vmem:[#allocation3 + $0x68] sm:$0xff] %vm769, %v748
      %784 = vst.msk [vmem:[#allocation3 + $0x70] sm:$0xff] %vm769, %v750
      %785 = vst.msk [vmem:[#allocation3 + $0x78] sm:$0xff] %vm769, %v752
      %vm786 = vcmask 1045504
      %v787 = vrot.slane %v610, 2
      %v788 = vrot.slane %v611, 2
      %v789 = vsel %vm786, %v787, %v788
      %v790 = vrot.slane %v612, 2
      %v791 = vsel %vm786, %v788, %v790
      %v792 = vrot.slane %v613, 2
      %v793 = vrot.slane %v614, 2
      %v794 = vsel %vm786, %v792, %v793
      %v795 = vrot.slane %v615, 2
      %v796 = vsel %vm786, %v793, %v795
      %v797 = vrot.slane %v616, 2
      %v798 = vrot.slane %v617, 2
      %v799 = vsel %vm786, %v797, %v798
      %v800 = vrot.slane %v618, 2
      %v801 = vsel %vm786, %v798, %v800
      %v802 = vrot.slane %v619, 2
      %v803 = vrot.slane %v620, 2
      %v804 = vsel %vm786, %v802, %v803
      %v805 = vrot.slane %v621, 2
      %v806 = vsel %vm786, %v803, %v805
      %v807 = vrot.slane %v622, 2
      %v808 = vrot.slane %v623, 2
      %v809 = vsel %vm786, %v807, %v808
      %v810 = vrot.slane %v624, 2
      %v811 = vsel %vm786, %v808, %v810
      %v812 = vrot.slane %v625, 2
      %v813 = vrot.slane %v626, 2
      %v814 = vsel %vm786, %v812, %v813
      %v815 = vrot.slane %v627, 2
      %v816 = vsel %vm786, %v813, %v815
      %v817 = vrot.slane %v628, 2
      %v818 = vrot.slane %v629, 2
      %v819 = vsel %vm786, %v817, %v818
      %v820 = vrot.slane %v630, 2
      %v821 = vsel %vm786, %v818, %v820
      %v822 = vrot.slane %v631, 2
      %v823 = vrot.slane %v632, 2
      %v824 = vsel %vm786, %v822, %v823
      %v825 = vrot.slane %v633, 2
      %v826 = vsel %vm786, %v823, %v825
      %827 = vrot.lane.b32.xlu0 %v789, 16
      %v828 = vpop.permute.xlu0 %827
      %829 = vrot.lane.b32.xlu0 %v791, 16
      %v830 = vpop.permute.xlu0 %829
      %831 = vrot.lane.b32.xlu0 %v794, 16
      %v832 = vpop.permute.xlu0 %831
      %833 = vrot.lane.b32.xlu0 %v796, 16
      %v834 = vpop.permute.xlu0 %833
      %835 = vrot.lane.b32.xlu0 %v799, 16
      %v836 = vpop.permute.xlu0 %835
      %837 = vrot.lane.b32.xlu0 %v801, 16
      %v838 = vpop.permute.xlu0 %837
      %839 = vrot.lane.b32.xlu0 %v804, 16
      %v840 = vpop.permute.xlu0 %839
      %841 = vrot.lane.b32.xlu0 %v806, 16
      %v842 = vpop.permute.xlu0 %841
      %843 = vrot.lane.b32.xlu0 %v809, 16
      %v844 = vpop.permute.xlu0 %843
      %845 = vrot.lane.b32.xlu0 %v811, 16
      %v846 = vpop.permute.xlu0 %845
      %847 = vrot.lane.b32.xlu0 %v814, 16
      %v848 = vpop.permute.xlu0 %847
      %849 = vrot.lane.b32.xlu0 %v816, 16
      %v850 = vpop.permute.xlu0 %849
      %851 = vrot.lane.b32.xlu0 %v819, 16
      %v852 = vpop.permute.xlu0 %851
      %853 = vrot.lane.b32.xlu0 %v821, 16
      %v854 = vpop.permute.xlu0 %853
      %855 = vrot.lane.b32.xlu0 %v824, 16
      %v856 = vpop.permute.xlu0 %855
      %857 = vrot.lane.b32.xlu0 %v826, 16
      %v858 = vpop.permute.xlu0 %857
      %vm875 = vcmask 195712
      %876 = vst.msk [vmem:[#allocation3] sm:$0xff] %vm875, %v828
      %877 = vst.msk [vmem:[#allocation3 + $0x8] sm:$0xff] %vm875, %v830
      %878 = vst.msk [vmem:[#allocation3 + $0x10] sm:$0xff] %vm875, %v832
      %879 = vst.msk [vmem:[#allocation3 + $0x18] sm:$0xff] %vm875, %v834
      %880 = vst.msk [vmem:[#allocation3 + $0x20] sm:$0xff] %vm875, %v836
      %881 = vst.msk [vmem:[#allocation3 + $0x28] sm:$0xff] %vm875, %v838
      %882 = vst.msk [vmem:[#allocation3 + $0x30] sm:$0xff] %vm875, %v840
      %883 = vst.msk [vmem:[#allocation3 + $0x38] sm:$0xff] %vm875, %v842
      %884 = vst.msk [vmem:[#allocation3 + $0x40] sm:$0xff] %vm875, %v844
      %885 = vst.msk [vmem:[#allocation3 + $0x48] sm:$0xff] %vm875, %v846
      %886 = vst.msk [vmem:[#allocation3 + $0x50] sm:$0xff] %vm875, %v848
      %887 = vst.msk [vmem:[#allocation3 + $0x58] sm:$0xff] %vm875, %v850
      %888 = vst.msk [vmem:[#allocation3 + $0x60] sm:$0xff] %vm875, %v852
      %889 = vst.msk [vmem:[#allocation3 + $0x68] sm:$0xff] %vm875, %v854
      %890 = vst.msk [vmem:[#allocation3 + $0x70] sm:$0xff] %vm875, %v856
      %891 = vst.msk [vmem:[#allocation3 + $0x78] sm:$0xff] %vm875, %v858
      %894 = vrot.lane.b32.xlu0 %v613, 24
      %v895 = vpop.permute.xlu0 %894
      %896 = vrot.lane.b32.xlu0 %v614, 24
      %v897 = vpop.permute.xlu0 %896
      %898 = vrot.lane.b32.xlu0 %v616, 24
      %v899 = vpop.permute.xlu0 %898
      %900 = vrot.lane.b32.xlu0 %v617, 24
      %v901 = vpop.permute.xlu0 %900
      %902 = vrot.lane.b32.xlu0 %v619, 24
      %v903 = vpop.permute.xlu0 %902
      %904 = vrot.lane.b32.xlu0 %v620, 24
      %v905 = vpop.permute.xlu0 %904
      %906 = vrot.lane.b32.xlu0 %v622, 24
      %v907 = vpop.permute.xlu0 %906
      %908 = vrot.lane.b32.xlu0 %v623, 24
      %v909 = vpop.permute.xlu0 %908
      %910 = vrot.lane.b32.xlu0 %v625, 24
      %v911 = vpop.permute.xlu0 %910
      %912 = vrot.lane.b32.xlu0 %v626, 24
      %v913 = vpop.permute.xlu0 %912
      %914 = vrot.lane.b32.xlu0 %v628, 24
      %v915 = vpop.permute.xlu0 %914
      %916 = vrot.lane.b32.xlu0 %v629, 24
      %v917 = vpop.permute.xlu0 %916
      %918 = vrot.lane.b32.xlu0 %v631, 24
      %v919 = vpop.permute.xlu0 %918
      %920 = vrot.lane.b32.xlu0 %v632, 24
      %v921 = vpop.permute.xlu0 %920
      %922 = vrot.lane.b32.xlu0 %v634, 24
      %v923 = vpop.permute.xlu0 %922
      %924 = vrot.lane.b32.xlu0 %v635, 24
      %v925 = vpop.permute.xlu0 %924
      %vm942 = vcmask 261312
      %943 = vst.msk [vmem:[#allocation3] sm:$0xff] %vm942, %v895
      %944 = vst.msk [vmem:[#allocation3 + $0x8] sm:$0xff] %vm942, %v897
      %945 = vst.msk [vmem:[#allocation3 + $0x10] sm:$0xff] %vm942, %v899
      %946 = vst.msk [vmem:[#allocation3 + $0x18] sm:$0xff] %vm942, %v901
      %947 = vst.msk [vmem:[#allocation3 + $0x20] sm:$0xff] %vm942, %v903
      %948 = vst.msk [vmem:[#allocation3 + $0x28] sm:$0xff] %vm942, %v905
      %949 = vst.msk [vmem:[#allocation3 + $0x30] sm:$0xff] %vm942, %v907
      %950 = vst.msk [vmem:[#allocation3 + $0x38] sm:$0xff] %vm942, %v909
      %951 = vst.msk [vmem:[#allocation3 + $0x40] sm:$0xff] %vm942, %v911
      %952 = vst.msk [vmem:[#allocation3 + $0x48] sm:$0xff] %vm942, %v913
      %953 = vst.msk [vmem:[#allocation3 + $0x50] sm:$0xff] %vm942, %v915
      %954 = vst.msk [vmem:[#allocation3 + $0x58] sm:$0xff] %vm942, %v917
      %955 = vst.msk [vmem:[#allocation3 + $0x60] sm:$0xff] %vm942, %v919
      %956 = vst.msk [vmem:[#allocation3 + $0x68] sm:$0xff] %vm942, %v921
      %957 = vst.msk [vmem:[#allocation3 + $0x70] sm:$0xff] %vm942, %v923
      %958 = vst.msk [vmem:[#allocation3 + $0x78] sm:$0xff] %vm942, %v925
      %v960 = vrot.slane %v634, 1
      %v961 = vrot.slane %v635, 1
      %v962 = vsel %vm680, %v960, %v961
      %v963 = vrot.slane %v636, 1
      %v964 = vsel %vm680, %v961, %v963
      %965 = vrot.lane.b32.xlu0 %v688, 32
      %v966 = vpop.permute.xlu0 %965
      %967 = vrot.lane.b32.xlu0 %v690, 32
      %v968 = vpop.permute.xlu0 %967
      %969 = vrot.lane.b32.xlu0 %v693, 32
      %v970 = vpop.permute.xlu0 %969
      %971 = vrot.lane.b32.xlu0 %v695, 32
      %v972 = vpop.permute.xlu0 %971
      %973 = vrot.lane.b32.xlu0 %v698, 32
      %v974 = vpop.permute.xlu0 %973
      %975 = vrot.lane.b32.xlu0 %v700, 32
      %v976 = vpop.permute.xlu0 %975
      %977 = vrot.lane.b32.xlu0 %v703, 32
      %v978 = vpop.permute.xlu0 %977
      %979 = vrot.lane.b32.xlu0 %v705, 32
      %v980 = vpop.permute.xlu0 %979
      %981 = vrot.lane.b32.xlu0 %v708, 32
      %v982 = vpop.permute.xlu0 %981
      %983 = vrot.lane.b32.xlu0 %v710, 32
      %v984 = vpop.permute.xlu0 %983
      %985 = vrot.lane.b32.xlu0 %v713, 32
      %v986 = vpop.permute.xlu0 %985
      %987 = vrot.lane.b32.xlu0 %v715, 32
      %v988 = vpop.permute.xlu0 %987
      %989 = vrot.lane.b32.xlu0 %v718, 32
      %v990 = vpop.permute.xlu0 %989
      %991 = vrot.lane.b32.xlu0 %v720, 32
      %v992 = vpop.permute.xlu0 %991
      %993 = vrot.lane.b32.xlu0 %v962, 32
      %v994 = vpop.permute.xlu0 %993
      %995 = vrot.lane.b32.xlu0 %v964, 32
      %v996 = vpop.permute.xlu0 %995
      %vm1013 = vcmask 326912
      %1014 = vst.msk [vmem:[#allocation3] sm:$0xff] %vm1013, %v966
      %1015 = vst.msk [vmem:[#allocation3 + $0x8] sm:$0xff] %vm1013, %v968
      %1016 = vst.msk [vmem:[#allocation3 + $0x10] sm:$0xff] %vm1013, %v970
      %1017 = vst.msk [vmem:[#allocation3 + $0x18] sm:$0xff] %vm1013, %v972
      %1018 = vst.msk [vmem:[#allocation3 + $0x20] sm:$0xff] %vm1013, %v974
      %1019 = vst.msk [vmem:[#allocation3 + $0x28] sm:$0xff] %vm1013, %v976
      %1020 = vst.msk [vmem:[#allocation3 + $0x30] sm:$0xff] %vm1013, %v978
      %1021 = vst.msk [vmem:[#allocation3 + $0x38] sm:$0xff] %vm1013, %v980
      %1022 = vst.msk [vmem:[#allocation3 + $0x40] sm:$0xff] %vm1013, %v982
      %1023 = vst.msk [vmem:[#allocation3 + $0x48] sm:$0xff] %vm1013, %v984
      %1024 = vst.msk [vmem:[#allocation3 + $0x50] sm:$0xff] %vm1013, %v986
      %1025 = vst.msk [vmem:[#allocation3 + $0x58] sm:$0xff] %vm1013, %v988
      %1026 = vst.msk [vmem:[#allocation3 + $0x60] sm:$0xff] %vm1013, %v990
      %1027 = vst.msk [vmem:[#allocation3 + $0x68] sm:$0xff] %vm1013, %v992
      %1028 = vst.msk [vmem:[#allocation3 + $0x70] sm:$0xff] %vm1013, %v994
      %1029 = vst.msk [vmem:[#allocation3 + $0x78] sm:$0xff] %vm1013, %v996
      %v1030 = vrot.slane %v634, 2
      %v1031 = vrot.slane %v635, 2
      %v1032 = vsel %vm786, %v1030, %v1031
      %v1033 = vrot.slane %v636, 2
      %v1034 = vsel %vm786, %v1031, %v1033
      %1035 = vrot.lane.b32.xlu0 %v794, 40
      %v1036 = vpop.permute.xlu0 %1035
      %1037 = vrot.lane.b32.xlu0 %v796, 40
      %v1038 = vpop.permute.xlu0 %1037
      %1039 = vrot.lane.b32.xlu0 %v799, 40
      %v1040 = vpop.permute.xlu0 %1039
      %1041 = vrot.lane.b32.xlu0 %v801, 40
      %v1042 = vpop.permute.xlu0 %1041
      %1043 = vrot.lane.b32.xlu0 %v804, 40
      %v1044 = vpop.permute.xlu0 %1043
      %1045 = vrot.lane.b32.xlu0 %v806, 40
      %v1046 = vpop.permute.xlu0 %1045
      %1047 = vrot.lane.b32.xlu0 %v809, 40
      %v1048 = vpop.permute.xlu0 %1047
      %1049 = vrot.lane.b32.xlu0 %v811, 40
      %v1050 = vpop.permute.xlu0 %1049
      %1051 = vrot.lane.b32.xlu0 %v814, 40
      %v1052 = vpop.permute.xlu0 %1051
      %1053 = vrot.lane.b32.xlu0 %v816, 40
      %v1054 = vpop.permute.xlu0 %1053
      %1055 = vrot.lane.b32.xlu0 %v819, 40
      %v1056 = vpop.permute.xlu0 %1055
      %1057 = vrot.lane.b32.xlu0 %v821, 40
      %v1058 = vpop.permute.xlu0 %1057
      %1059 = vrot.lane.b32.xlu0 %v824, 40
      %v1060 = vpop.permute.xlu0 %1059
      %1061 = vrot.lane.b32.xlu0 %v826, 40
      %v1062 = vpop.permute.xlu0 %1061
      %1063 = vrot.lane.b32.xlu0 %v1032, 40
      %v1064 = vpop.permute.xlu0 %1063
      %1065 = vrot.lane.b32.xlu0 %v1034, 40
      %v1066 = vpop.permute.xlu0 %1065
      %vm1083 = vcmask 392512
      %1084 = vst.msk [vmem:[#allocation3] sm:$0xff] %vm1083, %v1036
      %1085 = vst.msk [vmem:[#allocation3 + $0x8] sm:$0xff] %vm1083, %v1038
      %1086 = vst.msk [vmem:[#allocation3 + $0x10] sm:$0xff] %vm1083, %v1040
      %1087 = vst.msk [vmem:[#allocation3 + $0x18] sm:$0xff] %vm1083, %v1042
      %1088 = vst.msk [vmem:[#allocation3 + $0x20] sm:$0xff] %vm1083, %v1044
      %1089 = vst.msk [vmem:[#allocation3 + $0x28] sm:$0xff] %vm1083, %v1046
      %1090 = vst.msk [vmem:[#allocation3 + $0x30] sm:$0xff] %vm1083, %v1048
      %1091 = vst.msk [vmem:[#allocation3 + $0x38] sm:$0xff] %vm1083, %v1050
      %1092 = vst.msk [vmem:[#allocation3 + $0x40] sm:$0xff] %vm1083, %v1052
      %1093 = vst.msk [vmem:[#allocation3 + $0x48] sm:$0xff] %vm1083, %v1054
      %1094 = vst.msk [vmem:[#allocation3 + $0x50] sm:$0xff] %vm1083, %v1056
      %1095 = vst.msk [vmem:[#allocation3 + $0x58] sm:$0xff] %vm1083, %v1058
      %1096 = vst.msk [vmem:[#allocation3 + $0x60] sm:$0xff] %vm1083, %v1060
      %1097 = vst.msk [vmem:[#allocation3 + $0x68] sm:$0xff] %vm1083, %v1062
      %1098 = vst.msk [vmem:[#allocation3 + $0x70] sm:$0xff] %vm1083, %v1064
      %1099 = vst.msk [vmem:[#allocation3 + $0x78] sm:$0xff] %vm1083, %v1066
      %1102 = vrot.lane.b32.xlu0 %v616, 48
      %v1103 = vpop.permute.xlu0 %1102
      %1104 = vrot.lane.b32.xlu0 %v617, 48
      %v1105 = vpop.permute.xlu0 %1104
      %1106 = vrot.lane.b32.xlu0 %v619, 48
      %v1107 = vpop.permute.xlu0 %1106
      %1108 = vrot.lane.b32.xlu0 %v620, 48
      %v1109 = vpop.permute.xlu0 %1108
      %1110 = vrot.lane.b32.xlu0 %v622, 48
      %v1111 = vpop.permute.xlu0 %1110
      %1112 = vrot.lane.b32.xlu0 %v623, 48
      %v1113 = vpop.permute.xlu0 %1112
      %1114 = vrot.lane.b32.xlu0 %v625, 48
      %v1115 = vpop.permute.xlu0 %1114
      %1116 = vrot.lane.b32.xlu0 %v626, 48
      %v1117 = vpop.permute.xlu0 %1116
      %1118 = vrot.lane.b32.xlu0 %v628, 48
      %v1119 = vpop.permute.xlu0 %1118
      %1120 = vrot.lane.b32.xlu0 %v629, 48
      %v1121 = vpop.permute.xlu0 %1120
      %1122 = vrot.lane.b32.xlu0 %v631, 48
      %v1123 = vpop.permute.xlu0 %1122
      %1124 = vrot.lane.b32.xlu0 %v632, 48
      %v1125 = vpop.permute.xlu0 %1124
      %1126 = vrot.lane.b32.xlu0 %v634, 48
      %v1127 = vpop.permute.xlu0 %1126
      %1128 = vrot.lane.b32.xlu0 %v635, 48
      %v1129 = vpop.permute.xlu0 %1128
      %1130 = vrot.lane.b32.xlu0 %v637, 48
      %v1131 = vpop.permute.xlu0 %1130
      %1132 = vrot.lane.b32.xlu0 %v638, 48
      %v1133 = vpop.permute.xlu0 %1132
      %vm1150 = vcmask 458112
      %1151 = vst.msk [vmem:[#allocation3] sm:$0xff] %vm1150, %v1103
      %1152 = vst.msk [vmem:[#allocation3 + $0x8] sm:$0xff] %vm1150, %v1105
      %1153 = vst.msk [vmem:[#allocation3 + $0x10] sm:$0xff] %vm1150, %v1107
      %1154 = vst.msk [vmem:[#allocation3 + $0x18] sm:$0xff] %vm1150, %v1109
      %1155 = vst.msk [vmem:[#allocation3 + $0x20] sm:$0xff] %vm1150, %v1111
      %1156 = vst.msk [vmem:[#allocation3 + $0x28] sm:$0xff] %vm1150, %v1113
      %1157 = vst.msk [vmem:[#allocation3 + $0x30] sm:$0xff] %vm1150, %v1115
      %1158 = vst.msk [vmem:[#allocation3 + $0x38] sm:$0xff] %vm1150, %v1117
      %1159 = vst.msk [vmem:[#allocation3 + $0x40] sm:$0xff] %vm1150, %v1119
      %1160 = vst.msk [vmem:[#allocation3 + $0x48] sm:$0xff] %vm1150, %v1121
      %1161 = vst.msk [vmem:[#allocation3 + $0x50] sm:$0xff] %vm1150, %v1123
      %1162 = vst.msk [vmem:[#allocation3 + $0x58] sm:$0xff] %vm1150, %v1125
      %1163 = vst.msk [vmem:[#allocation3 + $0x60] sm:$0xff] %vm1150, %v1127
      %1164 = vst.msk [vmem:[#allocation3 + $0x68] sm:$0xff] %vm1150, %v1129
      %1165 = vst.msk [vmem:[#allocation3 + $0x70] sm:$0xff] %vm1150, %v1131
      %1166 = vst.msk [vmem:[#allocation3 + $0x78] sm:$0xff] %vm1150, %v1133
      %v1168 = vrot.slane %v637, 1
      %v1169 = vrot.slane %v638, 1
      %v1170 = vsel %vm680, %v1168, %v1169
      %v1171 = vrot.slane %v639, 1
      %v1172 = vsel %vm680, %v1169, %v1171
      %1173 = vrot.lane.b32.xlu0 %v693, 56
      %v1174 = vpop.permute.xlu0 %1173
      %1175 = vrot.lane.b32.xlu0 %v695, 56
      %v1176 = vpop.permute.xlu0 %1175
      %1177 = vrot.lane.b32.xlu0 %v698, 56
      %v1178 = vpop.permute.xlu0 %1177
      %1179 = vrot.lane.b32.xlu0 %v700, 56
      %v1180 = vpop.permute.xlu0 %1179
      %1181 = vrot.lane.b32.xlu0 %v703, 56
      %v1182 = vpop.permute.xlu0 %1181
      %1183 = vrot.lane.b32.xlu0 %v705, 56
      %v1184 = vpop.permute.xlu0 %1183
      %1185 = vrot.lane.b32.xlu0 %v708, 56
      %v1186 = vpop.permute.xlu0 %1185
      %1187 = vrot.lane.b32.xlu0 %v710, 56
      %v1188 = vpop.permute.xlu0 %1187
      %1189 = vrot.lane.b32.xlu0 %v713, 56
      %v1190 = vpop.permute.xlu0 %1189
      %1191 = vrot.lane.b32.xlu0 %v715, 56
      %v1192 = vpop.permute.xlu0 %1191
      %1193 = vrot.lane.b32.xlu0 %v718, 56
      %v1194 = vpop.permute.xlu0 %1193
      %1195 = vrot.lane.b32.xlu0 %v720, 56
      %v1196 = vpop.permute.xlu0 %1195
      %1197 = vrot.lane.b32.xlu0 %v962, 56
      %v1198 = vpop.permute.xlu0 %1197
      %1199 = vrot.lane.b32.xlu0 %v964, 56
      %v1200 = vpop.permute.xlu0 %1199
      %1201 = vrot.lane.b32.xlu0 %v1170, 56
      %v1202 = vpop.permute.xlu0 %1201
      %1203 = vrot.lane.b32.xlu0 %v1172, 56
      %v1204 = vpop.permute.xlu0 %1203
      %vm1221 = vcmask 523712
      %1222 = vst.msk [vmem:[#allocation3] sm:$0xff] %vm1221, %v1174
      %1223 = vst.msk [vmem:[#allocation3 + $0x8] sm:$0xff] %vm1221, %v1176
      %1224 = vst.msk [vmem:[#allocation3 + $0x10] sm:$0xff] %vm1221, %v1178
      %1225 = vst.msk [vmem:[#allocation3 + $0x18] sm:$0xff] %vm1221, %v1180
      %1226 = vst.msk [vmem:[#allocation3 + $0x20] sm:$0xff] %vm1221, %v1182
      %1227 = vst.msk [vmem:[#allocation3 + $0x28] sm:$0xff] %vm1221, %v1184
      %1228 = vst.msk [vmem:[#allocation3 + $0x30] sm:$0xff] %vm1221, %v1186
      %1229 = vst.msk [vmem:[#allocation3 + $0x38] sm:$0xff] %vm1221, %v1188
      %1230 = vst.msk [vmem:[#allocation3 + $0x40] sm:$0xff] %vm1221, %v1190
      %1231 = vst.msk [vmem:[#allocation3 + $0x48] sm:$0xff] %vm1221, %v1192
      %1232 = vst.msk [vmem:[#allocation3 + $0x50] sm:$0xff] %vm1221, %v1194
      %1233 = vst.msk [vmem:[#allocation3 + $0x58] sm:$0xff] %vm1221, %v1196
      %1234 = vst.msk [vmem:[#allocation3 + $0x60] sm:$0xff] %vm1221, %v1198
      %1235 = vst.msk [vmem:[#allocation3 + $0x68] sm:$0xff] %vm1221, %v1200
      %1236 = vst.msk [vmem:[#allocation3 + $0x70] sm:$0xff] %vm1221, %v1202
      %1237 = vst.msk [vmem:[#allocation3 + $0x78] sm:$0xff] %vm1221, %v1204
      %v1238 = vrot.slane %v637, 2
      %v1239 = vrot.slane %v638, 2
      %v1240 = vsel %vm786, %v1238, %v1239
      %v1241 = vrot.slane %v639, 2
      %v1242 = vsel %vm786, %v1239, %v1241
      %1243 = vrot.lane.b32.xlu0 %v799, 64
      %v1244 = vpop.permute.xlu0 %1243
      %1245 = vrot.lane.b32.xlu0 %v801, 64
      %v1246 = vpop.permute.xlu0 %1245
      %1247 = vrot.lane.b32.xlu0 %v804, 64
      %v1248 = vpop.permute.xlu0 %1247
      %1249 = vrot.lane.b32.xlu0 %v806, 64
      %v1250 = vpop.permute.xlu0 %1249
      %1251 = vrot.lane.b32.xlu0 %v809, 64
      %v1252 = vpop.permute.xlu0 %1251
      %1253 = vrot.lane.b32.xlu0 %v811, 64
      %v1254 = vpop.permute.xlu0 %1253
      %1255 = vrot.lane.b32.xlu0 %v814, 64
      %v1256 = vpop.permute.xlu0 %1255
      %1257 = vrot.lane.b32.xlu0 %v816, 64
      %v1258 = vpop.permute.xlu0 %1257
      %1259 = vrot.lane.b32.xlu0 %v819, 64
      %v1260 = vpop.permute.xlu0 %1259
      %1261 = vrot.lane.b32.xlu0 %v821, 64
      %v1262 = vpop.permute.xlu0 %1261
      %1263 = vrot.lane.b32.xlu0 %v824, 64
      %v1264 = vpop.permute.xlu0 %1263
      %1265 = vrot.lane.b32.xlu0 %v826, 64
      %v1266 = vpop.permute.xlu0 %1265
      %1267 = vrot.lane.b32.xlu0 %v1032, 64
      %v1268 = vpop.permute.xlu0 %1267
      %1269 = vrot.lane.b32.xlu0 %v1034, 64
      %v1270 = vpop.permute.xlu0 %1269
      %1271 = vrot.lane.b32.xlu0 %v1240, 64
      %v1272 = vpop.permute.xlu0 %1271
      %1273 = vrot.lane.b32.xlu0 %v1242, 64
      %v1274 = vpop.permute.xlu0 %1273
      %vm1291 = vcmask 589312
      %1292 = vst.msk [vmem:[#allocation3] sm:$0xff] %vm1291, %v1244
      %1293 = vst.msk [vmem:[#allocation3 + $0x8] sm:$0xff] %vm1291, %v1246
      %1294 = vst.msk [vmem:[#allocation3 + $0x10] sm:$0xff] %vm1291, %v1248
      %1295 = vst.msk [vmem:[#allocation3 + $0x18] sm:$0xff] %vm1291, %v1250
      %1296 = vst.msk [vmem:[#allocation3 + $0x20] sm:$0xff] %vm1291, %v1252
      %1297 = vst.msk [vmem:[#allocation3 + $0x28] sm:$0xff] %vm1291, %v1254
      %1298 = vst.msk [vmem:[#allocation3 + $0x30] sm:$0xff] %vm1291, %v1256
      %1299 = vst.msk [vmem:[#allocation3 + $0x38] sm:$0xff] %vm1291, %v1258
      %1300 = vst.msk [vmem:[#allocation3 + $0x40] sm:$0xff] %vm1291, %v1260
      %1301 = vst.msk [vmem:[#allocation3 + $0x48] sm:$0xff] %vm1291, %v1262
      %1302 = vst.msk [vmem:[#allocation3 + $0x50] sm:$0xff] %vm1291, %v1264
      %1303 = vst.msk [vmem:[#allocation3 + $0x58] sm:$0xff] %vm1291, %v1266
      %1304 = vst.msk [vmem:[#allocation3 + $0x60] sm:$0xff] %vm1291, %v1268
      %1305 = vst.msk [vmem:[#allocation3 + $0x68] sm:$0xff] %vm1291, %v1270
      %1306 = vst.msk [vmem:[#allocation3 + $0x70] sm:$0xff] %vm1291, %v1272
      %1307 = vst.msk [vmem:[#allocation3 + $0x78] sm:$0xff] %vm1291, %v1274
      %v1308 = vld [vmem:[#allocation3] sm:$0xff]
      %v1309 = vld [vmem:[#allocation3 + $0x8] sm:$0xff]
      %v1310 = vld [vmem:[#allocation3 + $0x10] sm:$0xff]
      %v1311 = vld [vmem:[#allocation3 + $0x18] sm:$0xff]
      %v1312 = vld [vmem:[#allocation3 + $0x20] sm:$0xff]
      %v1313 = vld [vmem:[#allocation3 + $0x28] sm:$0xff]
      %v1314 = vld [vmem:[#allocation3 + $0x30] sm:$0xff]
      %v1315 = vld [vmem:[#allocation3 + $0x38] sm:$0xff]
      %v1316 = vld [vmem:[#allocation3 + $0x40] sm:$0xff]
      %v1317 = vld [vmem:[#allocation3 + $0x48] sm:$0xff]
      %v1318 = vld [vmem:[#allocation3 + $0x50] sm:$0xff]
      %v1319 = vld [vmem:[#allocation3 + $0x58] sm:$0xff]
      %v1320 = vld [vmem:[#allocation3 + $0x60] sm:$0xff]
      %v1321 = vld [vmem:[#allocation3 + $0x68] sm:$0xff]
      %v1322 = vld [vmem:[#allocation3 + $0x70] sm:$0xff]
      %v1323 = vld [vmem:[#allocation3 + $0x78] sm:$0xff]
      %v1324 = vld [vmem:[%s5] sm:$0xff]
      %v1325 = vld [vmem:[%s5 + $0x8] sm:$0xff]
      %v1326 = vld [vmem:[%s5 + $0x10] sm:$0xff]
      %v1327 = vld [vmem:[%s5 + $0x18] sm:$0xff]
      %v1328 = vld [vmem:[%s5 + $0x20] sm:$0xff]
      %v1329 = vld [vmem:[%s5 + $0x28] sm:$0xff]
      %v1330 = vld [vmem:[%s5 + $0x30] sm:$0xff]
      %v1331 = vld [vmem:[%s5 + $0x38] sm:$0xff]
      %v1332 = vld [vmem:[%s5 + $0x40] sm:$0xff]
      %vm1333 = vcmask 588800
      %v1335 = vsel %vm1333, %v1308, 0
      %v1338 = vsel %vm1333, %v1309, 0
      %v1341 = vsel %vm1333, %v1310, 0
      %v1344 = vsel %vm1333, %v1311, 0
      %v1347 = vsel %vm1333, %v1312, 0
      %v1350 = vsel %vm1333, %v1313, 0
      %v1353 = vsel %vm1333, %v1314, 0
      %v1356 = vsel %vm1333, %v1315, 0
      %v1359 = vsel %vm1333, %v1316, 0
      %v1362 = vsel %vm1333, %v1317, 0
      %v1365 = vsel %vm1333, %v1318, 0
      %v1368 = vsel %vm1333, %v1319, 0
      %v1371 = vsel %vm1333, %v1320, 0
      %v1374 = vsel %vm1333, %v1321, 0
      %v1377 = vsel %vm1333, %v1322, 0
      %v1380 = vsel %vm1333, %v1323, 0
      %1382 = vmatpush.msra.mxu0 0.0
      %1383 = vmatpush.msra.mxu0 0.0
      %1384 = vmatpush.msra.mxu0 0.0
      %1385 = vmatpush.msra.mxu0 0.0
      %1386 = vmatpush.msra.mxu0 0.0
      %1387 = vmatpush.msra.mxu0 0.0
      %1388 = vmatpush.msra.mxu0 0.0
      %1389 = vmatpush.msra.mxu0 %v1332
      %1390 = vmatpush.msra.mxu0 %v1331
      %1391 = vmatpush.msra.mxu0 %v1330
      %1392 = vmatpush.msra.mxu0 %v1329
      %1393 = vmatpush.msra.mxu0 %v1328
      %1394 = vmatpush.msra.mxu0 %v1327
      %1395 = vmatpush.msra.mxu0 %v1326
      %1396 = vmatpush.msra.mxu0 %v1325
      %1397 = vmatpush.msra.mxu0 %v1324
      %1398 = vmatmul.f32.gmra.mxu0 %v1335
      %v1399 = vpop.f32.mrf.mxu0
      %v1400 = vadd.f32 0.0, %v1399
      %1401 = vmatmul.f32.gmra.mxu0 %v1338
      %v1402 = vpop.f32.mrf.mxu0
      %v1403 = vadd.f32 0.0, %v1402
      %1404 = vmatmul.f32.gmra.mxu0 %v1341
      %v1405 = vpop.f32.mrf.mxu0
      %v1406 = vadd.f32 0.0, %v1405
      %1407 = vmatmul.f32.gmra.mxu0 %v1344
      %v1408 = vpop.f32.mrf.mxu0
      %v1409 = vadd.f32 0.0, %v1408
      %1410 = vmatmul.f32.gmra.mxu0 %v1347
      %v1411 = vpop.f32.mrf.mxu0
      %v1412 = vadd.f32 0.0, %v1411
      %1413 = vmatmul.f32.gmra.mxu0 %v1350
      %v1414 = vpop.f32.mrf.mxu0
      %v1415 = vadd.f32 0.0, %v1414
      %1416 = vmatmul.f32.gmra.mxu0 %v1353
      %v1417 = vpop.f32.mrf.mxu0
      %v1418 = vadd.f32 0.0, %v1417
      %1419 = vmatmul.f32.gmra.mxu0 %v1356
      %v1420 = vpop.f32.mrf.mxu0
      %v1421 = vadd.f32 0.0, %v1420
      %1422 = vmatmul.f32.gmra.mxu0 %v1359
      %v1423 = vpop.f32.mrf.mxu0
      %v1424 = vadd.f32 0.0, %v1423
      %1425 = vmatmul.f32.gmra.mxu0 %v1362
      %v1426 = vpop.f32.mrf.mxu0
      %v1427 = vadd.f32 0.0, %v1426
      %1428 = vmatmul.f32.gmra.mxu0 %v1365
      %v1429 = vpop.f32.mrf.mxu0
      %v1430 = vadd.f32 0.0, %v1429
      %1431 = vmatmul.f32.gmra.mxu0 %v1368
      %v1432 = vpop.f32.mrf.mxu0
      %v1433 = vadd.f32 0.0, %v1432
      %1434 = vmatmul.f32.gmra.mxu0 %v1371
      %v1435 = vpop.f32.mrf.mxu0
      %v1436 = vadd.f32 0.0, %v1435
      %1437 = vmatmul.f32.gmra.mxu0 %v1374
      %v1438 = vpop.f32.mrf.mxu0
      %v1439 = vadd.f32 0.0, %v1438
      %1440 = vmatmul.f32.gmra.mxu0 %v1377
      %v1441 = vpop.f32.mrf.mxu0
      %v1442 = vadd.f32 0.0, %v1441
      %1443 = vmatmul.f32.gmra.mxu0 %v1380
      %v1444 = vpop.f32.mrf.mxu0
      %v1445 = vadd.f32 0.0, %v1444
      %1446 = vdwg.mxu0
      %v1447 = vsel %vm491, %v1400, 0.0
      %v1448 = vsel %vm491, %v1403, 0.0
      %v1449 = vadd.f32 %v1447, %v1448
      %v1450 = vsel %vm491, %v1406, 0.0
      %v1451 = vadd.f32 %v1449, %v1450
      %v1452 = vsel %vm491, %v1409, 0.0
      %v1453 = vadd.f32 %v1451, %v1452
      %v1454 = vsel %vm491, %v1412, 0.0
      %v1455 = vadd.f32 %v1453, %v1454
      %v1456 = vsel %vm491, %v1415, 0.0
      %v1457 = vadd.f32 %v1455, %v1456
      %v1458 = vsel %vm491, %v1418, 0.0
      %v1459 = vadd.f32 %v1457, %v1458
      %v1460 = vsel %vm491, %v1421, 0.0
      %v1461 = vadd.f32 %v1459, %v1460
      %v1462 = vsel %vm491, %v1424, 0.0
      %v1463 = vadd.f32 %v1461, %v1462
      %v1464 = vsel %vm491, %v1427, 0.0
      %v1465 = vadd.f32 %v1463, %v1464
      %v1466 = vsel %vm491, %v1430, 0.0
      %v1467 = vadd.f32 %v1465, %v1466
      %v1468 = vsel %vm491, %v1433, 0.0
      %v1469 = vadd.f32 %v1467, %v1468
      %v1470 = vsel %vm491, %v1436, 0.0
      %v1471 = vadd.f32 %v1469, %v1470
      %v1472 = vsel %vm491, %v1439, 0.0
      %v1473 = vadd.f32 %v1471, %v1472
      %v1474 = vsel %vm491, %v1442, 0.0
      %v1475 = vadd.f32 %v1473, %v1474
      %v1476 = vsel %vm491, %v1445, 0.0
      %v1477 = vadd.f32 %v1475, %v1476
      %v1478 = vrot.slane %v1477, 4
      %v1479 = vadd.f32 %v1477, %v1478
      %v1480 = vrot.slane %v1479, 2
      %v1481 = vadd.f32 %v1479, %v1480
      %v1482 = vrot.slane %v1481, 1
      %v1483 = vadd.f32 %v1481, %v1482
      %1484 = vst.msk [vmem:[%s467] sm:$0x1] %vm589, %v1483
      %v1485 = vmul.f32 %v1400, %v1400
      %v1486 = vmul.f32 %v1403, %v1403
      %v1487 = vmul.f32 %v1406, %v1406
      %v1488 = vmul.f32 %v1409, %v1409
      %v1489 = vmul.f32 %v1412, %v1412
      %v1490 = vmul.f32 %v1415, %v1415
      %v1491 = vmul.f32 %v1418, %v1418
      %v1492 = vmul.f32 %v1421, %v1421
      %v1493 = vmul.f32 %v1424, %v1424
      %v1494 = vmul.f32 %v1427, %v1427
      %v1495 = vmul.f32 %v1430, %v1430
      %v1496 = vmul.f32 %v1433, %v1433
      %v1497 = vmul.f32 %v1436, %v1436
      %v1498 = vmul.f32 %v1439, %v1439
      %v1499 = vmul.f32 %v1442, %v1442
      %v1500 = vmul.f32 %v1445, %v1445
      %v1501 = vsel %vm491, %v1485, 0.0
      %v1502 = vsel %vm491, %v1486, 0.0
      %v1503 = vadd.f32 %v1501, %v1502
      %v1504 = vsel %vm491, %v1487, 0.0
      %v1505 = vadd.f32 %v1503, %v1504
      %v1506 = vsel %vm491, %v1488, 0.0
      %v1507 = vadd.f32 %v1505, %v1506
      %v1508 = vsel %vm491, %v1489, 0.0
      %v1509 = vadd.f32 %v1507, %v1508
      %v1510 = vsel %vm491, %v1490, 0.0
      %v1511 = vadd.f32 %v1509, %v1510
      %v1512 = vsel %vm491, %v1491, 0.0
      %v1513 = vadd.f32 %v1511, %v1512
      %v1514 = vsel %vm491, %v1492, 0.0
      %v1515 = vadd.f32 %v1513, %v1514
      %v1516 = vsel %vm491, %v1493, 0.0
      %v1517 = vadd.f32 %v1515, %v1516
      %v1518 = vsel %vm491, %v1494, 0.0
      %v1519 = vadd.f32 %v1517, %v1518
      %v1520 = vsel %vm491, %v1495, 0.0
      %v1521 = vadd.f32 %v1519, %v1520
      %v1522 = vsel %vm491, %v1496, 0.0
      %v1523 = vadd.f32 %v1521, %v1522
      %v1524 = vsel %vm491, %v1497, 0.0
      %v1525 = vadd.f32 %v1523, %v1524
      %v1526 = vsel %vm491, %v1498, 0.0
      %v1527 = vadd.f32 %v1525, %v1526
      %v1528 = vsel %vm491, %v1499, 0.0
      %v1529 = vadd.f32 %v1527, %v1528
      %v1530 = vsel %vm491, %v1500, 0.0
      %v1531 = vadd.f32 %v1529, %v1530
      %v1532 = vrot.slane %v1531, 4
      %v1533 = vadd.f32 %v1531, %v1532
      %v1534 = vrot.slane %v1533, 2
      %v1535 = vadd.f32 %v1533, %v1534
      %v1536 = vrot.slane %v1535, 1
      %v1537 = vadd.f32 %v1535, %v1536
      %1538 = vst.msk [vmem:[%s467 + $0x1] sm:$0x1] %vm589, %v1537
      %1539 = vst.msk [vmem:[%s458] sm:$0xff] %vm491, %v1400
      %1540 = vst.msk [vmem:[%s458 + $0x8] sm:$0xff] %vm491, %v1403
      %1541 = vst.msk [vmem:[%s458 + $0x10] sm:$0xff] %vm491, %v1406
      %1542 = vst.msk [vmem:[%s458 + $0x18] sm:$0xff] %vm491, %v1409
      %1543 = vst.msk [vmem:[%s458 + $0x20] sm:$0xff] %vm491, %v1412
      %1544 = vst.msk [vmem:[%s458 + $0x28] sm:$0xff] %vm491, %v1415
      %1545 = vst.msk [vmem:[%s458 + $0x30] sm:$0xff] %vm491, %v1418
      %1546 = vst.msk [vmem:[%s458 + $0x38] sm:$0xff] %vm491, %v1421
      %1547 = vst.msk [vmem:[%s458 + $0x40] sm:$0xff] %vm491, %v1424
      %1548 = vst.msk [vmem:[%s458 + $0x48] sm:$0xff] %vm491, %v1427
      %1549 = vst.msk [vmem:[%s458 + $0x50] sm:$0xff] %vm491, %v1430
      %1550 = vst.msk [vmem:[%s458 + $0x58] sm:$0xff] %vm491, %v1433
      %1551 = vst.msk [vmem:[%s458 + $0x60] sm:$0xff] %vm491, %v1436
      %1552 = vst.msk [vmem:[%s458 + $0x68] sm:$0xff] %vm491, %v1439
      %1553 = vst.msk [vmem:[%s458 + $0x70] sm:$0xff] %vm491, %v1442
      %1554 = vst.msk [vmem:[%s458 + $0x78] sm:$0xff] %vm491, %v1445
      %s1555 = smul.u32 8, %s24
      %p1556 = scmp.lt.s32.totalorder %s23, 1
      %s1557 = scalar_select %p1556, %s23, 1
      %p1558 = scmp.lt.s32.totalorder %s1555, 15
      %s1559 = scalar_select %p1558, %s1555, 15
      %s1560 = smul.addr %s1559, 2
      %s1561 = smul.addr %s1557, 32
      %s1562 = sadd.s32 %s1560, %s1561
      %s1563 = smul.addr %s1562, 8
      %s1564 = scalar_lea.vmem %s6, %s1563
      %p1565 = scmp.lt.s32.totalorder %s23, 1
      %s1566 = scalar_select %p1565, %s23, 1
      %p1567 = scmp.lt.s32.totalorder %s24, 1
      %s1568 = scalar_select %p1567, %s24, 1
      %s1569 = smul.addr %s1566, 2
      %s1570 = sadd.s32 %s1568, %s1569
      %s1571 = smul.addr %s1570, 2
      %s1572 = scalar_lea.vmem %s7, %s1571
      // Predicated region
      $region45: #{double_conv.4} parent=43 // pred_check
        %p1573 = pneg %p214
      $region46: #{double_conv.4} parent=43 // pred_check_branch
        %1575 = sbr.rel (%p1573) target = $region48
      $region47: #{double_conv.4} parent=43 // pred_region
        %s1576 = smul.u32 8, %s24
      $region48: #{double_conv.4} parent=43 // pred_fallthru
        _
      // Predicated region
      $region49: #{double_conv.4} parent=43 // pred_check
        %p1577 = pneg %p242
      $region50: #{double_conv.4} parent=43 // pred_check_branch
        %1579 = sbr.rel (%p1577) target = $region52
      $region51: #{double_conv.4} parent=43 // pred_region
        _
      $region52: #{double_conv.4} parent=43 // pred_fallthru
        _
    $region44: #{double_conv.4} parent=5 // pred_fallthru
      _
    %p1580 = scmp.le.s32.totalorder 2, %s14
    // Predicated region
    $region53: #{double_conv.4} parent=5 // pred_check
      %p1581 = pneg %p1580
    $region54: #{double_conv.4} parent=5 // pred_check_branch
      %1583 = sbr.rel (%p1581) target = $region56
    $region55: #{double_conv.4} parent=5 // pred_region
      %s1584 = ssub.s32 %s14, 2
      // Predicated region
      $region57: #{double_conv.4} parent=55 // pred_check
        %p1585 = pneg %p220
      $region58: #{double_conv.4} parent=55 // pred_check_branch
        %1587 = sbr.rel (%p1585) target = $region60
      $region59: #{double_conv.4} parent=55 // pred_region
        %s1588 = smul.u32 8, %s26
        %p1589 = scmp.lt.s32.totalorder %s25, 1
        %s1590 = scalar_select %p1589, %s25, 1
        %p1591 = scmp.lt.s32.totalorder %s1588, 15
        %s1592 = scalar_select %p1591, %s1588, 15
        %s1593 = smul.addr %s1592, 2
        %s1594 = smul.addr %s1590, 32
        %s1595 = sadd.s32 %s1593, %s1594
        %s1596 = smul.addr %s1595, 8
        %s1597 = scalar_lea.vmem %s6, %s1596
      $region60: #{double_conv.4} parent=55 // pred_fallthru
        _
      // Predicated region
      $region61: #{double_conv.4} parent=55 // pred_check
        %p1598 = pneg %p248
      $region62: #{double_conv.4} parent=55 // pred_check_branch
        %1600 = sbr.rel (%p1598) target = $region64
      $region63: #{double_conv.4} parent=55 // pred_region
        %p1601 = scmp.lt.s32.totalorder %s25, 1
        %s1602 = scalar_select %p1601, %s25, 1
        %p1603 = scmp.lt.s32.totalorder %s26, 1
        %s1604 = scalar_select %p1603, %s26, 1
        %s1605 = smul.addr %s1602, 2
        %s1606 = sadd.s32 %s1604, %s1605
        %s1607 = smul.addr %s1606, 2
        %s1608 = scalar_lea.vmem %s7, %s1607
      $region64: #{double_conv.4} parent=55 // pred_fallthru
        _
    $region56: #{double_conv.4} parent=5 // pred_fallthru
      _
  $region6: #{double_conv.4} parent=0 // loop_footer
    %s18 = sadd.s32 1, %s14
  $region7: #{double_conv.4} parent=0 // loop_footer_branch
    %13 = sbr.rel target = $region3
  $region8: #{double_conv.4} parent=0 // loop_exit
    _

// kernel: double_conv.3
$region0: #{double_conv.3}
  #allocation0 [shape = 'u32[]', space=smem, size = 0x4, offset = 0x4, fixed_abs, tag = 'smem constant byte address 0x4 - core index']
  #allocation1 [shape = 'u32[72,128]{1,0:T(1,128)}', space=vmem, size = 0x9000, scoped, tag = 'internal scratch']
  #allocation2 [shape = 'f32[10,18,4]{2,1,0:T(8,128)}', space=vmem, size = 0x1e000, scoped, tag = 'scratch operand']
  #allocation3 [shape = 'f32[128,36]{1,0:T(8,128)}', space=vmem, size = 0x10000, scoped, tag = 'scratch operand']
  %s0 = inlined_call_operand.vmem [shape: f32[2,16,16,4], index: 0, kind: input, shape index: {}, may-alias: {0,1,2}]
  %s1 = inlined_call_operand.vmem [shape: f32[2,16,16,4], index: 1, kind: input, shape index: {}, may-alias: {0,1,2}]
  %s2 = inlined_call_operand.vmem [shape: f32[2,16,16,4], index: 2, kind: input, shape index: {}, may-alias: {0,1,2}]
  %s3 = inlined_call_operand.vmem [shape: f32[36,8], index: 3, kind: input, shape index: {}]
  %s4 = inlined_call_operand.vmem [shape: f32[2,16,16,8], index: 4, kind: output, shape index: {0}]
  %s5 = inlined_call_operand.vmem [shape: f32[2,2,2,8], index: 5, kind: output, shape index: {1}]
  %6 = xla_tuple %s4, %s5
  %s7 = sld [smem:[#allocation0]]
  $region57: #{double_conv.3} parent=0
    _
  %s9 = ssub.s32 1, %s7
  %s10 = scalar_select 0, %s9, %s7
  loop: start=0, step=1, limit=6
  $region2: #{double_conv.3} parent=0 // loop_pre_header
    _
  $region3: #{double_conv.3} parent=0 // loop_header
    %s12 = sphi 0, %s16
    %p13 = scmp.ge.s32.totalorder %s12, 6
    %s19 = sphi 0, %s31
    %s20 = sphi 0, %s27
    %s21 = sphi 0, %s19
    %s22 = sphi 0, %s20
    %s23 = sphi 0, %s21
    %s24 = sphi 0, %s22
    %s36 = sphi 0, %s38
    %s39 = sphi 0, %s36
    %s40 = sphi 0, %s39
    %s56 = sphi 0, %s40
    %s72 = sphi 0, %s74
    %s75 = sphi 0, %s72
    %s76 = sphi 0, %s75
    %s92 = sphi 0, %s76
    %s108 = sphi 0, %s110
    %s111 = sphi 0, %s108
    %s112 = sphi 0, %s111
    %s128 = sphi 0, %s112
    %s132 = sphi 0, %s132
    %s134 = sphi 0, %s132
    %s135 = sphi 0, %s134
    %s149 = sphi 0, %s135
    %s157 = sphi 0, %s159
    %s160 = sphi 0, %s157
    %s161 = sphi 0, %s160
    %s177 = sphi 0, %s161
    %s185 = sphi 0, %s187
    %s188 = sphi 0, %s185
    %s189 = sphi 0, %s188
    %s205 = sphi 0, %s189
  $region4: #{double_conv.3} parent=0 // loop_header_branch
    %15 = sbr.rel (%p13) target = $region8
  $region5: #{double_conv.3} parent=0 // loop_body
    %s17 = ssub.s32 %s12, 1
    %s18 = ssub.s32 %s12, 2
    %s25 = sadd.s32 1, %s20
    %p26 = scmp.ge.s32.totalorder %s25, 2
    %s27 = scalar_select %p26, 0, %s25
    %s28 = sadd.s32 1, %s19
    %s29 = scalar_select %p26, %s28, %s19
    %p30 = scmp.ge.s32.totalorder %s29, 2
    %s31 = scalar_select %p30, 0, %s29
    %s32 = ssub.s32 %s19, %s31
    %s33 = ssub.s32 %s20, %s27
    %s34 = sor.u32 %s32, %s33
    %p35 = scmp.eq.s32.totalorder %s34, 0
    %s37 = sadd.s32 %s36, 1
    %s38 = scalar_select %p35, %s36, %s37
    %p41 = pneg %p35
    %p42 = scmp.eq.s32.totalorder %s12, 3
    %p43 = por %p41, %p42
    %p44 = scmp.ne.s32.totalorder %s36, %s39
    %p45 = scmp.eq.s32.totalorder %s12, 0
    %p46 = por %p44, %p45
    %p47 = scmp.ne.s32.totalorder %s36, %s39
    %p48 = scmp.eq.s32.totalorder %s17, 3
    %p49 = por %p47, %p48
    %p50 = scmp.ne.s32.totalorder %s39, %s40
    %p51 = scmp.eq.s32.totalorder %s17, 0
    %p52 = por %p50, %p51
    %p53 = scmp.ne.s32.totalorder %s39, %s40
    %p54 = scmp.eq.s32.totalorder %s18, 3
    %p55 = por %p53, %p54
    %p57 = scmp.ne.s32.totalorder %s40, %s56
    %p58 = scmp.eq.s32.totalorder %s18, 0
    %p59 = por %p57, %p58
    %s60 = smul.u32 %s20, 8
    %s61 = ssub.s32 %s60, 1
    %p62 = scmp.gt.s32.totalorder %s61, 0
    %s63 = scalar_select %p62, %s61, 0
    %s64 = smul.u32 %s27, 8
    %s65 = ssub.s32 %s64, 1
    %p66 = scmp.gt.s32.totalorder %s65, 0
    %s67 = scalar_select %p66, %s65, 0
    %s68 = ssub.s32 %s19, %s31
    %s69 = ssub.s32 %s63, %s67
    %s70 = sor.u32 %s68, %s69
    %p71 = scmp.eq.s32.totalorder %s70, 0
    %s73 = sadd.s32 %s72, 1
    %s74 = scalar_select %p71, %s72, %s73
    %p77 = pneg %p71
    %p78 = scmp.eq.s32.totalorder %s12, 3
    %p79 = por %p77, %p78
    %p80 = scmp.ne.s32.totalorder %s72, %s75
    %p81 = scmp.eq.s32.totalorder %s12, 0
    %p82 = por %p80, %p81
    %p83 = scmp.ne.s32.totalorder %s72, %s75
    %p84 = scmp.eq.s32.totalorder %s17, 3
    %p85 = por %p83, %p84
    %p86 = scmp.ne.s32.totalorder %s75, %s76
    %p87 = scmp.eq.s32.totalorder %s17, 0
    %p88 = por %p86, %p87
    %p89 = scmp.ne.s32.totalorder %s75, %s76
    %p90 = scmp.eq.s32.totalorder %s18, 3
    %p91 = por %p89, %p90
    %p93 = scmp.ne.s32.totalorder %s76, %s92
    %p94 = scmp.eq.s32.totalorder %s18, 0
    %p95 = por %p93, %p94
    %s96 = smul.u32 %s20, 8
    %s97 = sadd.s32 %s96, 8
    %p98 = scmp.lt.s32.totalorder %s97, 15
    %s99 = scalar_select %p98, %s97, 15
    %s100 = smul.u32 %s27, 8
    %s101 = sadd.s32 %s100, 8
    %p102 = scmp.lt.s32.totalorder %s101, 15
    %s103 = scalar_select %p102, %s101, 15
    %s104 = ssub.s32 %s19, %s31
    %s105 = ssub.s32 %s99, %s103
    %s106 = sor.u32 %s104, %s105
    %p107 = scmp.eq.s32.totalorder %s106, 0
    %s109 = sadd.s32 %s108, 1
    %s110 = scalar_select %p107, %s108, %s109
    %p113 = pneg %p107
    %p114 = scmp.eq.s32.totalorder %s12, 3
    %p115 = por %p113, %p114
    %p116 = scmp.ne.s32.totalorder %s108, %s111
    %p117 = scmp.eq.s32.totalorder %s12, 0
    %p118 = por %p116, %p117
    %p119 = scmp.ne.s32.totalorder %s108, %s111
    %p120 = scmp.eq.s32.totalorder %s17, 3
    %p121 = por %p119, %p120
    %p122 = scmp.ne.s32.totalorder %s111, %s112
    %p123 = scmp.eq.s32.totalorder %s17, 0
    %p124 = por %p122, %p123
    %p125 = scmp.ne.s32.totalorder %s111, %s112
    %p126 = scmp.eq.s32.totalorder %s18, 3
    %p127 = por %p125, %p126
    %p129 = scmp.ne.s32.totalorder %s112, %s128
    %p130 = scmp.eq.s32.totalorder %s18, 0
    %p131 = por %p129, %p130
    %s133 = sadd.s32 %s132, 1
    %p136 = scmp.eq.s32.totalorder %s12, 3
    %p137 = scmp.ne.s32.totalorder %s132, %s134
    %p138 = scmp.eq.s32.totalorder %s12, 0
    %p139 = por %p137, %p138
    %p140 = scmp.ne.s32.totalorder %s132, %s134
    %p141 = scmp.eq.s32.totalorder %s17, 3
    %p142 = por %p140, %p141
    %p143 = scmp.ne.s32.totalorder %s134, %s135
    %p144 = scmp.eq.s32.totalorder %s17, 0
    %p145 = por %p143, %p144
    %p146 = scmp.ne.s32.totalorder %s134, %s135
    %p147 = scmp.eq.s32.totalorder %s18, 3
    %p148 = por %p146, %p147
    %p150 = scmp.ne.s32.totalorder %s135, %s149
    %p151 = scmp.eq.s32.totalorder %s18, 0
    %p152 = por %p150, %p151
    %s153 = ssub.s32 %s19, %s31
    %s154 = ssub.s32 %s20, %s27
    %s155 = sor.u32 %s153, %s154
    %p156 = scmp.eq.s32.totalorder %s155, 0
    %s158 = sadd.s32 %s157, 1
    %s159 = scalar_select %p156, %s157, %s158
    %p162 = pneg %p156
    %p163 = scmp.eq.s32.totalorder %s12, 3
    %p164 = por %p162, %p163
    %p165 = scmp.ne.s32.totalorder %s157, %s160
    %p166 = scmp.eq.s32.totalorder %s12, 0
    %p167 = por %p165, %p166
    %p168 = scmp.ne.s32.totalorder %s157, %s160
    %p169 = scmp.eq.s32.totalorder %s17, 3
    %p170 = por %p168, %p169
    %p171 = scmp.ne.s32.totalorder %s160, %s161
    %p172 = scmp.eq.s32.totalorder %s17, 0
    %p173 = por %p171, %p172
    %p174 = scmp.ne.s32.totalorder %s160, %s161
    %p175 = scmp.eq.s32.totalorder %s18, 3
    %p176 = por %p174, %p175
    %p178 = scmp.ne.s32.totalorder %s161, %s177
    %p179 = scmp.eq.s32.totalorder %s18, 0
    %p180 = por %p178, %p179
    %s181 = ssub.s32 %s19, %s31
    %s182 = ssub.s32 %s20, %s27
    %s183 = sor.u32 %s181, %s182
    %p184 = scmp.eq.s32.totalorder %s183, 0
    %s186 = sadd.s32 %s185, 1
    %s187 = scalar_select %p184, %s185, %s186
    %p190 = pneg %p184
    %p191 = scmp.eq.s32.totalorder %s12, 3
    %p192 = por %p190, %p191
    %p193 = scmp.ne.s32.totalorder %s185, %s188
    %p194 = scmp.eq.s32.totalorder %s12, 0
    %p195 = por %p193, %p194
    %p196 = scmp.ne.s32.totalorder %s185, %s188
    %p197 = scmp.eq.s32.totalorder %s17, 3
    %p198 = por %p196, %p197
    %p199 = scmp.ne.s32.totalorder %s188, %s189
    %p200 = scmp.eq.s32.totalorder %s17, 0
    %p201 = por %p199, %p200
    %p202 = scmp.ne.s32.totalorder %s188, %s189
    %p203 = scmp.eq.s32.totalorder %s18, 3
    %p204 = por %p202, %p203
    %p206 = scmp.ne.s32.totalorder %s189, %s205
    %p207 = scmp.eq.s32.totalorder %s18, 0
    %p208 = por %p206, %p207
    %p209 = scmp.le.s32.totalorder 1, %s12
    %p210 = scmp.lt.s32.totalorder %s12, 5
    %p211 = pnand %p209, %p210
    %p212 = pneg %p211
    // Predicated region
    $region9: #{double_conv.3} parent=5 // pred_check
      _
    $region10: #{double_conv.3} parent=5 // pred_check_branch
      %214 = sbr.rel (%p211) target = $region12
    $region11: #{double_conv.3} parent=5 // pred_region
      %s215 = ssub.s32 %s12, 1
      // Predicated region
      $region13: #{double_conv.3} parent=11 // pred_check
        %p216 = pneg %p145
      $region14: #{double_conv.3} parent=11 // pred_check_branch
        %218 = sbr.rel (%p216) target = $region16
      $region15: #{double_conv.3} parent=11 // pred_region
        _
      $region16: #{double_conv.3} parent=11 // pred_fallthru
        _
    $region12: #{double_conv.3} parent=5 // pred_fallthru
      _
    %p219 = scmp.lt.s32.totalorder %s12, 4
    // Predicated region
    $region17: #{double_conv.3} parent=5 // pred_check
      %p220 = pneg %p219
    $region18: #{double_conv.3} parent=5 // pred_check_branch
      %222 = sbr.rel (%p220) target = $region20
    $region19: #{double_conv.3} parent=5 // pred_region
      // Predicated region
      $region21: #{double_conv.3} parent=19 // pred_check
        %p223 = pneg %p46
      $region22: #{double_conv.3} parent=19 // pred_check_branch
        %225 = sbr.rel (%p223) target = $region24
      $region23: #{double_conv.3} parent=19 // pred_region
        %s226 = smul.u32 8, %s20
        %p227 = scmp.lt.s32.totalorder %s19, 1
        %s228 = scalar_select %p227, %s19, 1
        %p229 = scmp.lt.s32.totalorder %s226, 15
        %s230 = scalar_select %p229, %s226, 15
        %s231 = smul.addr %s230, 2
        %s232 = smul.addr %s228, 32
        %s233 = sadd.s32 %s231, %s232
        %s234 = smul.addr %s233, 8
        %s235 = scalar_lea.vmem %s0, %s234
        %s236 = smul.u32 8, %s20
      $region24: #{double_conv.3} parent=19 // pred_fallthru
        _
      // Predicated region
      $region25: #{double_conv.3} parent=19 // pred_check
        %p237 = pneg %p82
      $region26: #{double_conv.3} parent=19 // pred_check_branch
        %239 = sbr.rel (%p237) target = $region28
      $region27: #{double_conv.3} parent=19 // pred_region
        %s240 = smul.u32 %s20, 8
        %s241 = ssub.s32 %s240, 1
        %p242 = scmp.gt.s32.totalorder %s241, 0
        %s243 = scalar_select %p242, %s241, 0
        %p244 = scmp.lt.s32.totalorder %s19, 1
        %s245 = scalar_select %p244, %s19, 1
        %p246 = scmp.lt.s32.totalorder %s243, 15
        %s247 = scalar_select %p246, %s243, 15
        %s248 = smul.addr %s247, 2
        %s249 = smul.addr %s245, 32
        %s250 = sadd.s32 %s248, %s249
        %s251 = smul.addr %s250, 8
        %s252 = scalar_lea.vmem %s1, %s251
        %s253 = smul.u32 %s20, 8
        %s254 = ssub.s32 %s253, 1
        %p255 = scmp.gt.s32.totalorder %s254, 0
        %s256 = scalar_select %p255, %s254, 0
      $region28: #{double_conv.3} parent=19 // pred_fallthru
        _
      // Predicated region
      $region29: #{double_conv.3} parent=19 // pred_check
        %p257 = pneg %p118
      $region30: #{double_conv.3} parent=19 // pred_check_branch
        %259 = sbr.rel (%p257) target = $region32
      $region31: #{double_conv.3} parent=19 // pred_region
        %s260 = smul.u32 %s20, 8
        %s261 = sadd.s32 %s260, 8
        %p262 = scmp.lt.s32.totalorder %s261, 15
        %s263 = scalar_select %p262, %s261, 15
        %p264 = scmp.lt.s32.totalorder %s19, 1
        %s265 = scalar_select %p264, %s19, 1
        %p266 = scmp.lt.s32.totalorder %s263, 15
        %s267 = scalar_select %p266, %s263, 15
        %s268 = smul.addr %s267, 2
        %s269 = smul.addr %s265, 32
        %s270 = sadd.s32 %s268, %s269
        %s271 = smul.addr %s270, 8
        %s272 = scalar_lea.vmem %s2, %s271
        %s273 = smul.u32 %s20, 8
        %s274 = sadd.s32 %s273, 8
        %p275 = scmp.lt.s32.totalorder %s274, 15
        %s276 = scalar_select %p275, %s274, 15
      $region32: #{double_conv.3} parent=19 // pred_fallthru
        _
    $region20: #{double_conv.3} parent=5 // pred_fallthru
      _
    %p277 = scmp.le.s32.totalorder 1, %s12
    %p278 = scmp.lt.s32.totalorder %s12, 5
    %p279 = pnand %p277, %p278
    %p280 = pneg %p279
    // Predicated region
    $region33: #{double_conv.3} parent=5 // pred_check
      _
    $region34: #{double_conv.3} parent=5 // pred_check_branch
      %282 = sbr.rel (%p279) target = $region36
    $region35: #{double_conv.3} parent=5 // pred_region
      %s283 = ssub.s32 %s12, 1
      %s284 = smul.u32 8, %s22
      %p285 = scmp.lt.s32.totalorder %s21, 1
      %s286 = scalar_select %p285, %s21, 1
      %p287 = scmp.lt.s32.totalorder %s284, 15
      %s288 = scalar_select %p287, %s284, 15
      %s289 = smul.addr %s288, 2
      %s290 = smul.addr %s286, 32
      %s291 = sadd.s32 %s289, %s290
      %s292 = smul.addr %s291, 8
      %s293 = scalar_lea.vmem %s0, %s292
      %p294 = pneg %p52
      %p295 = pneg %p49
      %s296 = smul.u32 %s22, 8
      %s297 = ssub.s32 %s296, 1
      %p298 = scmp.gt.s32.totalorder %s297, 0
      %s299 = scalar_select %p298, %s297, 0
      %p300 = scmp.lt.s32.totalorder %s21, 1
      %s301 = scalar_select %p300, %s21, 1
      %p302 = scmp.lt.s32.totalorder %s299, 15
      %s303 = scalar_select %p302, %s299, 15
      %s304 = smul.addr %s303, 2
      %s305 = smul.addr %s301, 32
      %s306 = sadd.s32 %s304, %s305
      %s307 = smul.addr %s306, 8
      %s308 = scalar_lea.vmem %s1, %s307
      %p309 = pneg %p88
      %p310 = pneg %p85
      %s311 = smul.u32 %s22, 8
      %s312 = sadd.s32 %s311, 8
      %p313 = scmp.lt.s32.totalorder %s312, 15
      %s314 = scalar_select %p313, %s312, 15
      %p315 = scmp.lt.s32.totalorder %s21, 1
      %s316 = scalar_select %p315, %s21, 1
      %p317 = scmp.lt.s32.totalorder %s314, 15
      %s318 = scalar_select %p317, %s314, 15
      %s319 = smul.addr %s318, 2
      %s320 = smul.addr %s316, 32
      %s321 = sadd.s32 %s319, %s320
      %s322 = smul.addr %s321, 8
      %s323 = scalar_lea.vmem %s2, %s322
      %p324 = pneg %p124
      %p325 = pneg %p121
      %p326 = pneg %p145
      %p327 = pneg %p142
      %p328 = pneg %p173
      %p329 = pneg %p170
      %s330 = smul.u32 8, %s22
      %p331 = scmp.lt.s32.totalorder %s21, 1
      %s332 = scalar_select %p331, %s21, 1
      %p333 = scmp.lt.s32.totalorder %s330, 15
      %s334 = scalar_select %p333, %s330, 15
      %s335 = smul.addr %s334, 2
      %s336 = smul.addr %s332, 32
      %s337 = sadd.s32 %s335, %s336
      %s338 = smul.addr %s337, 8
      %s339 = scalar_lea.vmem %s4, %s338
      %p340 = pneg %p201
      %p341 = pneg %p198
      %p342 = scmp.lt.s32.totalorder %s21, 1
      %s343 = scalar_select %p342, %s21, 1
      %p344 = scmp.lt.s32.totalorder %s22, 1
      %s345 = scalar_select %p344, %s22, 1
      %s346 = smul.addr %s343, 2
      %s347 = sadd.s32 %s345, %s346
      %s348 = smul.addr %s347, 2
      %s349 = scalar_lea.vmem %s5, %s348
      %s350 = smul.u32 8, %s22
      %p351 = scmp.lt.s32.totalorder %s21, 1
      %s352 = scalar_select %p351, %s21, 1
      %p353 = scmp.lt.s32.totalorder %s350, 15
      %s354 = scalar_select %p353, %s350, 15
      %s355 = smul.addr %s354, 2
      %s356 = smul.addr %s352, 32
      %s357 = sadd.s32 %s355, %s356
      %s358 = smul.addr %s357, 8
      %s359 = scalar_lea.vmem %s0, %s358
      %s360 = smul.u32 8, %s22
      %s361 = smul.u32 %s22, 8
      %s362 = ssub.s32 %s361, 1
      %p363 = scmp.gt.s32.totalorder %s362, 0
      %s364 = scalar_select %p363, %s362, 0
      %p365 = scmp.lt.s32.totalorder %s21, 1
      %s366 = scalar_select %p365, %s21, 1
      %p367 = scmp.lt.s32.totalorder %s364, 15
      %s368 = scalar_select %p367, %s364, 15
      %s369 = smul.addr %s368, 2
      %s370 = smul.addr %s366, 32
      %s371 = sadd.s32 %s369, %s370
      %s372 = smul.addr %s371, 8
      %s373 = scalar_lea.vmem %s1, %s372
      %s374 = smul.u32 %s22, 8
      %s375 = ssub.s32 %s374, 1
      %p376 = scmp.gt.s32.totalorder %s375, 0
      %s377 = scalar_select %p376, %s375, 0
      %s378 = smul.u32 %s22, 8
      %s379 = sadd.s32 %s378, 8
      %p380 = scmp.lt.s32.totalorder %s379, 15
      %s381 = scalar_select %p380, %s379, 15
      %p382 = scmp.lt.s32.totalorder %s21, 1
      %s383 = scalar_select %p382, %s21, 1
      %p384 = scmp.lt.s32.totalorder %s381, 15
      %s385 = scalar_select %p384, %s381, 15
      %s386 = smul.addr %s385, 2
      %s387 = smul.addr %s383, 32
      %s388 = sadd.s32 %s386, %s387
      %s389 = smul.addr %s388, 8
      %s390 = scalar_lea.vmem %s2, %s389
      %s391 = smul.u32 %s22, 8
      %s392 = sadd.s32 %s391, 8
      %p393 = scmp.lt.s32.totalorder %s392, 15
      %s394 = scalar_select %p393, %s392, 15
      %s395 = smul.u32 8, %s22
      %p396 = scmp.lt.s32.totalorder %s21, 1
      %s397 = scalar_select %p396, %s21, 1
      %p398 = scmp.lt.s32.totalorder %s395, 15
      %s399 = scalar_select %p398, %s395, 15
      %s400 = smul.addr %s399, 2
      %s401 = smul.addr %s397, 32
      %s402 = sadd.s32 %s400, %s401
      %s403 = smul.addr %s402, 8
      %s404 = scalar_lea.vmem %s4, %s403
      %s405 = smul.u32 8, %s22
      %p406 = scmp.lt.s32.totalorder %s21, 1
      %s407 = scalar_select %p406, %s21, 1
      %p408 = scmp.lt.s32.totalorder %s22, 1
      %s409 = scalar_select %p408, %s22, 1
      %s410 = smul.addr %s407, 2
      %s411 = sadd.s32 %s409, %s410
      %s412 = smul.addr %s411, 2
      %s413 = scalar_lea.vmem %s5, %s412
      %p414 = scmp.eq.s32.totalorder %s22, 0
      %s415 = scalar_select %p414, 0.0, 1.0
      %p416 = scmp.eq.s32.totalorder %s22, 1
      %s417 = scalar_select %p416, 0.0, 1.0
      %v418 = vld [vmem:[%s373] sm:$0xff]
      %v419 = vld [vmem:[%s373 + $0x8] sm:$0xff]
      %v420 = vstv %s415
      %v421 = vmul.f32 %v418, %v420
      %v422 = vmul.f32 %v419, %v420
      %vm423 = vcmask 31744
      %424 = vst.msk [vmem:[#allocation2 + $0x1] sm:$0xff] %vm423, %v421
      %425 = vst.msk [vmem:[#allocation2 + $0x9] sm:$0xff] %vm423, %v422
      %v426 = vld [vmem:[%s390] sm:$0xff]
      %v427 = vld [vmem:[%s390 + $0x8] sm:$0xff]
      %v428 = vstv %s417
      %v429 = vmul.f32 %v426, %v428
      %v430 = vmul.f32 %v427, %v428
      %s431 = scalar_lea.vmem [#allocation2], 216
      %432 = vst.msk [vmem:[%s431 + $0x1] sm:$0xff] %vm423, %v429
      %433 = vst.msk [vmem:[%s431 + $0x9] sm:$0xff] %vm423, %v430
      %v434 = vld [vmem:[%s359] sm:$0xff]
      %v435 = vld [vmem:[%s359 + $0x8] sm:$0xff]
      %v436 = vld [vmem:[%s359 + $0x10] sm:$0xff]
      %v437 = vld [vmem:[%s359 + $0x18] sm:$0xff]
      %v438 = vld [vmem:[%s359 + $0x20] sm:$0xff]
      %v439 = vld [vmem:[%s359 + $0x28] sm:$0xff]
      %v440 = vld [vmem:[%s359 + $0x30] sm:$0xff]
      %v441 = vld [vmem:[%s359 + $0x38] sm:$0xff]
      %v442 = vld [vmem:[%s359 + $0x40] sm:$0xff]
      %v443 = vld [vmem:[%s359 + $0x48] sm:$0xff]
      %v444 = vld [vmem:[%s359 + $0x50] sm:$0xff]
      %v445 = vld [vmem:[%s359 + $0x58] sm:$0xff]
      %v446 = vld [vmem:[%s359 + $0x60] sm:$0xff]
      %v447 = vld [vmem:[%s359 + $0x68] sm:$0xff]
      %v448 = vld [vmem:[%s359 + $0x70] sm:$0xff]
      %v449 = vld [vmem:[%s359 + $0x78] sm:$0xff]
      %s450 = scalar_lea.vmem [#allocation2], 24
      %451 = vst.msk [vmem:[%s450 + $0x1] sm:$0xff] %vm423, %v434
      %452 = vst.msk [vmem:[%s450 + $0x9] sm:$0xff] %vm423, %v435
      %453 = vst.msk [vmem:[%s450 + $0x19] sm:$0xff] %vm423, %v436
      %454 = vst.msk [vmem:[%s450 + $0x21] sm:$0xff] %vm423, %v437
      %455 = vst.msk [vmem:[%s450 + $0x31] sm:$0xff] %vm423, %v438
      %456 = vst.msk [vmem:[%s450 + $0x39] sm:$0xff] %vm423, %v439
      %457 = vst.msk [vmem:[%s450 + $0x49] sm:$0xff] %vm423, %v440
      %458 = vst.msk [vmem:[%s450 + $0x51] sm:$0xff] %vm423, %v441
      %459 = vst.msk [vmem:[%s450 + $0x61] sm:$0xff] %vm423, %v442
      %460 = vst.msk [vmem:[%s450 + $0x69] sm:$0xff] %vm423, %v443
      %461 = vst.msk [vmem:[%s450 + $0x79] sm:$0xff] %vm423, %v444
      %462 = vst.msk [vmem:[%s450 + $0x81] sm:$0xff] %vm423, %v445
      %463 = vst.msk [vmem:[%s450 + $0x91] sm:$0xff] %vm423, %v446
      %464 = vst.msk [vmem:[%s450 + $0x99] sm:$0xff] %vm423, %v447
      %465 = vst.msk [vmem:[%s450 + $0xa9] sm:$0xff] %vm423, %v448
      %466 = vst.msk [vmem:[%s450 + $0xb1] sm:$0xff] %vm423, %v449
      %vm467 = vcmask 24576
      %468 = vst.msk [vmem:[#allocation2] sm:$0x1] %vm467, 0.0
      %469 = vst.msk [vmem:[#allocation2 + $0x18] sm:$0x1] %vm467, 0.0
      %470 = vst.msk [vmem:[#allocation2 + $0x30] sm:$0x1] %vm467, 0.0
      %471 = vst.msk [vmem:[#allocation2 + $0x48] sm:$0x1] %vm467, 0.0
      %472 = vst.msk [vmem:[#allocation2 + $0x60] sm:$0x1] %vm467, 0.0
      %473 = vst.msk [vmem:[#allocation2 + $0x78] sm:$0x1] %vm467, 0.0
      %474 = vst.msk [vmem:[#allocation2 + $0x90] sm:$0x1] %vm467, 0.0
      %475 = vst.msk [vmem:[#allocation2 + $0xa8] sm:$0x1] %vm467, 0.0
      %476 = vst.msk [vmem:[#allocation2 + $0xc0] sm:$0x1] %vm467, 0.0
      %477 = vst.msk [vmem:[#allocation2 + $0xd8] sm:$0x1] %vm467, 0.0
      %478 = vst.msk [vmem:[#allocation2 + $0x11] sm:$0x1] %vm467, 0.0
      %479 = vst.msk [vmem:[#allocation2 + $0x29] sm:$0x1] %vm467, 0.0
      %480 = vst.msk [vmem:[#allocation2 + $0x41] sm:$0x1] %vm467, 0.0
      %481 = vst.msk [vmem:[#allocation2 + $0x59] sm:$0x1] %vm467, 0.0
      %482 = vst.msk [vmem:[#allocation2 + $0x71] sm:$0x1] %vm467, 0.0
      %483 = vst.msk [vmem:[#allocation2 + $0x89] sm:$0x1] %vm467, 0.0
      %484 = vst.msk [vmem:[#allocation2 + $0xa1] sm:$0x1] %vm467, 0.0
      %485 = vst.msk [vmem:[#allocation2 + $0xb9] sm:$0x1] %vm467, 0.0
      %486 = vst.msk [vmem:[#allocation2 + $0xd1] sm:$0x1] %vm467, 0.0
      %487 = vst.msk [vmem:[#allocation2 + $0xe9] sm:$0x1] %vm467, 0.0
      %v488 = vld [vmem:[#allocation2] sm:$0xff]
      %v489 = vld [vmem:[#allocation2 + $0x8] sm:$0xff]
      %v490 = vld [vmem:[#allocation2 + $0x10] sm:$0x3]
      %v491 = vld [vmem:[#allocation2 + $0x18] sm:$0xff]
      %v492 = vld [vmem:[#allocation2 + $0x20] sm:$0xff]
      %v493 = vld [vmem:[#allocation2 + $0x28] sm:$0x3]
      %v494 = vld [vmem:[#allocation2 + $0x30] sm:$0xff]
      %v495 = vld [vmem:[#allocation2 + $0x38] sm:$0xff]
      %v496 = vld [vmem:[#allocation2 + $0x40] sm:$0x3]
      %v497 = vld [vmem:[#allocation2 + $0x48] sm:$0xff]
      %v498 = vld [vmem:[#allocation2 + $0x50] sm:$0xff]
      %v499 = vld [vmem:[#allocation2 + $0x58] sm:$0x3]
      %v500 = vld [vmem:[#allocation2 + $0x60] sm:$0xff]
      %v501 = vld [vmem:[#allocation2 + $0x68] sm:$0xff]
      %v502 = vld [vmem:[#allocation2 + $0x70] sm:$0x3]
      %v503 = vld [vmem:[#allocation2 + $0x78] sm:$0xff]
      %v504 = vld [vmem:[#allocation2 + $0x80] sm:$0xff]
      %v505 = vld [vmem:[#allocation2 + $0x88] sm:$0x3]
      %v506 = vld [vmem:[#allocation2 + $0x90] sm:$0xff]
      %v507 = vld [vmem:[#allocation2 + $0x98] sm:$0xff]
      %v508 = vld [vmem:[#allocation2 + $0xa0] sm:$0x3]
      %v509 = vld [vmem:[#allocation2 + $0xa8] sm:$0xff]
      %v510 = vld [vmem:[#allocation2 + $0xb0] sm:$0xff]
      %v511 = vld [vmem:[#allocation2 + $0xb8] sm:$0x3]
      %v512 = vld [vmem:[#allocation2 + $0xc0] sm:$0xff]
      %v513 = vld [vmem:[#allocation2 + $0xc8] sm:$0xff]
      %v514 = vld [vmem:[#allocation2 + $0xd0] sm:$0x3]
      %v515 = vld [vmem:[#allocation2 + $0xd8] sm:$0xff]
      %v516 = vld [vmem:[#allocation2 + $0xe0] sm:$0xff]
      %v517 = vld [vmem:[#allocation2 + $0xe8] sm:$0x3]
      %518 = vst.msk [vmem:[#allocation3] sm:$0xff] %vm423, %v488
      %519 = vst.msk [vmem:[#allocation3 + $0x8] sm:$0xff] %vm423, %v489
      %520 = vst.msk [vmem:[#allocation3 + $0x10] sm:$0xff] %vm423, %v491
      %521 = vst.msk [vmem:[#allocation3 + $0x18] sm:$0xff] %vm423, %v492
      %522 = vst.msk [vmem:[#allocation3 + $0x20] sm:$0xff] %vm423, %v494
      %523 = vst.msk [vmem:[#allocation3 + $0x28] sm:$0xff] %vm423, %v495
      %524 = vst.msk [vmem:[#allocation3 + $0x30] sm:$0xff] %vm423, %v497
      %525 = vst.msk [vmem:[#allocation3 + $0x38] sm:$0xff] %vm423, %v498
      %526 = vst.msk [vmem:[#allocation3 + $0x40] sm:$0xff] %vm423, %v500
      %527 = vst.msk [vmem:[#allocation3 + $0x48] sm:$0xff] %vm423, %v501
      %528 = vst.msk [vmem:[#allocation3 + $0x50] sm:$0xff] %vm423, %v503
      %529 = vst.msk [vmem:[#allocation3 + $0x58] sm:$0xff] %vm423, %v504
      %530 = vst.msk [vmem:[#allocation3 + $0x60] sm:$0xff] %vm423, %v506
      %531 = vst.msk [vmem:[#allocation3 + $0x68] sm:$0xff] %vm423, %v507
      %532 = vst.msk [vmem:[#allocation3 + $0x70] sm:$0xff] %vm423, %v509
      %533 = vst.msk [vmem:[#allocation3 + $0x78] sm:$0xff] %vm423, %v510
      %vm558 = vcmask 1046528
      %v559 = vrot.slane %v488, 1
      %v560 = vrot.slane %v489, 1
      %v561 = vsel %vm558, %v559, %v560
      %v562 = vrot.slane %v490, 1
      %v563 = vsel %vm558, %v560, %v562
      %v564 = vrot.slane %v491, 1
      %v565 = vrot.slane %v492, 1
      %v566 = vsel %vm558, %v564, %v565
      %v567 = vrot.slane %v493, 1
      %v568 = vsel %vm558, %v565, %v567
      %v569 = vrot.slane %v494, 1
      %v570 = vrot.slane %v495, 1
      %v571 = vsel %vm558, %v569, %v570
      %v572 = vrot.slane %v496, 1
      %v573 = vsel %vm558, %v570, %v572
      %v574 = vrot.slane %v497, 1
      %v575 = vrot.slane %v498, 1
      %v576 = vsel %vm558, %v574, %v575
      %v577 = vrot.slane %v499, 1
      %v578 = vsel %vm558, %v575, %v577
      %v579 = vrot.slane %v500, 1
      %v580 = vrot.slane %v501, 1
      %v581 = vsel %vm558, %v579, %v580
      %v582 = vrot.slane %v502, 1
      %v583 = vsel %vm558, %v580, %v582
      %v584 = vrot.slane %v503, 1
      %v585 = vrot.slane %v504, 1
      %v586 = vsel %vm558, %v584, %v585
      %v587 = vrot.slane %v505, 1
      %v588 = vsel %vm558, %v585, %v587
      %v589 = vrot.slane %v506, 1
      %v590 = vrot.slane %v507, 1
      %v591 = vsel %vm558, %v589, %v590
      %v592 = vrot.slane %v508, 1
      %v593 = vsel %vm558, %v590, %v592
      %v594 = vrot.slane %v509, 1
      %v595 = vrot.slane %v510, 1
      %v596 = vsel %vm558, %v594, %v595
      %v597 = vrot.slane %v511, 1
      %v598 = vsel %vm558, %v595, %v597
      %599 = vrot.lane.b32.xlu0 %v561, 4
      %v600 = vpop.permute.xlu0 %599
      %601 = vrot.lane.b32.xlu0 %v563, 4
      %v602 = vpop.permute.xlu0 %601
      %603 = vrot.lane.b32.xlu0 %v566, 4
      %v604 = vpop.permute.xlu0 %603
      %605 = vrot.lane.b32.xlu0 %v568, 4
      %v606 = vpop.permute.xlu0 %605
      %607 = vrot.lane.b32.xlu0 %v571, 4
      %v608 = vpop.permute.xlu0 %607
      %609 = vrot.lane.b32.xlu0 %v573, 4
      %v610 = vpop.permute.xlu0 %609
      %611 = vrot.lane.b32.xlu0 %v576, 4
      %v612 = vpop.permute.xlu0 %611
      %613 = vrot.lane.b32.xlu0 %v578, 4
      %v614 = vpop.permute.xlu0 %613
      %615 = vrot.lane.b32.xlu0 %v581, 4
      %v616 = vpop.permute.xlu0 %615
      %617 = vrot.lane.b32.xlu0 %v583, 4
      %v618 = vpop.permute.xlu0 %617
      %619 = vrot.lane.b32.xlu0 %v586, 4
      %v620 = vpop.permute.xlu0 %619
      %621 = vrot.lane.b32.xlu0 %v588, 4
      %v622 = vpop.permute.xlu0 %621
      %623 = vrot.lane.b32.xlu0 %v591, 4
      %v624 = vpop.permute.xlu0 %623
      %625 = vrot.lane.b32.xlu0 %v593, 4
      %v626 = vpop.permute.xlu0 %625
      %627 = vrot.lane.b32.xlu0 %v596, 4
      %v628 = vpop.permute.xlu0 %627
      %629 = vrot.lane.b32.xlu0 %v598, 4
      %v630 = vpop.permute.xlu0 %629
      %vm647 = vcmask 64544
      %648 = vst.msk [vmem:[#allocation3] sm:$0xff] %vm647, %v600
      %649 = vst.msk [vmem:[#allocation3 + $0x8] sm:$0xff] %vm647, %v602
      %650 = vst.msk [vmem:[#allocation3 + $0x10] sm:$0xff] %vm647, %v604
      %651 = vst.msk [vmem:[#allocation3 + $0x18] sm:$0xff] %vm647, %v606
      %652 = vst.msk [vmem:[#allocation3 + $0x20] sm:$0xff] %vm647, %v608
      %653 = vst.msk [vmem:[#allocation3 + $0x28] sm:$0xff] %vm647, %v610
      %654 = vst.msk [vmem:[#allocation3 + $0x30] sm:$0xff] %vm647, %v612
      %655 = vst.msk [vmem:[#allocation3 + $0x38] sm:$0xff] %vm647, %v614
      %656 = vst.msk [vmem:[#allocation3 + $0x40] sm:$0xff] %vm647, %v616
      %657 = vst.msk [vmem:[#allocation3 + $0x48] sm:$0xff] %vm647, %v618
      %658 = vst.msk [vmem:[#allocation3 + $0x50] sm:$0xff] %vm647, %v620
      %659 = vst.msk [vmem:[#allocation3 + $0x58] sm:$0xff] %vm647, %v622
      %660 = vst.msk [vmem:[#allocation3 + $0x60] sm:$0xff] %vm647, %v624
      %661 = vst.msk [vmem:[#allocation3 + $0x68] sm:$0xff] %vm647, %v626
      %662 = vst.msk [vmem:[#allocation3 + $0x70] sm:$0xff] %vm647, %v628
      %663 = vst.msk [vmem:[#allocation3 + $0x78] sm:$0xff] %vm647, %v630
      %vm664 = vcmask 1045504
      %v665 = vrot.slane %v488, 2
      %v666 = vrot.slane %v489, 2
      %v667 = vsel %vm664, %v665, %v666
      %v668 = vrot.slane %v490, 2
      %v669 = vsel %vm664, %v666, %v668
      %v670 = vrot.slane %v491, 2
      %v671 = vrot.slane %v492, 2
      %v672 = vsel %vm664, %v670, %v671
      %v673 = vrot.slane %v493, 2
      %v674 = vsel %vm664, %v671, %v673
      %v675 = vrot.slane %v494, 2
      %v676 = vrot.slane %v495, 2
      %v677 = vsel %vm664, %v675, %v676
      %v678 = vrot.slane %v496, 2
      %v679 = vsel %vm664, %v676, %v678
      %v680 = vrot.slane %v497, 2
      %v681 = vrot.slane %v498, 2
      %v682 = vsel %vm664, %v680, %v681
      %v683 = vrot.slane %v499, 2
      %v684 = vsel %vm664, %v681, %v683
      %v685 = vrot.slane %v500, 2
      %v686 = vrot.slane %v501, 2
      %v687 = vsel %vm664, %v685, %v686
      %v688 = vrot.slane %v502, 2
      %v689 = vsel %vm664, %v686, %v688
      %v690 = vrot.slane %v503, 2
      %v691 = vrot.slane %v504, 2
      %v692 = vsel %vm664, %v690, %v691
      %v693 = vrot.slane %v505, 2
      %v694 = vsel %vm664, %v691, %v693
      %v695 = vrot.slane %v506, 2
      %v696 = vrot.slane %v507, 2
      %v697 = vsel %vm664, %v695, %v696
      %v698 = vrot.slane %v508, 2
      %v699 = vsel %vm664, %v696, %v698
      %v700 = vrot.slane %v509, 2
      %v701 = vrot.slane %v510, 2
      %v702 = vsel %vm664, %v700, %v701
      %v703 = vrot.slane %v511, 2
      %v704 = vsel %vm664, %v701, %v703
      %705 = vrot.lane.b32.xlu0 %v667, 8
      %v706 = vpop.permute.xlu0 %705
      %707 = vrot.lane.b32.xlu0 %v669, 8
      %v708 = vpop.permute.xlu0 %707
      %709 = vrot.lane.b32.xlu0 %v672, 8
      %v710 = vpop.permute.xlu0 %709
      %711 = vrot.lane.b32.xlu0 %v674, 8
      %v712 = vpop.permute.xlu0 %711
      %713 = vrot.lane.b32.xlu0 %v677, 8
      %v714 = vpop.permute.xlu0 %713
      %715 = vrot.lane.b32.xlu0 %v679, 8
      %v716 = vpop.permute.xlu0 %715
      %717 = vrot.lane.b32.xlu0 %v682, 8
      %v718 = vpop.permute.xlu0 %717
      %719 = vrot.lane.b32.xlu0 %v684, 8
      %v720 = vpop.permute.xlu0 %719
      %721 = vrot.lane.b32.xlu0 %v687, 8
      %v722 = vpop.permute.xlu0 %721
      %723 = vrot.lane.b32.xlu0 %v689, 8
      %v724 = vpop.permute.xlu0 %723
      %725 = vrot.lane.b32.xlu0 %v692, 8
      %v726 = vpop.permute.xlu0 %725
      %727 = vrot.lane.b32.xlu0 %v694, 8
      %v728 = vpop.permute.xlu0 %727
      %729 = vrot.lane.b32.xlu0 %v697, 8
      %v730 = vpop.permute.xlu0 %729
      %731 = vrot.lane.b32.xlu0 %v699, 8
      %v732 = vpop.permute.xlu0 %731
      %733 = vrot.lane.b32.xlu0 %v702, 8
      %v734 = vpop.permute.xlu0 %733
      %735 = vrot.lane.b32.xlu0 %v704, 8
      %v736 = vpop.permute.xlu0 %735
      %vm753 = vcmask 97344
      %754 = vst.msk [vmem:[#allocation3] sm:$0xff] %vm753, %v706
      %755 = vst.msk [vmem:[#allocation3 + $0x8] sm:$0xff] %vm753, %v708
      %756 = vst.msk [vmem:[#allocation3 + $0x10] sm:$0xff] %vm753, %v710
      %757 = vst.msk [vmem:[#allocation3 + $0x18] sm:$0xff] %vm753, %v712
      %758 = vst.msk [vmem:[#allocation3 + $0x20] sm:$0xff] %vm753, %v714
      %759 = vst.msk [vmem:[#allocation3 + $0x28] sm:$0xff] %vm753, %v716
      %760 = vst.msk [vmem:[#allocation3 + $0x30] sm:$0xff] %vm753, %v718
      %761 = vst.msk [vmem:[#allocation3 + $0x38] sm:$0xff] %vm753, %v720
      %762 = vst.msk [vmem:[#allocation3 + $0x40] sm:$0xff] %vm753, %v722
      %763 = vst.msk [vmem:[#allocation3 + $0x48] sm:$0xff] %vm753, %v724
      %764 = vst.msk [vmem:[#allocation3 + $0x50] sm:$0xff] %vm753, %v726
      %765 = vst.msk [vmem:[#allocation3 + $0x58] sm:$0xff] %vm753, %v728
      %766 = vst.msk [vmem:[#allocation3 + $0x60] sm:$0xff] %vm753, %v730
      %767 = vst.msk [vmem:[#allocation3 + $0x68] sm:$0xff] %vm753, %v732
      %768 = vst.msk [vmem:[#allocation3 + $0x70] sm:$0xff] %vm753, %v734
      %769 = vst.msk [vmem:[#allocation3 + $0x78] sm:$0xff] %vm753, %v736
      %772 = vrot.lane.b32.xlu0 %v491, 12
      %v773 = vpop.permute.xlu0 %772
      %774 = vrot.lane.b32.xlu0 %v492, 12
      %v775 = vpop.permute.xlu0 %774
      %776 = vrot.lane.b32.xlu0 %v494, 12
      %v777 = vpop.permute.xlu0 %776
      %778 = vrot.lane.b32.xlu0 %v495, 12
      %v779 = vpop.permute.xlu0 %778
      %780 = vrot.lane.b32.xlu0 %v497, 12
      %v781 = vpop.permute.xlu0 %780
      %782 = vrot.lane.b32.xlu0 %v498, 12
      %v783 = vpop.permute.xlu0 %782
      %784 = vrot.lane.b32.xlu0 %v500, 12
      %v785 = vpop.permute.xlu0 %784
      %786 = vrot.lane.b32.xlu0 %v501, 12
      %v787 = vpop.permute.xlu0 %786
      %788 = vrot.lane.b32.xlu0 %v503, 12
      %v789 = vpop.permute.xlu0 %788
      %790 = vrot.lane.b32.xlu0 %v504, 12
      %v791 = vpop.permute.xlu0 %790
      %792 = vrot.lane.b32.xlu0 %v506, 12
      %v793 = vpop.permute.xlu0 %792
      %794 = vrot.lane.b32.xlu0 %v507, 12
      %v795 = vpop.permute.xlu0 %794
      %796 = vrot.lane.b32.xlu0 %v509, 12
      %v797 = vpop.permute.xlu0 %796
      %798 = vrot.lane.b32.xlu0 %v510, 12
      %v799 = vpop.permute.xlu0 %798
      %800 = vrot.lane.b32.xlu0 %v512, 12
      %v801 = vpop.permute.xlu0 %800
      %802 = vrot.lane.b32.xlu0 %v513, 12
      %v803 = vpop.permute.xlu0 %802
      %vm820 = vcmask 130144
      %821 = vst.msk [vmem:[#allocation3] sm:$0xff] %vm820, %v773
      %822 = vst.msk [vmem:[#allocation3 + $0x8] sm:$0xff] %vm820, %v775
      %823 = vst.msk [vmem:[#allocation3 + $0x10] sm:$0xff] %vm820, %v777
      %824 = vst.msk [vmem:[#allocation3 + $0x18] sm:$0xff] %vm820, %v779
      %825 = vst.msk [vmem:[#allocation3 + $0x20] sm:$0xff] %vm820, %v781
      %826 = vst.msk [vmem:[#allocation3 + $0x28] sm:$0xff] %vm820, %v783
      %827 = vst.msk [vmem:[#allocation3 + $0x30] sm:$0xff] %vm820, %v785
      %828 = vst.msk [vmem:[#allocation3 + $0x38] sm:$0xff] %vm820, %v787
      %829 = vst.msk [vmem:[#allocation3 + $0x40] sm:$0xff] %vm820, %v789
      %830 = vst.msk [vmem:[#allocation3 + $0x48] sm:$0xff] %vm820, %v791
      %831 = vst.msk [vmem:[#allocation3 + $0x50] sm:$0xff] %vm820, %v793
      %832 = vst.msk [vmem:[#allocation3 + $0x58] sm:$0xff] %vm820, %v795
      %833 = vst.msk [vmem:[#allocation3 + $0x60] sm:$0xff] %vm820, %v797
      %834 = vst.msk [vmem:[#allocation3 + $0x68] sm:$0xff] %vm820, %v799
      %835 = vst.msk [vmem:[#allocation3 + $0x70] sm:$0xff] %vm820, %v801
      %836 = vst.msk [vmem:[#allocation3 + $0x78] sm:$0xff] %vm820, %v803
      %v838 = vrot.slane %v512, 1
      %v839 = vrot.slane %v513, 1
      %v840 = vsel %vm558, %v838, %v839
      %v841 = vrot.slane %v514, 1
      %v842 = vsel %vm558, %v839, %v841
      %843 = vrot.lane.b32.xlu0 %v566, 16
      %v844 = vpop.permute.xlu0 %843
      %845 = vrot.lane.b32.xlu0 %v568, 16
      %v846 = vpop.permute.xlu0 %845
      %847 = vrot.lane.b32.xlu0 %v571, 16
      %v848 = vpop.permute.xlu0 %847
      %849 = vrot.lane.b32.xlu0 %v573, 16
      %v850 = vpop.permute.xlu0 %849
      %851 = vrot.lane.b32.xlu0 %v576, 16
      %v852 = vpop.permute.xlu0 %851
      %853 = vrot.lane.b32.xlu0 %v578, 16
      %v854 = vpop.permute.xlu0 %853
      %855 = vrot.lane.b32.xlu0 %v581, 16
      %v856 = vpop.permute.xlu0 %855
      %857 = vrot.lane.b32.xlu0 %v583, 16
      %v858 = vpop.permute.xlu0 %857
      %859 = vrot.lane.b32.xlu0 %v586, 16
      %v860 = vpop.permute.xlu0 %859
      %861 = vrot.lane.b32.xlu0 %v588, 16
      %v862 = vpop.permute.xlu0 %861
      %863 = vrot.lane.b32.xlu0 %v591, 16
      %v864 = vpop.permute.xlu0 %863
      %865 = vrot.lane.b32.xlu0 %v593, 16
      %v866 = vpop.permute.xlu0 %865
      %867 = vrot.lane.b32.xlu0 %v596, 16
      %v868 = vpop.permute.xlu0 %867
      %869 = vrot.lane.b32.xlu0 %v598, 16
      %v870 = vpop.permute.xlu0 %869
      %871 = vrot.lane.b32.xlu0 %v840, 16
      %v872 = vpop.permute.xlu0 %871
      %873 = vrot.lane.b32.xlu0 %v842, 16
      %v874 = vpop.permute.xlu0 %873
      %vm891 = vcmask 162944
      %892 = vst.msk [vmem:[#allocation3] sm:$0xff] %vm891, %v844
      %893 = vst.msk [vmem:[#allocation3 + $0x8] sm:$0xff] %vm891, %v846
      %894 = vst.msk [vmem:[#allocation3 + $0x10] sm:$0xff] %vm891, %v848
      %895 = vst.msk [vmem:[#allocation3 + $0x18] sm:$0xff] %vm891, %v850
      %896 = vst.msk [vmem:[#allocation3 + $0x20] sm:$0xff] %vm891, %v852
      %897 = vst.msk [vmem:[#allocation3 + $0x28] sm:$0xff] %vm891, %v854
      %898 = vst.msk [vmem:[#allocation3 + $0x30] sm:$0xff] %vm891, %v856
      %899 = vst.msk [vmem:[#allocation3 + $0x38] sm:$0xff] %vm891, %v858
      %900 = vst.msk [vmem:[#allocation3 + $0x40] sm:$0xff] %vm891, %v860
      %901 = vst.msk [vmem:[#allocation3 + $0x48] sm:$0xff] %vm891, %v862
      %902 = vst.msk [vmem:[#allocation3 + $0x50] sm:$0xff] %vm891, %v864
      %903 = vst.msk [vmem:[#allocation3 + $0x58] sm:$0xff] %vm891, %v866
      %904 = vst.msk [vmem:[#allocation3 + $0x60] sm:$0xff] %vm891, %v868
      %905 = vst.msk [vmem:[#allocation3 + $0x68] sm:$0xff] %vm891, %v870
      %906 = vst.msk [vmem:[#allocation3 + $0x70] sm:$0xff] %vm891, %v872
      %907 = vst.msk [vmem:[#allocation3 + $0x78] sm:$0xff] %vm891, %v874
      %v908 = vrot.slane %v512, 2
      %v909 = vrot.slane %v513, 2
      %v910 = vsel %vm664, %v908, %v909
      %v911 = vrot.slane %v514, 2
      %v912 = vsel %vm664, %v909, %v911
      %913 = vrot.lane.b32.xlu0 %v672, 20
      %v914 = vpop.permute.xlu0 %913
      %915 = vrot.lane.b32.xlu0 %v674, 20
      %v916 = vpop.permute.xlu0 %915
      %917 = vrot.lane.b32.xlu0 %v677, 20
      %v918 = vpop.permute.xlu0 %917
      %919 = vrot.lane.b32.xlu0 %v679, 20
      %v920 = vpop.permute.xlu0 %919
      %921 = vrot.lane.b32.xlu0 %v682, 20
      %v922 = vpop.permute.xlu0 %921
      %923 = vrot.lane.b32.xlu0 %v684, 20
      %v924 = vpop.permute.xlu0 %923
      %925 = vrot.lane.b32.xlu0 %v687, 20
      %v926 = vpop.permute.xlu0 %925
      %927 = vrot.lane.b32.xlu0 %v689, 20
      %v928 = vpop.permute.xlu0 %927
      %929 = vrot.lane.b32.xlu0 %v692, 20
      %v930 = vpop.permute.xlu0 %929
      %931 = vrot.lane.b32.xlu0 %v694, 20
      %v932 = vpop.permute.xlu0 %931
      %933 = vrot.lane.b32.xlu0 %v697, 20
      %v934 = vpop.permute.xlu0 %933
      %935 = vrot.lane.b32.xlu0 %v699, 20
      %v936 = vpop.permute.xlu0 %935
      %937 = vrot.lane.b32.xlu0 %v702, 20
      %v938 = vpop.permute.xlu0 %937
      %939 = vrot.lane.b32.xlu0 %v704, 20
      %v940 = vpop.permute.xlu0 %939
      %941 = vrot.lane.b32.xlu0 %v910, 20
      %v942 = vpop.permute.xlu0 %941
      %943 = vrot.lane.b32.xlu0 %v912, 20
      %v944 = vpop.permute.xlu0 %943
      %vm961 = vcmask 195744
      %962 = vst.msk [vmem:[#allocation3] sm:$0xff] %vm961, %v914
      %963 = vst.msk [vmem:[#allocation3 + $0x8] sm:$0xff] %vm961, %v916
      %964 = vst.msk [vmem:[#allocation3 + $0x10] sm:$0xff] %vm961, %v918
      %965 = vst.msk [vmem:[#allocation3 + $0x18] sm:$0xff] %vm961, %v920
      %966 = vst.msk [vmem:[#allocation3 + $0x20] sm:$0xff] %vm961, %v922
      %967 = vst.msk [vmem:[#allocation3 + $0x28] sm:$0xff] %vm961, %v924
      %968 = vst.msk [vmem:[#allocation3 + $0x30] sm:$0xff] %vm961, %v926
      %969 = vst.msk [vmem:[#allocation3 + $0x38] sm:$0xff] %vm961, %v928
      %970 = vst.msk [vmem:[#allocation3 + $0x40] sm:$0xff] %vm961, %v930
      %971 = vst.msk [vmem:[#allocation3 + $0x48] sm:$0xff] %vm961, %v932
      %972 = vst.msk [vmem:[#allocation3 + $0x50] sm:$0xff] %vm961, %v934
      %973 = vst.msk [vmem:[#allocation3 + $0x58] sm:$0xff] %vm961, %v936
      %974 = vst.msk [vmem:[#allocation3 + $0x60] sm:$0xff] %vm961, %v938
      %975 = vst.msk [vmem:[#allocation3 + $0x68] sm:$0xff] %vm961, %v940
      %976 = vst.msk [vmem:[#allocation3 + $0x70] sm:$0xff] %vm961, %v942
      %977 = vst.msk [vmem:[#allocation3 + $0x78] sm:$0xff] %vm961, %v944
      %980 = vrot.lane.b32.xlu0 %v494, 24
      %v981 = vpop.permute.xlu0 %980
      %982 = vrot.lane.b32.xlu0 %v495, 24
      %v983 = vpop.permute.xlu0 %982
      %984 = vrot.lane.b32.xlu0 %v497, 24
      %v985 = vpop.permute.xlu0 %984
      %986 = vrot.lane.b32.xlu0 %v498, 24
      %v987 = vpop.permute.xlu0 %986
      %988 = vrot.lane.b32.xlu0 %v500, 24
      %v989 = vpop.permute.xlu0 %988
      %990 = vrot.lane.b32.xlu0 %v501, 24
      %v991 = vpop.permute.xlu0 %990
      %992 = vrot.lane.b32.xlu0 %v503, 24
      %v993 = vpop.permute.xlu0 %992
      %994 = vrot.lane.b32.xlu0 %v504, 24
      %v995 = vpop.permute.xlu0 %994
      %996 = vrot.lane.b32.xlu0 %v506, 24
      %v997 = vpop.permute.xlu0 %996
      %998 = vrot.lane.b32.xlu0 %v507, 24
      %v999 = vpop.permute.xlu0 %998
      %1000 = vrot.lane.b32.xlu0 %v509, 24
      %v1001 = vpop.permute.xlu0 %1000
      %1002 = vrot.lane.b32.xlu0 %v510, 24
      %v1003 = vpop.permute.xlu0 %1002
      %1004 = vrot.lane.b32.xlu0 %v512, 24
      %v1005 = vpop.permute.xlu0 %1004
      %1006 = vrot.lane.b32.xlu0 %v513, 24
      %v1007 = vpop.permute.xlu0 %1006
      %1008 = vrot.lane.b32.xlu0 %v515, 24
      %v1009 = vpop.permute.xlu0 %1008
      %1010 = vrot.lane.b32.xlu0 %v516, 24
      %v1011 = vpop.permute.xlu0 %1010
      %vm1028 = vcmask 228544
      %1029 = vst.msk [vmem:[#allocation3] sm:$0xff] %vm1028, %v981
      %1030 = vst.msk [vmem:[#allocation3 + $0x8] sm:$0xff] %vm1028, %v983
      %1031 = vst.msk [vmem:[#allocation3 + $0x10] sm:$0xff] %vm1028, %v985
      %1032 = vst.msk [vmem:[#allocation3 + $0x18] sm:$0xff] %vm1028, %v987
      %1033 = vst.msk [vmem:[#allocation3 + $0x20] sm:$0xff] %vm1028, %v989
      %1034 = vst.msk [vmem:[#allocation3 + $0x28] sm:$0xff] %vm1028, %v991
      %1035 = vst.msk [vmem:[#allocation3 + $0x30] sm:$0xff] %vm1028, %v993
      %1036 = vst.msk [vmem:[#allocation3 + $0x38] sm:$0xff] %vm1028, %v995
      %1037 = vst.msk [vmem:[#allocation3 + $0x40] sm:$0xff] %vm1028, %v997
      %1038 = vst.msk [vmem:[#allocation3 + $0x48] sm:$0xff] %vm1028, %v999
      %1039 = vst.msk [vmem:[#allocation3 + $0x50] sm:$0xff] %vm1028, %v1001
      %1040 = vst.msk [vmem:[#allocation3 + $0x58] sm:$0xff] %vm1028, %v1003
      %1041 = vst.msk [vmem:[#allocation3 + $0x60] sm:$0xff] %vm1028, %v1005
      %1042 = vst.msk [vmem:[#allocation3 + $0x68] sm:$0xff] %vm1028, %v1007
      %1043 = vst.msk [vmem:[#allocation3 + $0x70] sm:$0xff] %vm1028, %v1009
      %1044 = vst.msk [vmem:[#allocation3 + $0x78] sm:$0xff] %vm1028, %v1011
      %v1046 = vrot.slane %v515, 1
      %v1047 = vrot.slane %v516, 1
      %v1048 = vsel %vm558, %v1046, %v1047
      %v1049 = vrot.slane %v517, 1
      %v1050 = vsel %vm558, %v1047, %v1049
      %1051 = vrot.lane.b32.xlu0 %v571, 28
      %v1052 = vpop.permute.xlu0 %1051
      %1053 = vrot.lane.b32.xlu0 %v573, 28
      %v1054 = vpop.permute.xlu0 %1053
      %1055 = vrot.lane.b32.xlu0 %v576, 28
      %v1056 = vpop.permute.xlu0 %1055
      %1057 = vrot.lane.b32.xlu0 %v578, 28
      %v1058 = vpop.permute.xlu0 %1057
      %1059 = vrot.lane.b32.xlu0 %v581, 28
      %v1060 = vpop.permute.xlu0 %1059
      %1061 = vrot.lane.b32.xlu0 %v583, 28
      %v1062 = vpop.permute.xlu0 %1061
      %1063 = vrot.lane.b32.xlu0 %v586, 28
      %v1064 = vpop.permute.xlu0 %1063
      %1065 = vrot.lane.b32.xlu0 %v588, 28
      %v1066 = vpop.permute.xlu0 %1065
      %1067 = vrot.lane.b32.xlu0 %v591, 28
      %v1068 = vpop.permute.xlu0 %1067
      %1069 = vrot.lane.b32.xlu0 %v593, 28
      %v1070 = vpop.permute.xlu0 %1069
      %1071 = vrot.lane.b32.xlu0 %v596, 28
      %v1072 = vpop.permute.xlu0 %1071
      %1073 = vrot.lane.b32.xlu0 %v598, 28
      %v1074 = vpop.permute.xlu0 %1073
      %1075 = vrot.lane.b32.xlu0 %v840, 28
      %v1076 = vpop.permute.xlu0 %1075
      %1077 = vrot.lane.b32.xlu0 %v842, 28
      %v1078 = vpop.permute.xlu0 %1077
      %1079 = vrot.lane.b32.xlu0 %v1048, 28
      %v1080 = vpop.permute.xlu0 %1079
      %1081 = vrot.lane.b32.xlu0 %v1050, 28
      %v1082 = vpop.permute.xlu0 %1081
      %vm1099 = vcmask 261344
      %1100 = vst.msk [vmem:[#allocation3] sm:$0xff] %vm1099, %v1052
      %1101 = vst.msk [vmem:[#allocation3 + $0x8] sm:$0xff] %vm1099, %v1054
      %1102 = vst.msk [vmem:[#allocation3 + $0x10] sm:$0xff] %vm1099, %v1056
      %1103 = vst.msk [vmem:[#allocation3 + $0x18] sm:$0xff] %vm1099, %v1058
      %1104 = vst.msk [vmem:[#allocation3 + $0x20] sm:$0xff] %vm1099, %v1060
      %1105 = vst.msk [vmem:[#allocation3 + $0x28] sm:$0xff] %vm1099, %v1062
      %1106 = vst.msk [vmem:[#allocation3 + $0x30] sm:$0xff] %vm1099, %v1064
      %1107 = vst.msk [vmem:[#allocation3 + $0x38] sm:$0xff] %vm1099, %v1066
      %1108 = vst.msk [vmem:[#allocation3 + $0x40] sm:$0xff] %vm1099, %v1068
      %1109 = vst.msk [vmem:[#allocation3 + $0x48] sm:$0xff] %vm1099, %v1070
      %1110 = vst.msk [vmem:[#allocation3 + $0x50] sm:$0xff] %vm1099, %v1072
      %1111 = vst.msk [vmem:[#allocation3 + $0x58] sm:$0xff] %vm1099, %v1074
      %1112 = vst.msk [vmem:[#allocation3 + $0x60] sm:$0xff] %vm1099, %v1076
      %1113 = vst.msk [vmem:[#allocation3 + $0x68] sm:$0xff] %vm1099, %v1078
      %1114 = vst.msk [vmem:[#allocation3 + $0x70] sm:$0xff] %vm1099, %v1080
      %1115 = vst.msk [vmem:[#allocation3 + $0x78] sm:$0xff] %vm1099, %v1082
      %v1116 = vrot.slane %v515, 2
      %v1117 = vrot.slane %v516, 2
      %v1118 = vsel %vm664, %v1116, %v1117
      %v1119 = vrot.slane %v517, 2
      %v1120 = vsel %vm664, %v1117, %v1119
      %1121 = vrot.lane.b32.xlu0 %v677, 32
      %v1122 = vpop.permute.xlu0 %1121
      %1123 = vrot.lane.b32.xlu0 %v679, 32
      %v1124 = vpop.permute.xlu0 %1123
      %1125 = vrot.lane.b32.xlu0 %v682, 32
      %v1126 = vpop.permute.xlu0 %1125
      %1127 = vrot.lane.b32.xlu0 %v684, 32
      %v1128 = vpop.permute.xlu0 %1127
      %1129 = vrot.lane.b32.xlu0 %v687, 32
      %v1130 = vpop.permute.xlu0 %1129
      %1131 = vrot.lane.b32.xlu0 %v689, 32
      %v1132 = vpop.permute.xlu0 %1131
      %1133 = vrot.lane.b32.xlu0 %v692, 32
      %v1134 = vpop.permute.xlu0 %1133
      %1135 = vrot.lane.b32.xlu0 %v694, 32
      %v1136 = vpop.permute.xlu0 %1135
      %1137 = vrot.lane.b32.xlu0 %v697, 32
      %v1138 = vpop.permute.xlu0 %1137
      %1139 = vrot.lane.b32.xlu0 %v699, 32
      %v1140 = vpop.permute.xlu0 %1139
      %1141 = vrot.lane.b32.xlu0 %v702, 32
      %v1142 = vpop.permute.xlu0 %1141
      %1143 = vrot.lane.b32.xlu0 %v704, 32
      %v1144 = vpop.permute.xlu0 %1143
      %1145 = vrot.lane.b32.xlu0 %v910, 32
      %v1146 = vpop.permute.xlu0 %1145
      %1147 = vrot.lane.b32.xlu0 %v912, 32
      %v1148 = vpop.permute.xlu0 %1147
      %1149 = vrot.lane.b32.xlu0 %v1118, 32
      %v1150 = vpop.permute.xlu0 %1149
      %1151 = vrot.lane.b32.xlu0 %v1120, 32
      %v1152 = vpop.permute.xlu0 %1151
      %vm1169 = vcmask 294144
      %1170 = vst.msk [vmem:[#allocation3] sm:$0xff] %vm1169, %v1122
      %1171 = vst.msk [vmem:[#allocation3 + $0x8] sm:$0xff] %vm1169, %v1124
      %1172 = vst.msk [vmem:[#allocation3 + $0x10] sm:$0xff] %vm1169, %v1126
      %1173 = vst.msk [vmem:[#allocation3 + $0x18] sm:$0xff] %vm1169, %v1128
      %1174 = vst.msk [vmem:[#allocation3 + $0x20] sm:$0xff] %vm1169, %v1130
      %1175 = vst.msk [vmem:[#allocation3 + $0x28] sm:$0xff] %vm1169, %v1132
      %1176 = vst.msk [vmem:[#allocation3 + $0x30] sm:$0xff] %vm1169, %v1134
      %1177 = vst.msk [vmem:[#allocation3 + $0x38] sm:$0xff] %vm1169, %v1136
      %1178 = vst.msk [vmem:[#allocation3 + $0x40] sm:$0xff] %vm1169, %v1138
      %1179 = vst.msk [vmem:[#allocation3 + $0x48] sm:$0xff] %vm1169, %v1140
      %1180 = vst.msk [vmem:[#allocation3 + $0x50] sm:$0xff] %vm1169, %v1142
      %1181 = vst.msk [vmem:[#allocation3 + $0x58] sm:$0xff] %vm1169, %v1144
      %1182 = vst.msk [vmem:[#allocation3 + $0x60] sm:$0xff] %vm1169, %v1146
      %1183 = vst.msk [vmem:[#allocation3 + $0x68] sm:$0xff] %vm1169, %v1148
      %1184 = vst.msk [vmem:[#allocation3 + $0x70] sm:$0xff] %vm1169, %v1150
      %1185 = vst.msk [vmem:[#allocation3 + $0x78] sm:$0xff] %vm1169, %v1152
      %v1186 = vld [vmem:[#allocation3] sm:$0xff]
      %v1187 = vld [vmem:[#allocation3 + $0x8] sm:$0xff]
      %v1188 = vld [vmem:[#allocation3 + $0x10] sm:$0xff]
      %v1189 = vld [vmem:[#allocation3 + $0x18] sm:$0xff]
      %v1190 = vld [vmem:[#allocation3 + $0x20] sm:$0xff]
      %v1191 = vld [vmem:[#allocation3 + $0x28] sm:$0xff]
      %v1192 = vld [vmem:[#allocation3 + $0x30] sm:$0xff]
      %v1193 = vld [vmem:[#allocation3 + $0x38] sm:$0xff]
      %v1194 = vld [vmem:[#allocation3 + $0x40] sm:$0xff]
      %v1195 = vld [vmem:[#allocation3 + $0x48] sm:$0xff]
      %v1196 = vld [vmem:[#allocation3 + $0x50] sm:$0xff]
      %v1197 = vld [vmem:[#allocation3 + $0x58] sm:$0xff]
      %v1198 = vld [vmem:[#allocation3 + $0x60] sm:$0xff]
      %v1199 = vld [vmem:[#allocation3 + $0x68] sm:$0xff]
      %v1200 = vld [vmem:[#allocation3 + $0x70] sm:$0xff]
      %v1201 = vld [vmem:[#allocation3 + $0x78] sm:$0xff]
      %v1202 = vld [vmem:[%s3] sm:$0xff]
      %v1203 = vld [vmem:[%s3 + $0x8] sm:$0xff]
      %v1204 = vld [vmem:[%s3 + $0x10] sm:$0xff]
      %v1205 = vld [vmem:[%s3 + $0x18] sm:$0xff]
      %v1206 = vld [vmem:[%s3 + $0x20] sm:$0xf]
      %vm1207 = vcmask 293888
      %v1209 = vsel %vm1207, %v1186, 0
      %v1212 = vsel %vm1207, %v1187, 0
      %v1215 = vsel %vm1207, %v1188, 0
      %v1218 = vsel %vm1207, %v1189, 0
      %v1221 = vsel %vm1207, %v1190, 0
      %v1224 = vsel %vm1207, %v1191, 0
      %v1227 = vsel %vm1207, %v1192, 0
      %v1230 = vsel %vm1207, %v1193, 0
      %v1233 = vsel %vm1207, %v1194, 0
      %v1236 = vsel %vm1207, %v1195, 0
      %v1239 = vsel %vm1207, %v1196, 0
      %v1242 = vsel %vm1207, %v1197, 0
      %v1245 = vsel %vm1207, %v1198, 0
      %v1248 = vsel %vm1207, %v1199, 0
      %v1251 = vsel %vm1207, %v1200, 0
      %v1254 = vsel %vm1207, %v1201, 0
      %vm1256 = vcmask 1043456
      %v1258 = vsel %vm1256, %v1206, 0
      %1260 = vmatpush.msra.mxu0 0.0
      %1261 = vmatpush.msra.mxu0 0.0
      %1262 = vmatpush.msra.mxu0 0.0
      %1263 = vmatpush.msra.mxu0 0.0
      %1264 = vmatpush.msra.mxu0 0.0
      %1265 = vmatpush.msra.mxu0 0.0
      %1266 = vmatpush.msra.mxu0 0.0
      %1267 = vmatpush.msra.mxu0 0.0
      %1268 = vmatpush.msra.mxu0 0.0
      %1269 = vmatpush.msra.mxu0 0.0
      %1270 = vmatpush.msra.mxu0 0.0
      %1271 = vmatpush.msra.mxu0 %v1258
      %1272 = vmatpush.msra.mxu0 %v1205
      %1273 = vmatpush.msra.mxu0 %v1204
      %1274 = vmatpush.msra.mxu0 %v1203
      %1275 = vmatpush.msra.mxu0 %v1202
      %1276 = vmatmul.f32.gmra.mxu0 %v1209
      %v1277 = vpop.f32.mrf.mxu0
      %v1278 = vadd.f32 0.0, %v1277
      %1279 = vmatmul.f32.gmra.mxu0 %v1212
      %v1280 = vpop.f32.mrf.mxu0
      %v1281 = vadd.f32 0.0, %v1280
      %1282 = vmatmul.f32.gmra.mxu0 %v1215
      %v1283 = vpop.f32.mrf.mxu0
      %v1284 = vadd.f32 0.0, %v1283
      %1285 = vmatmul.f32.gmra.mxu0 %v1218
      %v1286 = vpop.f32.mrf.mxu0
      %v1287 = vadd.f32 0.0, %v1286
      %1288 = vmatmul.f32.gmra.mxu0 %v1221
      %v1289 = vpop.f32.mrf.mxu0
      %v1290 = vadd.f32 0.0, %v1289
      %1291 = vmatmul.f32.gmra.mxu0 %v1224
      %v1292 = vpop.f32.mrf.mxu0
      %v1293 = vadd.f32 0.0, %v1292
      %1294 = vmatmul.f32.gmra.mxu0 %v1227
      %v1295 = vpop.f32.mrf.mxu0
      %v1296 = vadd.f32 0.0, %v1295
      %1297 = vmatmul.f32.gmra.mxu0 %v1230
      %v1298 = vpop.f32.mrf.mxu0
      %v1299 = vadd.f32 0.0, %v1298
      %1300 = vmatmul.f32.gmra.mxu0 %v1233
      %v1301 = vpop.f32.mrf.mxu0
      %v1302 = vadd.f32 0.0, %v1301
      %1303 = vmatmul.f32.gmra.mxu0 %v1236
      %v1304 = vpop.f32.mrf.mxu0
      %v1305 = vadd.f32 0.0, %v1304
      %1306 = vmatmul.f32.gmra.mxu0 %v1239
      %v1307 = vpop.f32.mrf.mxu0
      %v1308 = vadd.f32 0.0, %v1307
      %1309 = vmatmul.f32.gmra.mxu0 %v1242
      %v1310 = vpop.f32.mrf.mxu0
      %v1311 = vadd.f32 0.0, %v1310
      %1312 = vmatmul.f32.gmra.mxu0 %v1245
      %v1313 = vpop.f32.mrf.mxu0
      %v1314 = vadd.f32 0.0, %v1313
      %1315 = vmatmul.f32.gmra.mxu0 %v1248
      %v1316 = vpop.f32.mrf.mxu0
      %v1317 = vadd.f32 0.0, %v1316
      %1318 = vmatmul.f32.gmra.mxu0 %v1251
      %v1319 = vpop.f32.mrf.mxu0
      %v1320 = vadd.f32 0.0, %v1319
      %1321 = vmatmul.f32.gmra.mxu0 %v1254
      %v1322 = vpop.f32.mrf.mxu0
      %v1323 = vadd.f32 0.0, %v1322
      %1324 = vdwg.mxu0
      %vm1325 = vcmask 64512
      %v1326 = vsel %vm1325, %v1278, 0.0
      %v1327 = vsel %vm1325, %v1281, 0.0
      %v1328 = vadd.f32 %v1326, %v1327
      %v1329 = vsel %vm1325, %v1284, 0.0
      %v1330 = vadd.f32 %v1328, %v1329
      %v1331 = vsel %vm1325, %v1287, 0.0
      %v1332 = vadd.f32 %v1330, %v1331
      %v1333 = vsel %vm1325, %v1290, 0.0
      %v1334 = vadd.f32 %v1332, %v1333
      %v1335 = vsel %vm1325, %v1293, 0.0
      %v1336 = vadd.f32 %v1334, %v1335
      %v1337 = vsel %vm1325, %v1296, 0.0
      %v1338 = vadd.f32 %v1336, %v1337
      %v1339 = vsel %vm1325, %v1299, 0.0
      %v1340 = vadd.f32 %v1338, %v1339
      %v1341 = vsel %vm1325, %v1302, 0.0
      %v1342 = vadd.f32 %v1340, %v1341
      %v1343 = vsel %vm1325, %v1305, 0.0
      %v1344 = vadd.f32 %v1342, %v1343
      %v1345 = vsel %vm1325, %v1308, 0.0
      %v1346 = vadd.f32 %v1344, %v1345
      %v1347 = vsel %vm1325, %v1311, 0.0
      %v1348 = vadd.f32 %v1346, %v1347
      %v1349 = vsel %vm1325, %v1314, 0.0
      %v1350 = vadd.f32 %v1348, %v1349
      %v1351 = vsel %vm1325, %v1317, 0.0
      %v1352 = vadd.f32 %v1350, %v1351
      %v1353 = vsel %vm1325, %v1320, 0.0
      %v1354 = vadd.f32 %v1352, %v1353
      %v1355 = vsel %vm1325, %v1323, 0.0
      %v1356 = vadd.f32 %v1354, %v1355
      %v1357 = vrot.slane %v1356, 4
      %v1358 = vadd.f32 %v1356, %v1357
      %v1359 = vrot.slane %v1358, 2
      %v1360 = vadd.f32 %v1358, %v1359
      %v1361 = vrot.slane %v1360, 1
      %v1362 = vadd.f32 %v1360, %v1361
      %vm1363 = vcmask 57344
      %1364 = vst.msk [vmem:[%s413] sm:$0x1] %vm1363, %v1362
      %v1365 = vmul.f32 %v1278, %v1278
      %v1366 = vmul.f32 %v1281, %v1281
      %v1367 = vmul.f32 %v1284, %v1284
      %v1368 = vmul.f32 %v1287, %v1287
      %v1369 = vmul.f32 %v1290, %v1290
      %v1370 = vmul.f32 %v1293, %v1293
      %v1371 = vmul.f32 %v1296, %v1296
      %v1372 = vmul.f32 %v1299, %v1299
      %v1373 = vmul.f32 %v1302, %v1302
      %v1374 = vmul.f32 %v1305, %v1305
      %v1375 = vmul.f32 %v1308, %v1308
      %v1376 = vmul.f32 %v1311, %v1311
      %v1377 = vmul.f32 %v1314, %v1314
      %v1378 = vmul.f32 %v1317, %v1317
      %v1379 = vmul.f32 %v1320, %v1320
      %v1380 = vmul.f32 %v1323, %v1323
      %v1381 = vsel %vm1325, %v1365, 0.0
      %v1382 = vsel %vm1325, %v1366, 0.0
      %v1383 = vadd.f32 %v1381, %v1382
      %v1384 = vsel %vm1325, %v1367, 0.0
      %v1385 = vadd.f32 %v1383, %v1384
      %v1386 = vsel %vm1325, %v1368, 0.0
      %v1387 = vadd.f32 %v1385, %v1386
      %v1388 = vsel %vm1325, %v1369, 0.0
      %v1389 = vadd.f32 %v1387, %v1388
      %v1390 = vsel %vm1325, %v1370, 0.0
      %v1391 = vadd.f32 %v1389, %v1390
      %v1392 = vsel %vm1325, %v1371, 0.0
      %v1393 = vadd.f32 %v1391, %v1392
      %v1394 = vsel %vm1325, %v1372, 0.0
      %v1395 = vadd.f32 %v1393, %v1394
      %v1396 = vsel %vm1325, %v1373, 0.0
      %v1397 = vadd.f32 %v1395, %v1396
      %v1398 = vsel %vm1325, %v1374, 0.0
      %v1399 = vadd.f32 %v1397, %v1398
      %v1400 = vsel %vm1325, %v1375, 0.0
      %v1401 = vadd.f32 %v1399, %v1400
      %v1402 = vsel %vm1325, %v1376, 0.0
      %v1403 = vadd.f32 %v1401, %v1402
      %v1404 = vsel %vm1325, %v1377, 0.0
      %v1405 = vadd.f32 %v1403, %v1404
      %v1406 = vsel %vm1325, %v1378, 0.0
      %v1407 = vadd.f32 %v1405, %v1406
      %v1408 = vsel %vm1325, %v1379, 0.0
      %v1409 = vadd.f32 %v1407, %v1408
      %v1410 = vsel %vm1325, %v1380, 0.0
      %v1411 = vadd.f32 %v1409, %v1410
      %v1412 = vrot.slane %v1411, 4
      %v1413 = vadd.f32 %v1411, %v1412
      %v1414 = vrot.slane %v1413, 2
      %v1415 = vadd.f32 %v1413, %v1414
      %v1416 = vrot.slane %v1415, 1
      %v1417 = vadd.f32 %v1415, %v1416
      %1418 = vst.msk [vmem:[%s413 + $0x1] sm:$0x1] %vm1363, %v1417
      %1419 = vst.msk [vmem:[%s404] sm:$0xff] %vm1325, %v1278
      %1420 = vst.msk [vmem:[%s404 + $0x8] sm:$0xff] %vm1325, %v1281
      %1421 = vst.msk [vmem:[%s404 + $0x10] sm:$0xff] %vm1325, %v1284
      %1422 = vst.msk [vmem:[%s404 + $0x18] sm:$0xff] %vm1325, %v1287
      %1423 = vst.msk [vmem:[%s404 + $0x20] sm:$0xff] %vm1325, %v1290
      %1424 = vst.msk [vmem:[%s404 + $0x28] sm:$0xff] %vm1325, %v1293
      %1425 = vst.msk [vmem:[%s404 + $0x30] sm:$0xff] %vm1325, %v1296
      %1426 = vst.msk [vmem:[%s404 + $0x38] sm:$0xff] %vm1325, %v1299
      %1427 = vst.msk [vmem:[%s404 + $0x40] sm:$0xff] %vm1325, %v1302
      %1428 = vst.msk [vmem:[%s404 + $0x48] sm:$0xff] %vm1325, %v1305
      %1429 = vst.msk [vmem:[%s404 + $0x50] sm:$0xff] %vm1325, %v1308
      %1430 = vst.msk [vmem:[%s404 + $0x58] sm:$0xff] %vm1325, %v1311
      %1431 = vst.msk [vmem:[%s404 + $0x60] sm:$0xff] %vm1325, %v1314
      %1432 = vst.msk [vmem:[%s404 + $0x68] sm:$0xff] %vm1325, %v1317
      %1433 = vst.msk [vmem:[%s404 + $0x70] sm:$0xff] %vm1325, %v1320
      %1434 = vst.msk [vmem:[%s404 + $0x78] sm:$0xff] %vm1325, %v1323
      %s1435 = smul.u32 8, %s22
      %p1436 = scmp.lt.s32.totalorder %s21, 1
      %s1437 = scalar_select %p1436, %s21, 1
      %p1438 = scmp.lt.s32.totalorder %s1435, 15
      %s1439 = scalar_select %p1438, %s1435, 15
      %s1440 = smul.addr %s1439, 2
      %s1441 = smul.addr %s1437, 32
      %s1442 = sadd.s32 %s1440, %s1441
      %s1443 = smul.addr %s1442, 8
      %s1444 = scalar_lea.vmem %s4, %s1443
      %p1445 = scmp.lt.s32.totalorder %s21, 1
      %s1446 = scalar_select %p1445, %s21, 1
      %p1447 = scmp.lt.s32.totalorder %s22, 1
      %s1448 = scalar_select %p1447, %s22, 1
      %s1449 = smul.addr %s1446, 2
      %s1450 = sadd.s32 %s1448, %s1449
      %s1451 = smul.addr %s1450, 2
      %s1452 = scalar_lea.vmem %s5, %s1451
      // Predicated region
      $region37: #{double_conv.3} parent=35 // pred_check
        %p1453 = pneg %p170
      $region38: #{double_conv.3} parent=35 // pred_check_branch
        %1455 = sbr.rel (%p1453) target = $region40
      $region39: #{double_conv.3} parent=35 // pred_region
        %s1456 = smul.u32 8, %s22
      $region40: #{double_conv.3} parent=35 // pred_fallthru
        _
      // Predicated region
      $region41: #{double_conv.3} parent=35 // pred_check
        %p1457 = pneg %p198
      $region42: #{double_conv.3} parent=35 // pred_check_branch
        %1459 = sbr.rel (%p1457) target = $region44
      $region43: #{double_conv.3} parent=35 // pred_region
        _
      $region44: #{double_conv.3} parent=35 // pred_fallthru
        _
    $region36: #{double_conv.3} parent=5 // pred_fallthru
      _
    %p1460 = scmp.le.s32.totalorder 2, %s12
    // Predicated region
    $region45: #{double_conv.3} parent=5 // pred_check
      %p1461 = pneg %p1460
    $region46: #{double_conv.3} parent=5 // pred_check_branch
      %1463 = sbr.rel (%p1461) target = $region48
    $region47: #{double_conv.3} parent=5 // pred_region
      %s1464 = ssub.s32 %s12, 2
      // Predicated region
      $region49: #{double_conv.3} parent=47 // pred_check
        %p1465 = pneg %p176
      $region50: #{double_conv.3} parent=47 // pred_check_branch
        %1467 = sbr.rel (%p1465) target = $region52
      $region51: #{double_conv.3} parent=47 // pred_region
        %s1468 = smul.u32 8, %s24
        %p1469 = scmp.lt.s32.totalorder %s23, 1
        %s1470 = scalar_select %p1469, %s23, 1
        %p1471 = scmp.lt.s32.totalorder %s1468, 15
        %s1472 = scalar_select %p1471, %s1468, 15
        %s1473 = smul.addr %s1472, 2
        %s1474 = smul.addr %s1470, 32
        %s1475 = sadd.s32 %s1473, %s1474
        %s1476 = smul.addr %s1475, 8
        %s1477 = scalar_lea.vmem %s4, %s1476
      $region52: #{double_conv.3} parent=47 // pred_fallthru
        _
      // Predicated region
      $region53: #{double_conv.3} parent=47 // pred_check
        %p1478 = pneg %p204
      $region54: #{double_conv.3} parent=47 // pred_check_branch
        %1480 = sbr.rel (%p1478) target = $region56
      $region55: #{double_conv.3} parent=47 // pred_region
        %p1481 = scmp.lt.s32.totalorder %s23, 1
        %s1482 = scalar_select %p1481, %s23, 1
        %p1483 = scmp.lt.s32.totalorder %s24, 1
        %s1484 = scalar_select %p1483, %s24, 1
        %s1485 = smul.addr %s1482, 2
        %s1486 = sadd.s32 %s1484, %s1485
        %s1487 = smul.addr %s1486, 2
        %s1488 = scalar_lea.vmem %s5, %s1487
      $region56: #{double_conv.3} parent=47 // pred_fallthru
        _
    $region48: #{double_conv.3} parent=5 // pred_fallthru
      _
  $region6: #{double_conv.3} parent=0 // loop_footer
    %s16 = sadd.s32 1, %s12
  $region7: #{double_conv.3} parent=0 // loop_footer_branch
    %11 = sbr.rel target = $region3
  $region8: #{double_conv.3} parent=0 // loop_exit
    _

</llo_original>
